<compile_context>
chip_gen: v5e
topology: v5e:2x2
jax: 0.10.0
libtpu: 0.0.40
codegen_flags: <defaults>
</compile_context>

<pallas_src>
import functools

import jax
import jax.numpy as jnp
from jax.experimental import pallas as pl
from jax.experimental.pallas import tpu as pltpu

EPS = 1e-5


# ----------------------------- device heuristics ------------------------------

def _device_kind():
    try:
        return jax.devices()[0].device_kind.lower()
    except Exception:  # pragma: no cover
        return ""


def _mxu_depth():
    """MXU contraction depth used to size the tap groups."""
    kind = _device_kind()
    if any(t in kind for t in ("v2", "v3", "v4", "v5 lite", "v5e", "v5lite")):
        return 128          # 128x128 MXUs
    return 256              # v6e / v7x: 256-deep MXUs


def _vmem_limit_bytes():
    kind = _device_kind()
    if "7" in kind:                       # v7x: 64 MiB physical per TensorCore
        return 56 * 1024 * 1024
    return 100 * 1024 * 1024              # v5e / v6e: 128 MiB physical


# ------------------------------ kernel helpers ------------------------------

def _maxpool3(x):
    """MaxPool1d(kernel_size=3, stride=1, padding=1) along time (axis=1)."""
    N, T, C = x.shape
    neg = jnp.full((N, 1, C), -jnp.inf, x.dtype)
    xp = jnp.concatenate([neg, x, neg], axis=1)                 # (N, T+2, C)
    return jnp.maximum(jnp.maximum(xp[:, 0:T, :], xp[:, 1:T + 1, :]),
                       xp[:, 2:T + 2, :])


def _batchnorm_train(z, gamma, beta):
    """BatchNorm1d training mode on (R, C): single-pass sum / sum-of-squares."""
    rows = z.shape[0]
    s = jnp.sum(z, axis=0, keepdims=True)
    ss = jnp.sum(z * z, axis=0, keepdims=True)
    mean = s * (1.0 / rows)
    var = jnp.maximum(ss * (1.0 / rows) - mean * mean, 0.0)
    return (z - mean) * jax.lax.rsqrt(var + EPS) * gamma + beta


def _inception_module(x, zb, wfg, w4, gamma, beta, n_filters, tap_group, kmax,
                      out_dtype):
    """One InceptionModule (bottleneck already computed).

    x   : (N, T, Cin)  bf16   module input (also feeds the maxpool path)
    zb  : (N*T, Cb)    fp32   bottleneck pre-activation
    wfg : (n_groups, G*Cb, 3F) bf16   tap-grouped fused branch weights
    w4  : (Cin, F)     bf16   1x1 conv on the maxpool path
    returns (N, T, 4F) in out_dtype (post BN + ReLU)
    """
    N, T, Cin = x.shape
    F = n_filters
    G = tap_group
    n_groups = wfg.shape[0]
    Cb = wfg.shape[1] // G
    P = kmax // 2
    pad_l = P
    pad_r = n_groups * G - 1 - P      # covers zero-weight padding taps

    # pad the bottleneck activation ONCE along time (bf16 halves the copy)
    zb3 = zb.astype(jnp.bfloat16).reshape(N, T, Cb)
    zbp = jnp.concatenate(
        [jnp.zeros((N, pad_l, Cb), jnp.bfloat16), zb3,
         jnp.zeros((N, pad_r, Cb), jnp.bfloat16)], axis=1)      # (N, T+pl+pr, Cb)

    # tap-grouped convolution: one deep matmul per group of G taps
    acc = None
    for g in range(n_groups):                                   # static unroll
        base = g * G
        a_g = jnp.concatenate(
            [zbp[:, base + i: base + i + T, :] for i in range(G)],
            axis=-1)                                            # (N, T, G*Cb)
        part = jnp.dot(a_g.reshape(N * T, G * Cb), wfg[g],
                       preferred_element_type=jnp.float32)      # (N*T, 3F)
        acc = part if acc is None else acc + part

    # maxpool(3,1,1) path + 1x1 conv (bias=False)
    mp = _maxpool3(x)
    z4 = jnp.dot(mp.reshape(N * T, Cin).astype(jnp.bfloat16), w4,
                 preferred_element_type=jnp.float32)            # (N*T, F)

    # concat [Z1|Z2|Z3, Z4], BatchNorm (train), ReLU
    z = jnp.concatenate([acc, z4], axis=-1)                     # (N*T, 4F)
    z = _batchnorm_train(z, gamma, beta)
    return jnp.maximum(z, 0.0).astype(out_dtype).reshape(N, T, 4 * F)


# --------------------------------- kernel ------------------------------------

def inception_block_kernel(n_filters, tap_group, kmax, x_ref, *refs):
    out_ref = refs[-1]
    (wbr1_r, br_r, gr_r, betar_r,
     wf1_r, w41_r, g1_r, b1_r,
     wb2_r, wf2_r, w42_r, g2_r, b2_r,
     wb3_r, wf3_r, w43_r, g3_r, b3_r) = refs[:-1]

    x = x_ref[...]                                              # (N, T, Cin) bf16
    N, T, Cin = x.shape
    F = n_filters
    wbr1 = wbr1_r[...]
    Cb = wbr1.shape[1] - 4 * F

    # fused module-1 bottleneck + residual 1x1 conv: both consume x -> one matmul
    zc = jnp.dot(x.reshape(N * T, Cin), wbr1,
                 preferred_element_type=jnp.float32)            # (N*T, Cb+4F)
    zb1 = zc[:, :Cb]
    r = _batchnorm_train(zc[:, Cb:] + br_r[...], gr_r[...], betar_r[...])

    z = _inception_module(x, zb1, wf1_r[...], w41_r[...], g1_r[...], b1_r[...],
                          F, tap_group, kmax, jnp.bfloat16)
    zb2 = jnp.dot(z.reshape(N * T, 4 * F), wb2_r[...],
                  preferred_element_type=jnp.float32)
    z = _inception_module(z, zb2, wf2_r[...], w42_r[...], g2_r[...], b2_r[...],
                          F, tap_group, kmax, jnp.bfloat16)
    zb3 = jnp.dot(z.reshape(N * T, 4 * F), wb3_r[...],
                  preferred_element_type=jnp.float32)
    z = _inception_module(z, zb3, wf3_r[...], w43_r[...], g3_r[...], b3_r[...],
                          F, tap_group, kmax, jnp.float32)

    # residual add + final ReLU, stored lane-dense as (N, 4F, T)
    out = jnp.maximum(z.reshape(N * T, 4 * F) + r, 0.0)         # (N*T, 4F) fp32
    for n in range(N):                                          # small 2-D transposes
        out_ref[n, :, :] = jnp.transpose(out[n * T:(n + 1) * T, :])


# -------------------------------- wrapper -------------------------------------

def _group_tap_weights(wf, tap_group):
    """(Kmax, Cb, 3F) -> (ceil(Kmax/G), G*Cb, 3F), zero-padding the extra taps."""
    kmax, cb, fout = wf.shape
    kpad = -(-kmax // tap_group) * tap_group
    if kpad != kmax:
        wf = jnp.concatenate(
            [wf, jnp.zeros((kpad - kmax, cb, fout), wf.dtype)], axis=0)
    return wf.reshape(kpad // tap_group, tap_group * cb, fout)


def inception_block(x_nct, params, kernel_sizes, n_filters, tap_group=None):
    """x_nct: (N, Cin, T) PyTorch layout -> (N, 4*n_filters, T)."""
    N, Cin, T = x_nct.shape
    assert Cin > 1, "TODO(synk): in_channels == 1 (bottleneck skipped) not implemented"
    kmax = max(kernel_sizes)
    F = n_filters

    m1, m2, m3, pr = params["m1"], params["m2"], params["m3"], params["res"]
    Cb = m1["wb"].shape[1]
    if tap_group is None:
        tap_group = max(1, _mxu_depth() // Cb)     # G*Cb == MXU contraction depth

    # layout change NCW -> channels-last; bf16 halves the input DMA/transpose
    x = jnp.transpose(x_nct.astype(jnp.bfloat16), (0, 2, 1))    # (N, T, Cin)

    # fuse module-1 bottleneck weight with the residual 1x1 weight
    wbr1 = jnp.concatenate([m1["wb"], pr["wr"]], axis=1)        # (Cin, Cb+4F)

    flat = [x,
            wbr1, pr["br"], pr["gamma"], pr["beta"],
            _group_tap_weights(m1["wf"], tap_group), m1["w4"], m1["gamma"], m1["beta"],
            m2["wb"], _group_tap_weights(m2["wf"], tap_group), m2["w4"], m2["gamma"], m2["beta"],
            m3["wb"], _group_tap_weights(m3["wf"], tap_group), m3["w4"], m3["gamma"], m3["beta"]]

    kern = functools.partial(inception_block_kernel, n_filters, tap_group, kmax)
    vmem = pl.BlockSpec(memory_space=pltpu.MemorySpace.VMEM)
    out = pl.pallas_call(
        kern,
        out_shape=jax.ShapeDtypeStruct((N, 4 * F, T), jnp.float32),
        in_specs=[vmem] * len(flat),
        out_specs=vmem,
        compiler_params=pltpu.CompilerParams(
            vmem_limit_bytes=_vmem_limit_bytes()),
    )(*flat)
    return out                                                  # already (N, 4F, T)


# ----------------------------- parameter setup --------------------------------

def _fuse_branch_weights(branch_ws, kernel_sizes, kmax):
    """branch_ws[j]: PyTorch-style (F, Cb, Kj).  Returns (Kmax, Cb, 3F) bf16.

    wf[k, c, j*F + f] = w_j[f, c, k - (Kmax - Kj)//2]  (zero outside the range),
    which makes every branch's 'same' (padding = Kj//2) convolution exact when
    the activation is left-padded with Kmax//2 zeros.
    """
    F, Cb, _ = branch_ws[0].shape
    wf = jnp.zeros((kmax, Cb, len(branch_ws) * F), jnp.float32)
    for j, (w, K) in enumerate(zip(branch_ws, kernel_sizes)):
        off = (kmax - K) // 2
        wt = jnp.transpose(w, (2, 1, 0))                        # (K, Cb, F)
        wf = wf.at[off:off + K, :, j * F:(j + 1) * F].set(wt)
    return wf.astype(jnp.bfloat16)


def init_module_params(key, in_channels, n_filters, kernel_sizes,
                       bottleneck_channels):
    for K in kernel_sizes:
        assert K % 2 == 1, "kernel sizes must be odd for 'same' padding"
    ks = jax.random.split(key, 5)
    Cb = bottleneck_channels
    F = n_filters
    kmax = max(kernel_sizes)
    branch_ws = [
        jax.random.normal(ks[1 + j], (F, Cb, K), jnp.float32) * 0.05
        for j, K in enumerate(kernel_sizes)
    ]
    return {
        "wb": (jax.random.normal(ks[0], (in_channels, Cb), jnp.float32)
               * 0.1).astype(jnp.bfloat16),
        "wf": _fuse_branch_weights(branch_ws, kernel_sizes, kmax),
        "w4": (jax.random.normal(ks[4], (in_channels, F), jnp.float32)
               * 0.1).astype(jnp.bfloat16),
        "gamma": jnp.ones((1, 4 * F), jnp.float32),
        "beta": jnp.zeros((1, 4 * F), jnp.float32),
        "branch_w": branch_ws,          # fp32 masters, reference only
    }


def init_block_params(key, in_channels, n_filters, kernel_sizes,
                      bottleneck_channels):
    k1, k2, k3, kr = jax.random.split(key, 4)
    return {
        "m1": init_module_params(k1, in_channels, n_filters, kernel_sizes,
                                 bottleneck_channels),
        "m2": init_module_params(k2, 4 * n_filters, n_filters, kernel_sizes,
                                 bottleneck_channels),
        "m3": init_module_params(k3, 4 * n_filters, n_filters, kernel_sizes,
                                 bottleneck_channels),
        "res": {
            "wr": (jax.random.normal(kr, (in_channels, 4 * n_filters),
                                     jnp.float32) * 0.1).astype(jnp.bfloat16),
            "br": jnp.zeros((1, 4 * n_filters), jnp.float32),
            "gamma": jnp.ones((1, 4 * n_filters), jnp.float32),
            "beta": jnp.zeros((1, 4 * n_filters), jnp.float32),
        },
    }


# ------------------------- pure-JAX fp32 reference ----------------------------

def _bn_ref(z, gamma, beta):
    mean = jnp.mean(z, axis=(0, 1), keepdims=True)
    var = jnp.mean(jnp.square(z - mean), axis=(0, 1), keepdims=True)
    return ((z - mean) * jax.lax.rsqrt(var + EPS) * gamma.reshape(1, 1, -1)
            + beta.reshape(1, 1, -1))


def _maxpool3_ref(x):
    N, T, C = x.shape
    xp = jnp.pad(x, ((0, 0), (1, 1), (0, 0)), constant_values=-jnp.inf)
    return jnp.maximum(jnp.maximum(xp[:, 0:T], xp[:, 1:T + 1]), xp[:, 2:T + 2])


def _conv1d_same_ref(x, w):
    """x (N,T,C) fp32, w (F,C,K) fp32, stride 1, padding K//2."""
    N, T, C = x.shape
    F, _, K = w.shape
    P = K // 2
    xp = jnp.pad(x, ((0, 0), (P, P), (0, 0)))
    out = jnp.zeros((N, T, F), jnp.float32)
    for k in range(K):
        out = out + jnp.einsum("ntc,fc->ntf", xp[:, k:k + T], w[:, :, k])
    return out


def _module_ref(x, p):
    zb = jnp.einsum("ntc,cd->ntd", x, p["wb"].astype(jnp.float32))
    zs = [_conv1d_same_ref(zb, w.astype(jnp.bfloat16).astype(jnp.float32))
          for w in p["branch_w"]]
    z4 = jnp.einsum("ntc,cf->ntf", _maxpool3_ref(x), p["w4"].astype(jnp.float32))
    z = jnp.concatenate(zs + [z4], axis=-1)
    return jax.nn.relu(_bn_ref(z, p["gamma"], p["beta"]))


def inception_block_ref(x_nct, params):
    # consume the same bf16-rounded input the kernel sees
    x = jnp.transpose(x_nct.astype(jnp.bfloat16).astype(jnp.float32), (0, 2, 1))
    z = _module_ref(x, params["m1"])
    z = _module_ref(z, params["m2"])
    z = _module_ref(z, params["m3"])
    pr = params["res"]
    r = jnp.einsum("ntc,cf->ntf", x, pr["wr"].astype(jnp.float32)) \
        + pr["br"].reshape(1, 1, -1)
    r = _bn_ref(r, pr["gamma"], pr["beta"])
    return jnp.transpose(jax.nn.relu(z + r), (0, 2, 1))         # (N, 4F, T)


# ---------------------------------- main --------------------------------------

if __name__ == "__main__":
    # Small shapes consistent with the module: batch=2, in_channels=4, T=16.
    N, C_IN, T = 2, 4, 16
    N_FILTERS = 8                      # -> 4 * n_filters = 32 output channels
    KERNEL_SIZES = [11, 21, 41]        # InceptionBlock defaults
    BOTTLENECK = 32

    key = jax.random.PRNGKey(0)
    kx, kp = jax.random.split(key)
    x = jax.random.normal(kx, (N, C_IN, T), jnp.float32)   # PyTorch NCW layout

    params = init_block_params(kp, C_IN, N_FILTERS, KERNEL_SIZES, BOTTLENECK)

    out = inception_block(x, params, KERNEL_SIZES, N_FILTERS)
    out = jax.block_until_ready(out)

    assert out.shape == (N, 4 * N_FILTERS, T), out.shape
    assert bool(jnp.all(jnp.isfinite(out)))
    assert bool(jnp.all(out >= 0.0))   # final ReLU

    # loose tolerance vs an fp32 reference (kernel uses bf16 matmul operands)
    ref = jax.jit(lambda xx: inception_block_ref(xx, params))(x)
    ref = jax.block_until_ready(ref)
    max_err = float(jnp.max(jnp.abs(out - ref)))
    assert max_err < 0.25, f"max abs diff vs fp32 reference too large: {max_err}"

    print("KERNEL_OK")
</pallas_src>

<mosaic_0001>
module attributes {stable_mosaic.version = 11 : i64} {
  func.func @inception_block_kernel(%arg0: memref<2x16x4xbf16, #tpu.memory_space<vmem>>, %arg1: memref<4x64xbf16, #tpu.memory_space<vmem>>, %arg2: memref<1x32xf32, #tpu.memory_space<vmem>>, %arg3: memref<1x32xf32, #tpu.memory_space<vmem>>, %arg4: memref<1x32xf32, #tpu.memory_space<vmem>>, %arg5: memref<6x256x24xbf16, #tpu.memory_space<vmem>>, %arg6: memref<4x8xbf16, #tpu.memory_space<vmem>>, %arg7: memref<1x32xf32, #tpu.memory_space<vmem>>, %arg8: memref<1x32xf32, #tpu.memory_space<vmem>>, %arg9: memref<32x32xbf16, #tpu.memory_space<vmem>>, %arg10: memref<6x256x24xbf16, #tpu.memory_space<vmem>>, %arg11: memref<32x8xbf16, #tpu.memory_space<vmem>>, %arg12: memref<1x32xf32, #tpu.memory_space<vmem>>, %arg13: memref<1x32xf32, #tpu.memory_space<vmem>>, %arg14: memref<32x32xbf16, #tpu.memory_space<vmem>>, %arg15: memref<6x256x24xbf16, #tpu.memory_space<vmem>>, %arg16: memref<32x8xbf16, #tpu.memory_space<vmem>>, %arg17: memref<1x32xf32, #tpu.memory_space<vmem>>, %arg18: memref<1x32xf32, #tpu.memory_space<vmem>>, %arg19: memref<2x32x16xf32, #tpu.memory_space<vmem>>) attributes {dimension_semantics = [], scalar_prefetch = 0 : i64, scratch_operands = 0 : i64, tpu.core_type = #tpu.core_type<tc>} {
    %c0 = arith.constant 0 : index
    %c0_0 = arith.constant 0 : index
    %c0_1 = arith.constant 0 : index
    %0 = vector.load %arg0[%c0, %c0_0, %c0_1] : memref<2x16x4xbf16, #tpu.memory_space<vmem>>, vector<2x16x4xbf16>
    %c0_2 = arith.constant 0 : index
    %c0_3 = arith.constant 0 : index
    %1 = vector.load %arg1[%c0_2, %c0_3] : memref<4x64xbf16, #tpu.memory_space<vmem>>, vector<4x64xbf16>
    %2 = vector.shape_cast %0 : vector<2x16x4xbf16> to vector<32x4xbf16>
    %cst = arith.constant dense<0.000000e+00> : vector<32x64xf32>
    %3 = tpu.matmul %2, %1, %cst {dimension_numbers = #tpu.dot_dimension_numbers<[1], [0], [0], [1], [0, 0, 1, 1], [], []>} : vector<32x4xbf16>, vector<4x64xbf16>, vector<32x64xf32> -> vector<32x64xf32>
    %4 = vector.extract_strided_slice %3 {offsets = [0, 0], sizes = [32, 32], strides = [1, 1]} : vector<32x64xf32> to vector<32x32xf32>
    %5 = vector.extract_strided_slice %3 {offsets = [0, 32], sizes = [32, 32], strides = [1, 1]} : vector<32x64xf32> to vector<32x32xf32>
    %c0_4 = arith.constant 0 : index
    %c0_5 = arith.constant 0 : index
    %6 = vector.load %arg2[%c0_4, %c0_5] : memref<1x32xf32, #tpu.memory_space<vmem>>, vector<1x32xf32>
    %7 = vector.broadcast %6 : vector<1x32xf32> to vector<32x32xf32>
    %8 = arith.addf %5, %7 : vector<32x32xf32>
    %c0_6 = arith.constant 0 : index
    %c0_7 = arith.constant 0 : index
    %9 = vector.load %arg3[%c0_6, %c0_7] : memref<1x32xf32, #tpu.memory_space<vmem>>, vector<1x32xf32>
    %c0_8 = arith.constant 0 : index
    %c0_9 = arith.constant 0 : index
    %10 = vector.load %arg4[%c0_8, %c0_9] : memref<1x32xf32, #tpu.memory_space<vmem>>, vector<1x32xf32>
    %cst_10 = arith.constant dense<0.000000e+00> : vector<32xf32>
    %11 = vector.multi_reduction <add>, %8, %cst_10 [0] : vector<32x32xf32> to vector<32xf32>
    %12 = vector.shape_cast %11 : vector<32xf32> to vector<1x32xf32>
    %13 = arith.mulf %8, %8 : vector<32x32xf32>
    %cst_11 = arith.constant dense<0.000000e+00> : vector<32xf32>
    %14 = vector.multi_reduction <add>, %13, %cst_11 [0] : vector<32x32xf32> to vector<32xf32>
    %15 = vector.shape_cast %14 : vector<32xf32> to vector<1x32xf32>
    %cst_12 = arith.constant 3.125000e-02 : f32
    %16 = vector.broadcast %cst_12 : f32 to vector<1x32xf32>
    %17 = arith.mulf %12, %16 : vector<1x32xf32>
    %cst_13 = arith.constant 3.125000e-02 : f32
    %18 = vector.broadcast %cst_13 : f32 to vector<1x32xf32>
    %19 = arith.mulf %15, %18 : vector<1x32xf32>
    %20 = arith.mulf %17, %17 : vector<1x32xf32>
    %21 = arith.subf %19, %20 : vector<1x32xf32>
    %cst_14 = arith.constant 0.000000e+00 : f32
    %22 = vector.broadcast %cst_14 : f32 to vector<1x32xf32>
    %23 = arith.maximumf %21, %22 : vector<1x32xf32>
    %24 = vector.broadcast %17 : vector<1x32xf32> to vector<32x32xf32>
    %25 = arith.subf %8, %24 : vector<32x32xf32>
    %cst_15 = arith.constant 9.99999974E-6 : f32
    %26 = vector.broadcast %cst_15 : f32 to vector<1x32xf32>
    %27 = arith.addf %23, %26 : vector<1x32xf32>
    %28 = math.rsqrt %27 : vector<1x32xf32>
    %29 = vector.broadcast %28 : vector<1x32xf32> to vector<32x32xf32>
    %30 = arith.mulf %25, %29 : vector<32x32xf32>
    %31 = vector.broadcast %9 : vector<1x32xf32> to vector<32x32xf32>
    %32 = arith.mulf %30, %31 : vector<32x32xf32>
    %33 = vector.broadcast %10 : vector<1x32xf32> to vector<32x32xf32>
    %34 = arith.addf %32, %33 : vector<32x32xf32>
    %c0_16 = arith.constant 0 : index
    %c0_17 = arith.constant 0 : index
    %c0_18 = arith.constant 0 : index
    %35 = vector.load %arg5[%c0_16, %c0_17, %c0_18] : memref<6x256x24xbf16, #tpu.memory_space<vmem>>, vector<6x256x24xbf16>
    %c0_19 = arith.constant 0 : index
    %c0_20 = arith.constant 0 : index
    %36 = vector.load %arg6[%c0_19, %c0_20] : memref<4x8xbf16, #tpu.memory_space<vmem>>, vector<4x8xbf16>
    %c0_21 = arith.constant 0 : index
    %c0_22 = arith.constant 0 : index
    %37 = vector.load %arg7[%c0_21, %c0_22] : memref<1x32xf32, #tpu.memory_space<vmem>>, vector<1x32xf32>
    %c0_23 = arith.constant 0 : index
    %c0_24 = arith.constant 0 : index
    %38 = vector.load %arg8[%c0_23, %c0_24] : memref<1x32xf32, #tpu.memory_space<vmem>>, vector<1x32xf32>
    %39 = arith.truncf %4 : vector<32x32xf32> to vector<32x32xbf16>
    %40 = vector.shape_cast %39 : vector<32x32xbf16> to vector<2x16x32xbf16>
    %cst_25 = arith.constant 0.000000e+00 : bf16
    %41 = vector.broadcast %cst_25 : bf16 to vector<2x20x32xbf16>
    %cst_26 = arith.constant 0.000000e+00 : bf16
    %42 = vector.broadcast %cst_26 : bf16 to vector<2x27x32xbf16>
    %43 = tpu.concatenate %41, %40, %42 in 1 : vector<2x20x32xbf16>, vector<2x16x32xbf16>, vector<2x27x32xbf16> -> vector<2x63x32xbf16>
    %44 = vector.extract_strided_slice %43 {offsets = [0, 0, 0], sizes = [2, 16, 32], strides = [1, 1, 1]} : vector<2x63x32xbf16> to vector<2x16x32xbf16>
    %45 = vector.extract_strided_slice %43 {offsets = [0, 1, 0], sizes = [2, 16, 32], strides = [1, 1, 1]} : vector<2x63x32xbf16> to vector<2x16x32xbf16>
    %46 = vector.extract_strided_slice %43 {offsets = [0, 2, 0], sizes = [2, 16, 32], strides = [1, 1, 1]} : vector<2x63x32xbf16> to vector<2x16x32xbf16>
    %47 = vector.extract_strided_slice %43 {offsets = [0, 3, 0], sizes = [2, 16, 32], strides = [1, 1, 1]} : vector<2x63x32xbf16> to vector<2x16x32xbf16>
    %48 = vector.extract_strided_slice %43 {offsets = [0, 4, 0], sizes = [2, 16, 32], strides = [1, 1, 1]} : vector<2x63x32xbf16> to vector<2x16x32xbf16>
    %49 = vector.extract_strided_slice %43 {offsets = [0, 5, 0], sizes = [2, 16, 32], strides = [1, 1, 1]} : vector<2x63x32xbf16> to vector<2x16x32xbf16>
    %50 = vector.extract_strided_slice %43 {offsets = [0, 6, 0], sizes = [2, 16, 32], strides = [1, 1, 1]} : vector<2x63x32xbf16> to vector<2x16x32xbf16>
    %51 = vector.extract_strided_slice %43 {offsets = [0, 7, 0], sizes = [2, 16, 32], strides = [1, 1, 1]} : vector<2x63x32xbf16> to vector<2x16x32xbf16>
    %52 = tpu.concatenate %44, %45, %46, %47, %48, %49, %50, %51 in 2 : vector<2x16x32xbf16>, vector<2x16x32xbf16>, vector<2x16x32xbf16>, vector<2x16x32xbf16>, vector<2x16x32xbf16>, vector<2x16x32xbf16>, vector<2x16x32xbf16>, vector<2x16x32xbf16> -> vector<2x16x256xbf16>
    %53 = vector.shape_cast %52 : vector<2x16x256xbf16> to vector<32x256xbf16>
    %54 = vector.extract_strided_slice %35 {offsets = [0, 0, 0], sizes = [1, 256, 24], strides = [1, 1, 1]} : vector<6x256x24xbf16> to vector<1x256x24xbf16>
    %55 = vector.shape_cast %54 : vector<1x256x24xbf16> to vector<256x24xbf16>
    %cst_27 = arith.constant dense<0.000000e+00> : vector<32x24xf32>
    %56 = tpu.matmul %53, %55, %cst_27 {dimension_numbers = #tpu.dot_dimension_numbers<[1], [0], [0], [1], [0, 0, 1, 1], [], []>} : vector<32x256xbf16>, vector<256x24xbf16>, vector<32x24xf32> -> vector<32x24xf32>
    %57 = vector.extract_strided_slice %43 {offsets = [0, 8, 0], sizes = [2, 16, 32], strides = [1, 1, 1]} : vector<2x63x32xbf16> to vector<2x16x32xbf16>
    %58 = vector.extract_strided_slice %43 {offsets = [0, 9, 0], sizes = [2, 16, 32], strides = [1, 1, 1]} : vector<2x63x32xbf16> to vector<2x16x32xbf16>
    %59 = vector.extract_strided_slice %43 {offsets = [0, 10, 0], sizes = [2, 16, 32], strides = [1, 1, 1]} : vector<2x63x32xbf16> to vector<2x16x32xbf16>
    %60 = vector.extract_strided_slice %43 {offsets = [0, 11, 0], sizes = [2, 16, 32], strides = [1, 1, 1]} : vector<2x63x32xbf16> to vector<2x16x32xbf16>
    %61 = vector.extract_strided_slice %43 {offsets = [0, 12, 0], sizes = [2, 16, 32], strides = [1, 1, 1]} : vector<2x63x32xbf16> to vector<2x16x32xbf16>
    %62 = vector.extract_strided_slice %43 {offsets = [0, 13, 0], sizes = [2, 16, 32], strides = [1, 1, 1]} : vector<2x63x32xbf16> to vector<2x16x32xbf16>
    %63 = vector.extract_strided_slice %43 {offsets = [0, 14, 0], sizes = [2, 16, 32], strides = [1, 1, 1]} : vector<2x63x32xbf16> to vector<2x16x32xbf16>
    %64 = vector.extract_strided_slice %43 {offsets = [0, 15, 0], sizes = [2, 16, 32], strides = [1, 1, 1]} : vector<2x63x32xbf16> to vector<2x16x32xbf16>
    %65 = tpu.concatenate %57, %58, %59, %60, %61, %62, %63, %64 in 2 : vector<2x16x32xbf16>, vector<2x16x32xbf16>, vector<2x16x32xbf16>, vector<2x16x32xbf16>, vector<2x16x32xbf16>, vector<2x16x32xbf16>, vector<2x16x32xbf16>, vector<2x16x32xbf16> -> vector<2x16x256xbf16>
    %66 = vector.shape_cast %65 : vector<2x16x256xbf16> to vector<32x256xbf16>
    %67 = vector.extract_strided_slice %35 {offsets = [1, 0, 0], sizes = [1, 256, 24], strides = [1, 1, 1]} : vector<6x256x24xbf16> to vector<1x256x24xbf16>
    %68 = vector.shape_cast %67 : vector<1x256x24xbf16> to vector<256x24xbf16>
    %cst_28 = arith.constant dense<0.000000e+00> : vector<32x24xf32>
    %69 = tpu.matmul %66, %68, %cst_28 {dimension_numbers = #tpu.dot_dimension_numbers<[1], [0], [0], [1], [0, 0, 1, 1], [], []>} : vector<32x256xbf16>, vector<256x24xbf16>, vector<32x24xf32> -> vector<32x24xf32>
    %70 = arith.addf %56, %69 : vector<32x24xf32>
    %71 = vector.extract_strided_slice %43 {offsets = [0, 16, 0], sizes = [2, 16, 32], strides = [1, 1, 1]} : vector<2x63x32xbf16> to vector<2x16x32xbf16>
    %72 = vector.extract_strided_slice %43 {offsets = [0, 17, 0], sizes = [2, 16, 32], strides = [1, 1, 1]} : vector<2x63x32xbf16> to vector<2x16x32xbf16>
    %73 = vector.extract_strided_slice %43 {offsets = [0, 18, 0], sizes = [2, 16, 32], strides = [1, 1, 1]} : vector<2x63x32xbf16> to vector<2x16x32xbf16>
    %74 = vector.extract_strided_slice %43 {offsets = [0, 19, 0], sizes = [2, 16, 32], strides = [1, 1, 1]} : vector<2x63x32xbf16> to vector<2x16x32xbf16>
    %75 = vector.extract_strided_slice %43 {offsets = [0, 20, 0], sizes = [2, 16, 32], strides = [1, 1, 1]} : vector<2x63x32xbf16> to vector<2x16x32xbf16>
    %76 = vector.extract_strided_slice %43 {offsets = [0, 21, 0], sizes = [2, 16, 32], strides = [1, 1, 1]} : vector<2x63x32xbf16> to vector<2x16x32xbf16>
    %77 = vector.extract_strided_slice %43 {offsets = [0, 22, 0], sizes = [2, 16, 32], strides = [1, 1, 1]} : vector<2x63x32xbf16> to vector<2x16x32xbf16>
    %78 = vector.extract_strided_slice %43 {offsets = [0, 23, 0], sizes = [2, 16, 32], strides = [1, 1, 1]} : vector<2x63x32xbf16> to vector<2x16x32xbf16>
    %79 = tpu.concatenate %71, %72, %73, %74, %75, %76, %77, %78 in 2 : vector<2x16x32xbf16>, vector<2x16x32xbf16>, vector<2x16x32xbf16>, vector<2x16x32xbf16>, vector<2x16x32xbf16>, vector<2x16x32xbf16>, vector<2x16x32xbf16>, vector<2x16x32xbf16> -> vector<2x16x256xbf16>
    %80 = vector.shape_cast %79 : vector<2x16x256xbf16> to vector<32x256xbf16>
    %81 = vector.extract_strided_slice %35 {offsets = [2, 0, 0], sizes = [1, 256, 24], strides = [1, 1, 1]} : vector<6x256x24xbf16> to vector<1x256x24xbf16>
    %82 = vector.shape_cast %81 : vector<1x256x24xbf16> to vector<256x24xbf16>
    %cst_29 = arith.constant dense<0.000000e+00> : vector<32x24xf32>
    %83 = tpu.matmul %80, %82, %cst_29 {dimension_numbers = #tpu.dot_dimension_numbers<[1], [0], [0], [1], [0, 0, 1, 1], [], []>} : vector<32x256xbf16>, vector<256x24xbf16>, vector<32x24xf32> -> vector<32x24xf32>
    %84 = arith.addf %70, %83 : vector<32x24xf32>
    %85 = vector.extract_strided_slice %43 {offsets = [0, 24, 0], sizes = [2, 16, 32], strides = [1, 1, 1]} : vector<2x63x32xbf16> to vector<2x16x32xbf16>
    %86 = vector.extract_strided_slice %43 {offsets = [0, 25, 0], sizes = [2, 16, 32], strides = [1, 1, 1]} : vector<2x63x32xbf16> to vector<2x16x32xbf16>
    %87 = vector.extract_strided_slice %43 {offsets = [0, 26, 0], sizes = [2, 16, 32], strides = [1, 1, 1]} : vector<2x63x32xbf16> to vector<2x16x32xbf16>
    %88 = vector.extract_strided_slice %43 {offsets = [0, 27, 0], sizes = [2, 16, 32], strides = [1, 1, 1]} : vector<2x63x32xbf16> to vector<2x16x32xbf16>
    %89 = vector.extract_strided_slice %43 {offsets = [0, 28, 0], sizes = [2, 16, 32], strides = [1, 1, 1]} : vector<2x63x32xbf16> to vector<2x16x32xbf16>
    %90 = vector.extract_strided_slice %43 {offsets = [0, 29, 0], sizes = [2, 16, 32], strides = [1, 1, 1]} : vector<2x63x32xbf16> to vector<2x16x32xbf16>
    %91 = vector.extract_strided_slice %43 {offsets = [0, 30, 0], sizes = [2, 16, 32], strides = [1, 1, 1]} : vector<2x63x32xbf16> to vector<2x16x32xbf16>
    %92 = vector.extract_strided_slice %43 {offsets = [0, 31, 0], sizes = [2, 16, 32], strides = [1, 1, 1]} : vector<2x63x32xbf16> to vector<2x16x32xbf16>
    %93 = tpu.concatenate %85, %86, %87, %88, %89, %90, %91, %92 in 2 : vector<2x16x32xbf16>, vector<2x16x32xbf16>, vector<2x16x32xbf16>, vector<2x16x32xbf16>, vector<2x16x32xbf16>, vector<2x16x32xbf16>, vector<2x16x32xbf16>, vector<2x16x32xbf16> -> vector<2x16x256xbf16>
    %94 = vector.shape_cast %93 : vector<2x16x256xbf16> to vector<32x256xbf16>
    %95 = vector.extract_strided_slice %35 {offsets = [3, 0, 0], sizes = [1, 256, 24], strides = [1, 1, 1]} : vector<6x256x24xbf16> to vector<1x256x24xbf16>
    %96 = vector.shape_cast %95 : vector<1x256x24xbf16> to vector<256x24xbf16>
    %cst_30 = arith.constant dense<0.000000e+00> : vector<32x24xf32>
    %97 = tpu.matmul %94, %96, %cst_30 {dimension_numbers = #tpu.dot_dimension_numbers<[1], [0], [0], [1], [0, 0, 1, 1], [], []>} : vector<32x256xbf16>, vector<256x24xbf16>, vector<32x24xf32> -> vector<32x24xf32>
    %98 = arith.addf %84, %97 : vector<32x24xf32>
    %99 = vector.extract_strided_slice %43 {offsets = [0, 32, 0], sizes = [2, 16, 32], strides = [1, 1, 1]} : vector<2x63x32xbf16> to vector<2x16x32xbf16>
    %100 = vector.extract_strided_slice %43 {offsets = [0, 33, 0], sizes = [2, 16, 32], strides = [1, 1, 1]} : vector<2x63x32xbf16> to vector<2x16x32xbf16>
    %101 = vector.extract_strided_slice %43 {offsets = [0, 34, 0], sizes = [2, 16, 32], strides = [1, 1, 1]} : vector<2x63x32xbf16> to vector<2x16x32xbf16>
    %102 = vector.extract_strided_slice %43 {offsets = [0, 35, 0], sizes = [2, 16, 32], strides = [1, 1, 1]} : vector<2x63x32xbf16> to vector<2x16x32xbf16>
    %103 = vector.extract_strided_slice %43 {offsets = [0, 36, 0], sizes = [2, 16, 32], strides = [1, 1, 1]} : vector<2x63x32xbf16> to vector<2x16x32xbf16>
    %104 = vector.extract_strided_slice %43 {offsets = [0, 37, 0], sizes = [2, 16, 32], strides = [1, 1, 1]} : vector<2x63x32xbf16> to vector<2x16x32xbf16>
    %105 = vector.extract_strided_slice %43 {offsets = [0, 38, 0], sizes = [2, 16, 32], strides = [1, 1, 1]} : vector<2x63x32xbf16> to vector<2x16x32xbf16>
    %106 = vector.extract_strided_slice %43 {offsets = [0, 39, 0], sizes = [2, 16, 32], strides = [1, 1, 1]} : vector<2x63x32xbf16> to vector<2x16x32xbf16>
    %107 = tpu.concatenate %99, %100, %101, %102, %103, %104, %105, %106 in 2 : vector<2x16x32xbf16>, vector<2x16x32xbf16>, vector<2x16x32xbf16>, vector<2x16x32xbf16>, vector<2x16x32xbf16>, vector<2x16x32xbf16>, vector<2x16x32xbf16>, vector<2x16x32xbf16> -> vector<2x16x256xbf16>
    %108 = vector.shape_cast %107 : vector<2x16x256xbf16> to vector<32x256xbf16>
    %109 = vector.extract_strided_slice %35 {offsets = [4, 0, 0], sizes = [1, 256, 24], strides = [1, 1, 1]} : vector<6x256x24xbf16> to vector<1x256x24xbf16>
    %110 = vector.shape_cast %109 : vector<1x256x24xbf16> to vector<256x24xbf16>
    %cst_31 = arith.constant dense<0.000000e+00> : vector<32x24xf32>
    %111 = tpu.matmul %108, %110, %cst_31 {dimension_numbers = #tpu.dot_dimension_numbers<[1], [0], [0], [1], [0, 0, 1, 1], [], []>} : vector<32x256xbf16>, vector<256x24xbf16>, vector<32x24xf32> -> vector<32x24xf32>
    %112 = arith.addf %98, %111 : vector<32x24xf32>
    %113 = vector.extract_strided_slice %43 {offsets = [0, 40, 0], sizes = [2, 16, 32], strides = [1, 1, 1]} : vector<2x63x32xbf16> to vector<2x16x32xbf16>
    %114 = vector.extract_strided_slice %43 {offsets = [0, 41, 0], sizes = [2, 16, 32], strides = [1, 1, 1]} : vector<2x63x32xbf16> to vector<2x16x32xbf16>
    %115 = vector.extract_strided_slice %43 {offsets = [0, 42, 0], sizes = [2, 16, 32], strides = [1, 1, 1]} : vector<2x63x32xbf16> to vector<2x16x32xbf16>
    %116 = vector.extract_strided_slice %43 {offsets = [0, 43, 0], sizes = [2, 16, 32], strides = [1, 1, 1]} : vector<2x63x32xbf16> to vector<2x16x32xbf16>
    %117 = vector.extract_strided_slice %43 {offsets = [0, 44, 0], sizes = [2, 16, 32], strides = [1, 1, 1]} : vector<2x63x32xbf16> to vector<2x16x32xbf16>
    %118 = vector.extract_strided_slice %43 {offsets = [0, 45, 0], sizes = [2, 16, 32], strides = [1, 1, 1]} : vector<2x63x32xbf16> to vector<2x16x32xbf16>
    %119 = vector.extract_strided_slice %43 {offsets = [0, 46, 0], sizes = [2, 16, 32], strides = [1, 1, 1]} : vector<2x63x32xbf16> to vector<2x16x32xbf16>
    %120 = vector.extract_strided_slice %43 {offsets = [0, 47, 0], sizes = [2, 16, 32], strides = [1, 1, 1]} : vector<2x63x32xbf16> to vector<2x16x32xbf16>
    %121 = tpu.concatenate %113, %114, %115, %116, %117, %118, %119, %120 in 2 : vector<2x16x32xbf16>, vector<2x16x32xbf16>, vector<2x16x32xbf16>, vector<2x16x32xbf16>, vector<2x16x32xbf16>, vector<2x16x32xbf16>, vector<2x16x32xbf16>, vector<2x16x32xbf16> -> vector<2x16x256xbf16>
    %122 = vector.shape_cast %121 : vector<2x16x256xbf16> to vector<32x256xbf16>
    %123 = vector.extract_strided_slice %35 {offsets = [5, 0, 0], sizes = [1, 256, 24], strides = [1, 1, 1]} : vector<6x256x24xbf16> to vector<1x256x24xbf16>
    %124 = vector.shape_cast %123 : vector<1x256x24xbf16> to vector<256x24xbf16>
    %cst_32 = arith.constant dense<0.000000e+00> : vector<32x24xf32>
    %125 = tpu.matmul %122, %124, %cst_32 {dimension_numbers = #tpu.dot_dimension_numbers<[1], [0], [0], [1], [0, 0, 1, 1], [], []>} : vector<32x256xbf16>, vector<256x24xbf16>, vector<32x24xf32> -> vector<32x24xf32>
    %126 = arith.addf %112, %125 : vector<32x24xf32>
    %cst_33 = arith.constant 0xFF80 : bf16
    %127 = vector.broadcast %cst_33 : bf16 to vector<2x1x4xbf16>
    %128 = tpu.concatenate %127, %0, %127 in 1 : vector<2x1x4xbf16>, vector<2x16x4xbf16>, vector<2x1x4xbf16> -> vector<2x18x4xbf16>
    %129 = vector.extract_strided_slice %128 {offsets = [0, 0, 0], sizes = [2, 16, 4], strides = [1, 1, 1]} : vector<2x18x4xbf16> to vector<2x16x4xbf16>
    %130 = vector.extract_strided_slice %128 {offsets = [0, 1, 0], sizes = [2, 16, 4], strides = [1, 1, 1]} : vector<2x18x4xbf16> to vector<2x16x4xbf16>
    %131 = arith.maximumf %129, %130 : vector<2x16x4xbf16>
    %132 = vector.extract_strided_slice %128 {offsets = [0, 2, 0], sizes = [2, 16, 4], strides = [1, 1, 1]} : vector<2x18x4xbf16> to vector<2x16x4xbf16>
    %133 = arith.maximumf %131, %132 : vector<2x16x4xbf16>
    %134 = vector.shape_cast %133 : vector<2x16x4xbf16> to vector<32x4xbf16>
    %cst_34 = arith.constant dense<0.000000e+00> : vector<32x8xf32>
    %135 = tpu.matmul %134, %36, %cst_34 {dimension_numbers = #tpu.dot_dimension_numbers<[1], [0], [0], [1], [0, 0, 1, 1], [], []>} : vector<32x4xbf16>, vector<4x8xbf16>, vector<32x8xf32> -> vector<32x8xf32>
    %136 = tpu.concatenate %126, %135 in 1 : vector<32x24xf32>, vector<32x8xf32> -> vector<32x32xf32>
    %cst_35 = arith.constant dense<0.000000e+00> : vector<32xf32>
    %137 = vector.multi_reduction <add>, %136, %cst_35 [0] : vector<32x32xf32> to vector<32xf32>
    %138 = vector.shape_cast %137 : vector<32xf32> to vector<1x32xf32>
    %139 = arith.mulf %136, %136 : vector<32x32xf32>
    %cst_36 = arith.constant dense<0.000000e+00> : vector<32xf32>
    %140 = vector.multi_reduction <add>, %139, %cst_36 [0] : vector<32x32xf32> to vector<32xf32>
    %141 = vector.shape_cast %140 : vector<32xf32> to vector<1x32xf32>
    %cst_37 = arith.constant 3.125000e-02 : f32
    %142 = vector.broadcast %cst_37 : f32 to vector<1x32xf32>
    %143 = arith.mulf %138, %142 : vector<1x32xf32>
    %cst_38 = arith.constant 3.125000e-02 : f32
    %144 = vector.broadcast %cst_38 : f32 to vector<1x32xf32>
    %145 = arith.mulf %141, %144 : vector<1x32xf32>
    %146 = arith.mulf %143, %143 : vector<1x32xf32>
    %147 = arith.subf %145, %146 : vector<1x32xf32>
    %cst_39 = arith.constant 0.000000e+00 : f32
    %148 = vector.broadcast %cst_39 : f32 to vector<1x32xf32>
    %149 = arith.maximumf %147, %148 : vector<1x32xf32>
    %150 = vector.broadcast %143 : vector<1x32xf32> to vector<32x32xf32>
    %151 = arith.subf %136, %150 : vector<32x32xf32>
    %cst_40 = arith.constant 9.99999974E-6 : f32
    %152 = vector.broadcast %cst_40 : f32 to vector<1x32xf32>
    %153 = arith.addf %149, %152 : vector<1x32xf32>
    %154 = math.rsqrt %153 : vector<1x32xf32>
    %155 = vector.broadcast %154 : vector<1x32xf32> to vector<32x32xf32>
    %156 = arith.mulf %151, %155 : vector<32x32xf32>
    %157 = vector.broadcast %37 : vector<1x32xf32> to vector<32x32xf32>
    %158 = arith.mulf %156, %157 : vector<32x32xf32>
    %159 = vector.broadcast %38 : vector<1x32xf32> to vector<32x32xf32>
    %160 = arith.addf %158, %159 : vector<32x32xf32>
    %cst_41 = arith.constant 0.000000e+00 : f32
    %161 = vector.broadcast %cst_41 : f32 to vector<32x32xf32>
    %162 = arith.maximumf %160, %161 : vector<32x32xf32>
    %163 = arith.truncf %162 : vector<32x32xf32> to vector<32x32xbf16>
    %164 = vector.shape_cast %163 : vector<32x32xbf16> to vector<2x16x32xbf16>
    %165 = vector.shape_cast %164 : vector<2x16x32xbf16> to vector<32x32xbf16>
    %c0_42 = arith.constant 0 : index
    %c0_43 = arith.constant 0 : index
    %166 = vector.load %arg9[%c0_42, %c0_43] : memref<32x32xbf16, #tpu.memory_space<vmem>>, vector<32x32xbf16>
    %cst_44 = arith.constant dense<0.000000e+00> : vector<32x32xf32>
    %167 = tpu.matmul %165, %166, %cst_44 {dimension_numbers = #tpu.dot_dimension_numbers<[1], [0], [0], [1], [0, 0, 1, 1], [], []>} : vector<32x32xbf16>, vector<32x32xbf16>, vector<32x32xf32> -> vector<32x32xf32>
    %c0_45 = arith.constant 0 : index
    %c0_46 = arith.constant 0 : index
    %c0_47 = arith.constant 0 : index
    %168 = vector.load %arg10[%c0_45, %c0_46, %c0_47] : memref<6x256x24xbf16, #tpu.memory_space<vmem>>, vector<6x256x24xbf16>
    %c0_48 = arith.constant 0 : index
    %c0_49 = arith.constant 0 : index
    %169 = vector.load %arg11[%c0_48, %c0_49] : memref<32x8xbf16, #tpu.memory_space<vmem>>, vector<32x8xbf16>
    %c0_50 = arith.constant 0 : index
    %c0_51 = arith.constant 0 : index
    %170 = vector.load %arg12[%c0_50, %c0_51] : memref<1x32xf32, #tpu.memory_space<vmem>>, vector<1x32xf32>
    %c0_52 = arith.constant 0 : index
    %c0_53 = arith.constant 0 : index
    %171 = vector.load %arg13[%c0_52, %c0_53] : memref<1x32xf32, #tpu.memory_space<vmem>>, vector<1x32xf32>
    %172 = arith.truncf %167 : vector<32x32xf32> to vector<32x32xbf16>
    %173 = vector.shape_cast %172 : vector<32x32xbf16> to vector<2x16x32xbf16>
    %cst_54 = arith.constant 0.000000e+00 : bf16
    %174 = vector.broadcast %cst_54 : bf16 to vector<2x20x32xbf16>
    %cst_55 = arith.constant 0.000000e+00 : bf16
    %175 = vector.broadcast %cst_55 : bf16 to vector<2x27x32xbf16>
    %176 = tpu.concatenate %174, %173, %175 in 1 : vector<2x20x32xbf16>, vector<2x16x32xbf16>, vector<2x27x32xbf16> -> vector<2x63x32xbf16>
    %177 = vector.extract_strided_slice %176 {offsets = [0, 0, 0], sizes = [2, 16, 32], strides = [1, 1, 1]} : vector<2x63x32xbf16> to vector<2x16x32xbf16>
    %178 = vector.extract_strided_slice %176 {offsets = [0, 1, 0], sizes = [2, 16, 32], strides = [1, 1, 1]} : vector<2x63x32xbf16> to vector<2x16x32xbf16>
    %179 = vector.extract_strided_slice %176 {offsets = [0, 2, 0], sizes = [2, 16, 32], strides = [1, 1, 1]} : vector<2x63x32xbf16> to vector<2x16x32xbf16>
    %180 = vector.extract_strided_slice %176 {offsets = [0, 3, 0], sizes = [2, 16, 32], strides = [1, 1, 1]} : vector<2x63x32xbf16> to vector<2x16x32xbf16>
    %181 = vector.extract_strided_slice %176 {offsets = [0, 4, 0], sizes = [2, 16, 32], strides = [1, 1, 1]} : vector<2x63x32xbf16> to vector<2x16x32xbf16>
    %182 = vector.extract_strided_slice %176 {offsets = [0, 5, 0], sizes = [2, 16, 32], strides = [1, 1, 1]} : vector<2x63x32xbf16> to vector<2x16x32xbf16>
    %183 = vector.extract_strided_slice %176 {offsets = [0, 6, 0], sizes = [2, 16, 32], strides = [1, 1, 1]} : vector<2x63x32xbf16> to vector<2x16x32xbf16>
    %184 = vector.extract_strided_slice %176 {offsets = [0, 7, 0], sizes = [2, 16, 32], strides = [1, 1, 1]} : vector<2x63x32xbf16> to vector<2x16x32xbf16>
    %185 = tpu.concatenate %177, %178, %179, %180, %181, %182, %183, %184 in 2 : vector<2x16x32xbf16>, vector<2x16x32xbf16>, vector<2x16x32xbf16>, vector<2x16x32xbf16>, vector<2x16x32xbf16>, vector<2x16x32xbf16>, vector<2x16x32xbf16>, vector<2x16x32xbf16> -> vector<2x16x256xbf16>
    %186 = vector.shape_cast %185 : vector<2x16x256xbf16> to vector<32x256xbf16>
    %187 = vector.extract_strided_slice %168 {offsets = [0, 0, 0], sizes = [1, 256, 24], strides = [1, 1, 1]} : vector<6x256x24xbf16> to vector<1x256x24xbf16>
    %188 = vector.shape_cast %187 : vector<1x256x24xbf16> to vector<256x24xbf16>
    %cst_56 = arith.constant dense<0.000000e+00> : vector<32x24xf32>
    %189 = tpu.matmul %186, %188, %cst_56 {dimension_numbers = #tpu.dot_dimension_numbers<[1], [0], [0], [1], [0, 0, 1, 1], [], []>} : vector<32x256xbf16>, vector<256x24xbf16>, vector<32x24xf32> -> vector<32x24xf32>
    %190 = vector.extract_strided_slice %176 {offsets = [0, 8, 0], sizes = [2, 16, 32], strides = [1, 1, 1]} : vector<2x63x32xbf16> to vector<2x16x32xbf16>
    %191 = vector.extract_strided_slice %176 {offsets = [0, 9, 0], sizes = [2, 16, 32], strides = [1, 1, 1]} : vector<2x63x32xbf16> to vector<2x16x32xbf16>
    %192 = vector.extract_strided_slice %176 {offsets = [0, 10, 0], sizes = [2, 16, 32], strides = [1, 1, 1]} : vector<2x63x32xbf16> to vector<2x16x32xbf16>
    %193 = vector.extract_strided_slice %176 {offsets = [0, 11, 0], sizes = [2, 16, 32], strides = [1, 1, 1]} : vector<2x63x32xbf16> to vector<2x16x32xbf16>
    %194 = vector.extract_strided_slice %176 {offsets = [0, 12, 0], sizes = [2, 16, 32], strides = [1, 1, 1]} : vector<2x63x32xbf16> to vector<2x16x32xbf16>
    %195 = vector.extract_strided_slice %176 {offsets = [0, 13, 0], sizes = [2, 16, 32], strides = [1, 1, 1]} : vector<2x63x32xbf16> to vector<2x16x32xbf16>
    %196 = vector.extract_strided_slice %176 {offsets = [0, 14, 0], sizes = [2, 16, 32], strides = [1, 1, 1]} : vector<2x63x32xbf16> to vector<2x16x32xbf16>
    %197 = vector.extract_strided_slice %176 {offsets = [0, 15, 0], sizes = [2, 16, 32], strides = [1, 1, 1]} : vector<2x63x32xbf16> to vector<2x16x32xbf16>
    %198 = tpu.concatenate %190, %191, %192, %193, %194, %195, %196, %197 in 2 : vector<2x16x32xbf16>, vector<2x16x32xbf16>, vector<2x16x32xbf16>, vector<2x16x32xbf16>, vector<2x16x32xbf16>, vector<2x16x32xbf16>, vector<2x16x32xbf16>, vector<2x16x32xbf16> -> vector<2x16x256xbf16>
    %199 = vector.shape_cast %198 : vector<2x16x256xbf16> to vector<32x256xbf16>
    %200 = vector.extract_strided_slice %168 {offsets = [1, 0, 0], sizes = [1, 256, 24], strides = [1, 1, 1]} : vector<6x256x24xbf16> to vector<1x256x24xbf16>
    %201 = vector.shape_cast %200 : vector<1x256x24xbf16> to vector<256x24xbf16>
    %cst_57 = arith.constant dense<0.000000e+00> : vector<32x24xf32>
    %202 = tpu.matmul %199, %201, %cst_57 {dimension_numbers = #tpu.dot_dimension_numbers<[1], [0], [0], [1], [0, 0, 1, 1], [], []>} : vector<32x256xbf16>, vector<256x24xbf16>, vector<32x24xf32> -> vector<32x24xf32>
    %203 = arith.addf %189, %202 : vector<32x24xf32>
    %204 = vector.extract_strided_slice %176 {offsets = [0, 16, 0], sizes = [2, 16, 32], strides = [1, 1, 1]} : vector<2x63x32xbf16> to vector<2x16x32xbf16>
    %205 = vector.extract_strided_slice %176 {offsets = [0, 17, 0], sizes = [2, 16, 32], strides = [1, 1, 1]} : vector<2x63x32xbf16> to vector<2x16x32xbf16>
    %206 = vector.extract_strided_slice %176 {offsets = [0, 18, 0], sizes = [2, 16, 32], strides = [1, 1, 1]} : vector<2x63x32xbf16> to vector<2x16x32xbf16>
    %207 = vector.extract_strided_slice %176 {offsets = [0, 19, 0], sizes = [2, 16, 32], strides = [1, 1, 1]} : vector<2x63x32xbf16> to vector<2x16x32xbf16>
    %208 = vector.extract_strided_slice %176 {offsets = [0, 20, 0], sizes = [2, 16, 32], strides = [1, 1, 1]} : vector<2x63x32xbf16> to vector<2x16x32xbf16>
    %209 = vector.extract_strided_slice %176 {offsets = [0, 21, 0], sizes = [2, 16, 32], strides = [1, 1, 1]} : vector<2x63x32xbf16> to vector<2x16x32xbf16>
    %210 = vector.extract_strided_slice %176 {offsets = [0, 22, 0], sizes = [2, 16, 32], strides = [1, 1, 1]} : vector<2x63x32xbf16> to vector<2x16x32xbf16>
    %211 = vector.extract_strided_slice %176 {offsets = [0, 23, 0], sizes = [2, 16, 32], strides = [1, 1, 1]} : vector<2x63x32xbf16> to vector<2x16x32xbf16>
    %212 = tpu.concatenate %204, %205, %206, %207, %208, %209, %210, %211 in 2 : vector<2x16x32xbf16>, vector<2x16x32xbf16>, vector<2x16x32xbf16>, vector<2x16x32xbf16>, vector<2x16x32xbf16>, vector<2x16x32xbf16>, vector<2x16x32xbf16>, vector<2x16x32xbf16> -> vector<2x16x256xbf16>
    %213 = vector.shape_cast %212 : vector<2x16x256xbf16> to vector<32x256xbf16>
    %214 = vector.extract_strided_slice %168 {offsets = [2, 0, 0], sizes = [1, 256, 24], strides = [1, 1, 1]} : vector<6x256x24xbf16> to vector<1x256x24xbf16>
    %215 = vector.shape_cast %214 : vector<1x256x24xbf16> to vector<256x24xbf16>
    %cst_58 = arith.constant dense<0.000000e+00> : vector<32x24xf32>
    %216 = tpu.matmul %213, %215, %cst_58 {dimension_numbers = #tpu.dot_dimension_numbers<[1], [0], [0], [1], [0, 0, 1, 1], [], []>} : vector<32x256xbf16>, vector<256x24xbf16>, vector<32x24xf32> -> vector<32x24xf32>
    %217 = arith.addf %203, %216 : vector<32x24xf32>
    %218 = vector.extract_strided_slice %176 {offsets = [0, 24, 0], sizes = [2, 16, 32], strides = [1, 1, 1]} : vector<2x63x32xbf16> to vector<2x16x32xbf16>
    %219 = vector.extract_strided_slice %176 {offsets = [0, 25, 0], sizes = [2, 16, 32], strides = [1, 1, 1]} : vector<2x63x32xbf16> to vector<2x16x32xbf16>
    %220 = vector.extract_strided_slice %176 {offsets = [0, 26, 0], sizes = [2, 16, 32], strides = [1, 1, 1]} : vector<2x63x32xbf16> to vector<2x16x32xbf16>
    %221 = vector.extract_strided_slice %176 {offsets = [0, 27, 0], sizes = [2, 16, 32], strides = [1, 1, 1]} : vector<2x63x32xbf16> to vector<2x16x32xbf16>
    %222 = vector.extract_strided_slice %176 {offsets = [0, 28, 0], sizes = [2, 16, 32], strides = [1, 1, 1]} : vector<2x63x32xbf16> to vector<2x16x32xbf16>
    %223 = vector.extract_strided_slice %176 {offsets = [0, 29, 0], sizes = [2, 16, 32], strides = [1, 1, 1]} : vector<2x63x32xbf16> to vector<2x16x32xbf16>
    %224 = vector.extract_strided_slice %176 {offsets = [0, 30, 0], sizes = [2, 16, 32], strides = [1, 1, 1]} : vector<2x63x32xbf16> to vector<2x16x32xbf16>
    %225 = vector.extract_strided_slice %176 {offsets = [0, 31, 0], sizes = [2, 16, 32], strides = [1, 1, 1]} : vector<2x63x32xbf16> to vector<2x16x32xbf16>
    %226 = tpu.concatenate %218, %219, %220, %221, %222, %223, %224, %225 in 2 : vector<2x16x32xbf16>, vector<2x16x32xbf16>, vector<2x16x32xbf16>, vector<2x16x32xbf16>, vector<2x16x32xbf16>, vector<2x16x32xbf16>, vector<2x16x32xbf16>, vector<2x16x32xbf16> -> vector<2x16x256xbf16>
    %227 = vector.shape_cast %226 : vector<2x16x256xbf16> to vector<32x256xbf16>
    %228 = vector.extract_strided_slice %168 {offsets = [3, 0, 0], sizes = [1, 256, 24], strides = [1, 1, 1]} : vector<6x256x24xbf16> to vector<1x256x24xbf16>
    %229 = vector.shape_cast %228 : vector<1x256x24xbf16> to vector<256x24xbf16>
    %cst_59 = arith.constant dense<0.000000e+00> : vector<32x24xf32>
    %230 = tpu.matmul %227, %229, %cst_59 {dimension_numbers = #tpu.dot_dimension_numbers<[1], [0], [0], [1], [0, 0, 1, 1], [], []>} : vector<32x256xbf16>, vector<256x24xbf16>, vector<32x24xf32> -> vector<32x24xf32>
    %231 = arith.addf %217, %230 : vector<32x24xf32>
    %232 = vector.extract_strided_slice %176 {offsets = [0, 32, 0], sizes = [2, 16, 32], strides = [1, 1, 1]} : vector<2x63x32xbf16> to vector<2x16x32xbf16>
    %233 = vector.extract_strided_slice %176 {offsets = [0, 33, 0], sizes = [2, 16, 32], strides = [1, 1, 1]} : vector<2x63x32xbf16> to vector<2x16x32xbf16>
    %234 = vector.extract_strided_slice %176 {offsets = [0, 34, 0], sizes = [2, 16, 32], strides = [1, 1, 1]} : vector<2x63x32xbf16> to vector<2x16x32xbf16>
    %235 = vector.extract_strided_slice %176 {offsets = [0, 35, 0], sizes = [2, 16, 32], strides = [1, 1, 1]} : vector<2x63x32xbf16> to vector<2x16x32xbf16>
    %236 = vector.extract_strided_slice %176 {offsets = [0, 36, 0], sizes = [2, 16, 32], strides = [1, 1, 1]} : vector<2x63x32xbf16> to vector<2x16x32xbf16>
    %237 = vector.extract_strided_slice %176 {offsets = [0, 37, 0], sizes = [2, 16, 32], strides = [1, 1, 1]} : vector<2x63x32xbf16> to vector<2x16x32xbf16>
    %238 = vector.extract_strided_slice %176 {offsets = [0, 38, 0], sizes = [2, 16, 32], strides = [1, 1, 1]} : vector<2x63x32xbf16> to vector<2x16x32xbf16>
    %239 = vector.extract_strided_slice %176 {offsets = [0, 39, 0], sizes = [2, 16, 32], strides = [1, 1, 1]} : vector<2x63x32xbf16> to vector<2x16x32xbf16>
    %240 = tpu.concatenate %232, %233, %234, %235, %236, %237, %238, %239 in 2 : vector<2x16x32xbf16>, vector<2x16x32xbf16>, vector<2x16x32xbf16>, vector<2x16x32xbf16>, vector<2x16x32xbf16>, vector<2x16x32xbf16>, vector<2x16x32xbf16>, vector<2x16x32xbf16> -> vector<2x16x256xbf16>
    %241 = vector.shape_cast %240 : vector<2x16x256xbf16> to vector<32x256xbf16>
    %242 = vector.extract_strided_slice %168 {offsets = [4, 0, 0], sizes = [1, 256, 24], strides = [1, 1, 1]} : vector<6x256x24xbf16> to vector<1x256x24xbf16>
    %243 = vector.shape_cast %242 : vector<1x256x24xbf16> to vector<256x24xbf16>
    %cst_60 = arith.constant dense<0.000000e+00> : vector<32x24xf32>
    %244 = tpu.matmul %241, %243, %cst_60 {dimension_numbers = #tpu.dot_dimension_numbers<[1], [0], [0], [1], [0, 0, 1, 1], [], []>} : vector<32x256xbf16>, vector<256x24xbf16>, vector<32x24xf32> -> vector<32x24xf32>
    %245 = arith.addf %231, %244 : vector<32x24xf32>
    %246 = vector.extract_strided_slice %176 {offsets = [0, 40, 0], sizes = [2, 16, 32], strides = [1, 1, 1]} : vector<2x63x32xbf16> to vector<2x16x32xbf16>
    %247 = vector.extract_strided_slice %176 {offsets = [0, 41, 0], sizes = [2, 16, 32], strides = [1, 1, 1]} : vector<2x63x32xbf16> to vector<2x16x32xbf16>
    %248 = vector.extract_strided_slice %176 {offsets = [0, 42, 0], sizes = [2, 16, 32], strides = [1, 1, 1]} : vector<2x63x32xbf16> to vector<2x16x32xbf16>
    %249 = vector.extract_strided_slice %176 {offsets = [0, 43, 0], sizes = [2, 16, 32], strides = [1, 1, 1]} : vector<2x63x32xbf16> to vector<2x16x32xbf16>
    %250 = vector.extract_strided_slice %176 {offsets = [0, 44, 0], sizes = [2, 16, 32], strides = [1, 1, 1]} : vector<2x63x32xbf16> to vector<2x16x32xbf16>
    %251 = vector.extract_strided_slice %176 {offsets = [0, 45, 0], sizes = [2, 16, 32], strides = [1, 1, 1]} : vector<2x63x32xbf16> to vector<2x16x32xbf16>
    %252 = vector.extract_strided_slice %176 {offsets = [0, 46, 0], sizes = [2, 16, 32], strides = [1, 1, 1]} : vector<2x63x32xbf16> to vector<2x16x32xbf16>
    %253 = vector.extract_strided_slice %176 {offsets = [0, 47, 0], sizes = [2, 16, 32], strides = [1, 1, 1]} : vector<2x63x32xbf16> to vector<2x16x32xbf16>
    %254 = tpu.concatenate %246, %247, %248, %249, %250, %251, %252, %253 in 2 : vector<2x16x32xbf16>, vector<2x16x32xbf16>, vector<2x16x32xbf16>, vector<2x16x32xbf16>, vector<2x16x32xbf16>, vector<2x16x32xbf16>, vector<2x16x32xbf16>, vector<2x16x32xbf16> -> vector<2x16x256xbf16>
    %255 = vector.shape_cast %254 : vector<2x16x256xbf16> to vector<32x256xbf16>
    %256 = vector.extract_strided_slice %168 {offsets = [5, 0, 0], sizes = [1, 256, 24], strides = [1, 1, 1]} : vector<6x256x24xbf16> to vector<1x256x24xbf16>
    %257 = vector.shape_cast %256 : vector<1x256x24xbf16> to vector<256x24xbf16>
    %cst_61 = arith.constant dense<0.000000e+00> : vector<32x24xf32>
    %258 = tpu.matmul %255, %257, %cst_61 {dimension_numbers = #tpu.dot_dimension_numbers<[1], [0], [0], [1], [0, 0, 1, 1], [], []>} : vector<32x256xbf16>, vector<256x24xbf16>, vector<32x24xf32> -> vector<32x24xf32>
    %259 = arith.addf %245, %258 : vector<32x24xf32>
    %cst_62 = arith.constant 0xFF80 : bf16
    %260 = vector.broadcast %cst_62 : bf16 to vector<2x1x32xbf16>
    %261 = tpu.concatenate %260, %164, %260 in 1 : vector<2x1x32xbf16>, vector<2x16x32xbf16>, vector<2x1x32xbf16> -> vector<2x18x32xbf16>
    %262 = vector.extract_strided_slice %261 {offsets = [0, 0, 0], sizes = [2, 16, 32], strides = [1, 1, 1]} : vector<2x18x32xbf16> to vector<2x16x32xbf16>
    %263 = vector.extract_strided_slice %261 {offsets = [0, 1, 0], sizes = [2, 16, 32], strides = [1, 1, 1]} : vector<2x18x32xbf16> to vector<2x16x32xbf16>
    %264 = arith.maximumf %262, %263 : vector<2x16x32xbf16>
    %265 = vector.extract_strided_slice %261 {offsets = [0, 2, 0], sizes = [2, 16, 32], strides = [1, 1, 1]} : vector<2x18x32xbf16> to vector<2x16x32xbf16>
    %266 = arith.maximumf %264, %265 : vector<2x16x32xbf16>
    %267 = vector.shape_cast %266 : vector<2x16x32xbf16> to vector<32x32xbf16>
    %cst_63 = arith.constant dense<0.000000e+00> : vector<32x8xf32>
    %268 = tpu.matmul %267, %169, %cst_63 {dimension_numbers = #tpu.dot_dimension_numbers<[1], [0], [0], [1], [0, 0, 1, 1], [], []>} : vector<32x32xbf16>, vector<32x8xbf16>, vector<32x8xf32> -> vector<32x8xf32>
    %269 = tpu.concatenate %259, %268 in 1 : vector<32x24xf32>, vector<32x8xf32> -> vector<32x32xf32>
    %cst_64 = arith.constant dense<0.000000e+00> : vector<32xf32>
    %270 = vector.multi_reduction <add>, %269, %cst_64 [0] : vector<32x32xf32> to vector<32xf32>
    %271 = vector.shape_cast %270 : vector<32xf32> to vector<1x32xf32>
    %272 = arith.mulf %269, %269 : vector<32x32xf32>
    %cst_65 = arith.constant dense<0.000000e+00> : vector<32xf32>
    %273 = vector.multi_reduction <add>, %272, %cst_65 [0] : vector<32x32xf32> to vector<32xf32>
    %274 = vector.shape_cast %273 : vector<32xf32> to vector<1x32xf32>
    %cst_66 = arith.constant 3.125000e-02 : f32
    %275 = vector.broadcast %cst_66 : f32 to vector<1x32xf32>
    %276 = arith.mulf %271, %275 : vector<1x32xf32>
    %cst_67 = arith.constant 3.125000e-02 : f32
    %277 = vector.broadcast %cst_67 : f32 to vector<1x32xf32>
    %278 = arith.mulf %274, %277 : vector<1x32xf32>
    %279 = arith.mulf %276, %276 : vector<1x32xf32>
    %280 = arith.subf %278, %279 : vector<1x32xf32>
    %cst_68 = arith.constant 0.000000e+00 : f32
    %281 = vector.broadcast %cst_68 : f32 to vector<1x32xf32>
    %282 = arith.maximumf %280, %281 : vector<1x32xf32>
    %283 = vector.broadcast %276 : vector<1x32xf32> to vector<32x32xf32>
    %284 = arith.subf %269, %283 : vector<32x32xf32>
    %cst_69 = arith.constant 9.99999974E-6 : f32
    %285 = vector.broadcast %cst_69 : f32 to vector<1x32xf32>
    %286 = arith.addf %282, %285 : vector<1x32xf32>
    %287 = math.rsqrt %286 : vector<1x32xf32>
    %288 = vector.broadcast %287 : vector<1x32xf32> to vector<32x32xf32>
    %289 = arith.mulf %284, %288 : vector<32x32xf32>
    %290 = vector.broadcast %170 : vector<1x32xf32> to vector<32x32xf32>
    %291 = arith.mulf %289, %290 : vector<32x32xf32>
    %292 = vector.broadcast %171 : vector<1x32xf32> to vector<32x32xf32>
    %293 = arith.addf %291, %292 : vector<32x32xf32>
    %cst_70 = arith.constant 0.000000e+00 : f32
    %294 = vector.broadcast %cst_70 : f32 to vector<32x32xf32>
    %295 = arith.maximumf %293, %294 : vector<32x32xf32>
    %296 = arith.truncf %295 : vector<32x32xf32> to vector<32x32xbf16>
    %297 = vector.shape_cast %296 : vector<32x32xbf16> to vector<2x16x32xbf16>
    %298 = vector.shape_cast %297 : vector<2x16x32xbf16> to vector<32x32xbf16>
    %c0_71 = arith.constant 0 : index
    %c0_72 = arith.constant 0 : index
    %299 = vector.load %arg14[%c0_71, %c0_72] : memref<32x32xbf16, #tpu.memory_space<vmem>>, vector<32x32xbf16>
    %cst_73 = arith.constant dense<0.000000e+00> : vector<32x32xf32>
    %300 = tpu.matmul %298, %299, %cst_73 {dimension_numbers = #tpu.dot_dimension_numbers<[1], [0], [0], [1], [0, 0, 1, 1], [], []>} : vector<32x32xbf16>, vector<32x32xbf16>, vector<32x32xf32> -> vector<32x32xf32>
    %c0_74 = arith.constant 0 : index
    %c0_75 = arith.constant 0 : index
    %c0_76 = arith.constant 0 : index
    %301 = vector.load %arg15[%c0_74, %c0_75, %c0_76] : memref<6x256x24xbf16, #tpu.memory_space<vmem>>, vector<6x256x24xbf16>
    %c0_77 = arith.constant 0 : index
    %c0_78 = arith.constant 0 : index
    %302 = vector.load %arg16[%c0_77, %c0_78] : memref<32x8xbf16, #tpu.memory_space<vmem>>, vector<32x8xbf16>
    %c0_79 = arith.constant 0 : index
    %c0_80 = arith.constant 0 : index
    %303 = vector.load %arg17[%c0_79, %c0_80] : memref<1x32xf32, #tpu.memory_space<vmem>>, vector<1x32xf32>
    %c0_81 = arith.constant 0 : index
    %c0_82 = arith.constant 0 : index
    %304 = vector.load %arg18[%c0_81, %c0_82] : memref<1x32xf32, #tpu.memory_space<vmem>>, vector<1x32xf32>
    %305 = arith.truncf %300 : vector<32x32xf32> to vector<32x32xbf16>
    %306 = vector.shape_cast %305 : vector<32x32xbf16> to vector<2x16x32xbf16>
    %cst_83 = arith.constant 0.000000e+00 : bf16
    %307 = vector.broadcast %cst_83 : bf16 to vector<2x20x32xbf16>
    %cst_84 = arith.constant 0.000000e+00 : bf16
    %308 = vector.broadcast %cst_84 : bf16 to vector<2x27x32xbf16>
    %309 = tpu.concatenate %307, %306, %308 in 1 : vector<2x20x32xbf16>, vector<2x16x32xbf16>, vector<2x27x32xbf16> -> vector<2x63x32xbf16>
    %310 = vector.extract_strided_slice %309 {offsets = [0, 0, 0], sizes = [2, 16, 32], strides = [1, 1, 1]} : vector<2x63x32xbf16> to vector<2x16x32xbf16>
    %311 = vector.extract_strided_slice %309 {offsets = [0, 1, 0], sizes = [2, 16, 32], strides = [1, 1, 1]} : vector<2x63x32xbf16> to vector<2x16x32xbf16>
    %312 = vector.extract_strided_slice %309 {offsets = [0, 2, 0], sizes = [2, 16, 32], strides = [1, 1, 1]} : vector<2x63x32xbf16> to vector<2x16x32xbf16>
    %313 = vector.extract_strided_slice %309 {offsets = [0, 3, 0], sizes = [2, 16, 32], strides = [1, 1, 1]} : vector<2x63x32xbf16> to vector<2x16x32xbf16>
    %314 = vector.extract_strided_slice %309 {offsets = [0, 4, 0], sizes = [2, 16, 32], strides = [1, 1, 1]} : vector<2x63x32xbf16> to vector<2x16x32xbf16>
    %315 = vector.extract_strided_slice %309 {offsets = [0, 5, 0], sizes = [2, 16, 32], strides = [1, 1, 1]} : vector<2x63x32xbf16> to vector<2x16x32xbf16>
    %316 = vector.extract_strided_slice %309 {offsets = [0, 6, 0], sizes = [2, 16, 32], strides = [1, 1, 1]} : vector<2x63x32xbf16> to vector<2x16x32xbf16>
    %317 = vector.extract_strided_slice %309 {offsets = [0, 7, 0], sizes = [2, 16, 32], strides = [1, 1, 1]} : vector<2x63x32xbf16> to vector<2x16x32xbf16>
    %318 = tpu.concatenate %310, %311, %312, %313, %314, %315, %316, %317 in 2 : vector<2x16x32xbf16>, vector<2x16x32xbf16>, vector<2x16x32xbf16>, vector<2x16x32xbf16>, vector<2x16x32xbf16>, vector<2x16x32xbf16>, vector<2x16x32xbf16>, vector<2x16x32xbf16> -> vector<2x16x256xbf16>
    %319 = vector.shape_cast %318 : vector<2x16x256xbf16> to vector<32x256xbf16>
    %320 = vector.extract_strided_slice %301 {offsets = [0, 0, 0], sizes = [1, 256, 24], strides = [1, 1, 1]} : vector<6x256x24xbf16> to vector<1x256x24xbf16>
    %321 = vector.shape_cast %320 : vector<1x256x24xbf16> to vector<256x24xbf16>
    %cst_85 = arith.constant dense<0.000000e+00> : vector<32x24xf32>
    %322 = tpu.matmul %319, %321, %cst_85 {dimension_numbers = #tpu.dot_dimension_numbers<[1], [0], [0], [1], [0, 0, 1, 1], [], []>} : vector<32x256xbf16>, vector<256x24xbf16>, vector<32x24xf32> -> vector<32x24xf32>
    %323 = vector.extract_strided_slice %309 {offsets = [0, 8, 0], sizes = [2, 16, 32], strides = [1, 1, 1]} : vector<2x63x32xbf16> to vector<2x16x32xbf16>
    %324 = vector.extract_strided_slice %309 {offsets = [0, 9, 0], sizes = [2, 16, 32], strides = [1, 1, 1]} : vector<2x63x32xbf16> to vector<2x16x32xbf16>
    %325 = vector.extract_strided_slice %309 {offsets = [0, 10, 0], sizes = [2, 16, 32], strides = [1, 1, 1]} : vector<2x63x32xbf16> to vector<2x16x32xbf16>
    %326 = vector.extract_strided_slice %309 {offsets = [0, 11, 0], sizes = [2, 16, 32], strides = [1, 1, 1]} : vector<2x63x32xbf16> to vector<2x16x32xbf16>
    %327 = vector.extract_strided_slice %309 {offsets = [0, 12, 0], sizes = [2, 16, 32], strides = [1, 1, 1]} : vector<2x63x32xbf16> to vector<2x16x32xbf16>
    %328 = vector.extract_strided_slice %309 {offsets = [0, 13, 0], sizes = [2, 16, 32], strides = [1, 1, 1]} : vector<2x63x32xbf16> to vector<2x16x32xbf16>
    %329 = vector.extract_strided_slice %309 {offsets = [0, 14, 0], sizes = [2, 16, 32], strides = [1, 1, 1]} : vector<2x63x32xbf16> to vector<2x16x32xbf16>
    %330 = vector.extract_strided_slice %309 {offsets = [0, 15, 0], sizes = [2, 16, 32], strides = [1, 1, 1]} : vector<2x63x32xbf16> to vector<2x16x32xbf16>
    %331 = tpu.concatenate %323, %324, %325, %326, %327, %328, %329, %330 in 2 : vector<2x16x32xbf16>, vector<2x16x32xbf16>, vector<2x16x32xbf16>, vector<2x16x32xbf16>, vector<2x16x32xbf16>, vector<2x16x32xbf16>, vector<2x16x32xbf16>, vector<2x16x32xbf16> -> vector<2x16x256xbf16>
    %332 = vector.shape_cast %331 : vector<2x16x256xbf16> to vector<32x256xbf16>
    %333 = vector.extract_strided_slice %301 {offsets = [1, 0, 0], sizes = [1, 256, 24], strides = [1, 1, 1]} : vector<6x256x24xbf16> to vector<1x256x24xbf16>
    %334 = vector.shape_cast %333 : vector<1x256x24xbf16> to vector<256x24xbf16>
    %cst_86 = arith.constant dense<0.000000e+00> : vector<32x24xf32>
    %335 = tpu.matmul %332, %334, %cst_86 {dimension_numbers = #tpu.dot_dimension_numbers<[1], [0], [0], [1], [0, 0, 1, 1], [], []>} : vector<32x256xbf16>, vector<256x24xbf16>, vector<32x24xf32> -> vector<32x24xf32>
    %336 = arith.addf %322, %335 : vector<32x24xf32>
    %337 = vector.extract_strided_slice %309 {offsets = [0, 16, 0], sizes = [2, 16, 32], strides = [1, 1, 1]} : vector<2x63x32xbf16> to vector<2x16x32xbf16>
    %338 = vector.extract_strided_slice %309 {offsets = [0, 17, 0], sizes = [2, 16, 32], strides = [1, 1, 1]} : vector<2x63x32xbf16> to vector<2x16x32xbf16>
    %339 = vector.extract_strided_slice %309 {offsets = [0, 18, 0], sizes = [2, 16, 32], strides = [1, 1, 1]} : vector<2x63x32xbf16> to vector<2x16x32xbf16>
    %340 = vector.extract_strided_slice %309 {offsets = [0, 19, 0], sizes = [2, 16, 32], strides = [1, 1, 1]} : vector<2x63x32xbf16> to vector<2x16x32xbf16>
    %341 = vector.extract_strided_slice %309 {offsets = [0, 20, 0], sizes = [2, 16, 32], strides = [1, 1, 1]} : vector<2x63x32xbf16> to vector<2x16x32xbf16>
    %342 = vector.extract_strided_slice %309 {offsets = [0, 21, 0], sizes = [2, 16, 32], strides = [1, 1, 1]} : vector<2x63x32xbf16> to vector<2x16x32xbf16>
    %343 = vector.extract_strided_slice %309 {offsets = [0, 22, 0], sizes = [2, 16, 32], strides = [1, 1, 1]} : vector<2x63x32xbf16> to vector<2x16x32xbf16>
    %344 = vector.extract_strided_slice %309 {offsets = [0, 23, 0], sizes = [2, 16, 32], strides = [1, 1, 1]} : vector<2x63x32xbf16> to vector<2x16x32xbf16>
    %345 = tpu.concatenate %337, %338, %339, %340, %341, %342, %343, %344 in 2 : vector<2x16x32xbf16>, vector<2x16x32xbf16>, vector<2x16x32xbf16>, vector<2x16x32xbf16>, vector<2x16x32xbf16>, vector<2x16x32xbf16>, vector<2x16x32xbf16>, vector<2x16x32xbf16> -> vector<2x16x256xbf16>
    %346 = vector.shape_cast %345 : vector<2x16x256xbf16> to vector<32x256xbf16>
    %347 = vector.extract_strided_slice %301 {offsets = [2, 0, 0], sizes = [1, 256, 24], strides = [1, 1, 1]} : vector<6x256x24xbf16> to vector<1x256x24xbf16>
    %348 = vector.shape_cast %347 : vector<1x256x24xbf16> to vector<256x24xbf16>
    %cst_87 = arith.constant dense<0.000000e+00> : vector<32x24xf32>
    %349 = tpu.matmul %346, %348, %cst_87 {dimension_numbers = #tpu.dot_dimension_numbers<[1], [0], [0], [1], [0, 0, 1, 1], [], []>} : vector<32x256xbf16>, vector<256x24xbf16>, vector<32x24xf32> -> vector<32x24xf32>
    %350 = arith.addf %336, %349 : vector<32x24xf32>
    %351 = vector.extract_strided_slice %309 {offsets = [0, 24, 0], sizes = [2, 16, 32], strides = [1, 1, 1]} : vector<2x63x32xbf16> to vector<2x16x32xbf16>
    %352 = vector.extract_strided_slice %309 {offsets = [0, 25, 0], sizes = [2, 16, 32], strides = [1, 1, 1]} : vector<2x63x32xbf16> to vector<2x16x32xbf16>
    %353 = vector.extract_strided_slice %309 {offsets = [0, 26, 0], sizes = [2, 16, 32], strides = [1, 1, 1]} : vector<2x63x32xbf16> to vector<2x16x32xbf16>
    %354 = vector.extract_strided_slice %309 {offsets = [0, 27, 0], sizes = [2, 16, 32], strides = [1, 1, 1]} : vector<2x63x32xbf16> to vector<2x16x32xbf16>
    %355 = vector.extract_strided_slice %309 {offsets = [0, 28, 0], sizes = [2, 16, 32], strides = [1, 1, 1]} : vector<2x63x32xbf16> to vector<2x16x32xbf16>
    %356 = vector.extract_strided_slice %309 {offsets = [0, 29, 0], sizes = [2, 16, 32], strides = [1, 1, 1]} : vector<2x63x32xbf16> to vector<2x16x32xbf16>
    %357 = vector.extract_strided_slice %309 {offsets = [0, 30, 0], sizes = [2, 16, 32], strides = [1, 1, 1]} : vector<2x63x32xbf16> to vector<2x16x32xbf16>
    %358 = vector.extract_strided_slice %309 {offsets = [0, 31, 0], sizes = [2, 16, 32], strides = [1, 1, 1]} : vector<2x63x32xbf16> to vector<2x16x32xbf16>
    %359 = tpu.concatenate %351, %352, %353, %354, %355, %356, %357, %358 in 2 : vector<2x16x32xbf16>, vector<2x16x32xbf16>, vector<2x16x32xbf16>, vector<2x16x32xbf16>, vector<2x16x32xbf16>, vector<2x16x32xbf16>, vector<2x16x32xbf16>, vector<2x16x32xbf16> -> vector<2x16x256xbf16>
    %360 = vector.shape_cast %359 : vector<2x16x256xbf16> to vector<32x256xbf16>
    %361 = vector.extract_strided_slice %301 {offsets = [3, 0, 0], sizes = [1, 256, 24], strides = [1, 1, 1]} : vector<6x256x24xbf16> to vector<1x256x24xbf16>
    %362 = vector.shape_cast %361 : vector<1x256x24xbf16> to vector<256x24xbf16>
    %cst_88 = arith.constant dense<0.000000e+00> : vector<32x24xf32>
    %363 = tpu.matmul %360, %362, %cst_88 {dimension_numbers = #tpu.dot_dimension_numbers<[1], [0], [0], [1], [0, 0, 1, 1], [], []>} : vector<32x256xbf16>, vector<256x24xbf16>, vector<32x24xf32> -> vector<32x24xf32>
    %364 = arith.addf %350, %363 : vector<32x24xf32>
    %365 = vector.extract_strided_slice %309 {offsets = [0, 32, 0], sizes = [2, 16, 32], strides = [1, 1, 1]} : vector<2x63x32xbf16> to vector<2x16x32xbf16>
    %366 = vector.extract_strided_slice %309 {offsets = [0, 33, 0], sizes = [2, 16, 32], strides = [1, 1, 1]} : vector<2x63x32xbf16> to vector<2x16x32xbf16>
    %367 = vector.extract_strided_slice %309 {offsets = [0, 34, 0], sizes = [2, 16, 32], strides = [1, 1, 1]} : vector<2x63x32xbf16> to vector<2x16x32xbf16>
    %368 = vector.extract_strided_slice %309 {offsets = [0, 35, 0], sizes = [2, 16, 32], strides = [1, 1, 1]} : vector<2x63x32xbf16> to vector<2x16x32xbf16>
    %369 = vector.extract_strided_slice %309 {offsets = [0, 36, 0], sizes = [2, 16, 32], strides = [1, 1, 1]} : vector<2x63x32xbf16> to vector<2x16x32xbf16>
    %370 = vector.extract_strided_slice %309 {offsets = [0, 37, 0], sizes = [2, 16, 32], strides = [1, 1, 1]} : vector<2x63x32xbf16> to vector<2x16x32xbf16>
    %371 = vector.extract_strided_slice %309 {offsets = [0, 38, 0], sizes = [2, 16, 32], strides = [1, 1, 1]} : vector<2x63x32xbf16> to vector<2x16x32xbf16>
    %372 = vector.extract_strided_slice %309 {offsets = [0, 39, 0], sizes = [2, 16, 32], strides = [1, 1, 1]} : vector<2x63x32xbf16> to vector<2x16x32xbf16>
    %373 = tpu.concatenate %365, %366, %367, %368, %369, %370, %371, %372 in 2 : vector<2x16x32xbf16>, vector<2x16x32xbf16>, vector<2x16x32xbf16>, vector<2x16x32xbf16>, vector<2x16x32xbf16>, vector<2x16x32xbf16>, vector<2x16x32xbf16>, vector<2x16x32xbf16> -> vector<2x16x256xbf16>
    %374 = vector.shape_cast %373 : vector<2x16x256xbf16> to vector<32x256xbf16>
    %375 = vector.extract_strided_slice %301 {offsets = [4, 0, 0], sizes = [1, 256, 24], strides = [1, 1, 1]} : vector<6x256x24xbf16> to vector<1x256x24xbf16>
    %376 = vector.shape_cast %375 : vector<1x256x24xbf16> to vector<256x24xbf16>
    %cst_89 = arith.constant dense<0.000000e+00> : vector<32x24xf32>
    %377 = tpu.matmul %374, %376, %cst_89 {dimension_numbers = #tpu.dot_dimension_numbers<[1], [0], [0], [1], [0, 0, 1, 1], [], []>} : vector<32x256xbf16>, vector<256x24xbf16>, vector<32x24xf32> -> vector<32x24xf32>
    %378 = arith.addf %364, %377 : vector<32x24xf32>
    %379 = vector.extract_strided_slice %309 {offsets = [0, 40, 0], sizes = [2, 16, 32], strides = [1, 1, 1]} : vector<2x63x32xbf16> to vector<2x16x32xbf16>
    %380 = vector.extract_strided_slice %309 {offsets = [0, 41, 0], sizes = [2, 16, 32], strides = [1, 1, 1]} : vector<2x63x32xbf16> to vector<2x16x32xbf16>
    %381 = vector.extract_strided_slice %309 {offsets = [0, 42, 0], sizes = [2, 16, 32], strides = [1, 1, 1]} : vector<2x63x32xbf16> to vector<2x16x32xbf16>
    %382 = vector.extract_strided_slice %309 {offsets = [0, 43, 0], sizes = [2, 16, 32], strides = [1, 1, 1]} : vector<2x63x32xbf16> to vector<2x16x32xbf16>
    %383 = vector.extract_strided_slice %309 {offsets = [0, 44, 0], sizes = [2, 16, 32], strides = [1, 1, 1]} : vector<2x63x32xbf16> to vector<2x16x32xbf16>
    %384 = vector.extract_strided_slice %309 {offsets = [0, 45, 0], sizes = [2, 16, 32], strides = [1, 1, 1]} : vector<2x63x32xbf16> to vector<2x16x32xbf16>
    %385 = vector.extract_strided_slice %309 {offsets = [0, 46, 0], sizes = [2, 16, 32], strides = [1, 1, 1]} : vector<2x63x32xbf16> to vector<2x16x32xbf16>
    %386 = vector.extract_strided_slice %309 {offsets = [0, 47, 0], sizes = [2, 16, 32], strides = [1, 1, 1]} : vector<2x63x32xbf16> to vector<2x16x32xbf16>
    %387 = tpu.concatenate %379, %380, %381, %382, %383, %384, %385, %386 in 2 : vector<2x16x32xbf16>, vector<2x16x32xbf16>, vector<2x16x32xbf16>, vector<2x16x32xbf16>, vector<2x16x32xbf16>, vector<2x16x32xbf16>, vector<2x16x32xbf16>, vector<2x16x32xbf16> -> vector<2x16x256xbf16>
    %388 = vector.shape_cast %387 : vector<2x16x256xbf16> to vector<32x256xbf16>
    %389 = vector.extract_strided_slice %301 {offsets = [5, 0, 0], sizes = [1, 256, 24], strides = [1, 1, 1]} : vector<6x256x24xbf16> to vector<1x256x24xbf16>
    %390 = vector.shape_cast %389 : vector<1x256x24xbf16> to vector<256x24xbf16>
    %cst_90 = arith.constant dense<0.000000e+00> : vector<32x24xf32>
    %391 = tpu.matmul %388, %390, %cst_90 {dimension_numbers = #tpu.dot_dimension_numbers<[1], [0], [0], [1], [0, 0, 1, 1], [], []>} : vector<32x256xbf16>, vector<256x24xbf16>, vector<32x24xf32> -> vector<32x24xf32>
    %392 = arith.addf %378, %391 : vector<32x24xf32>
    %cst_91 = arith.constant 0xFF80 : bf16
    %393 = vector.broadcast %cst_91 : bf16 to vector<2x1x32xbf16>
    %394 = tpu.concatenate %393, %297, %393 in 1 : vector<2x1x32xbf16>, vector<2x16x32xbf16>, vector<2x1x32xbf16> -> vector<2x18x32xbf16>
    %395 = vector.extract_strided_slice %394 {offsets = [0, 0, 0], sizes = [2, 16, 32], strides = [1, 1, 1]} : vector<2x18x32xbf16> to vector<2x16x32xbf16>
    %396 = vector.extract_strided_slice %394 {offsets = [0, 1, 0], sizes = [2, 16, 32], strides = [1, 1, 1]} : vector<2x18x32xbf16> to vector<2x16x32xbf16>
    %397 = arith.maximumf %395, %396 : vector<2x16x32xbf16>
    %398 = vector.extract_strided_slice %394 {offsets = [0, 2, 0], sizes = [2, 16, 32], strides = [1, 1, 1]} : vector<2x18x32xbf16> to vector<2x16x32xbf16>
    %399 = arith.maximumf %397, %398 : vector<2x16x32xbf16>
    %400 = vector.shape_cast %399 : vector<2x16x32xbf16> to vector<32x32xbf16>
    %cst_92 = arith.constant dense<0.000000e+00> : vector<32x8xf32>
    %401 = tpu.matmul %400, %302, %cst_92 {dimension_numbers = #tpu.dot_dimension_numbers<[1], [0], [0], [1], [0, 0, 1, 1], [], []>} : vector<32x32xbf16>, vector<32x8xbf16>, vector<32x8xf32> -> vector<32x8xf32>
    %402 = tpu.concatenate %392, %401 in 1 : vector<32x24xf32>, vector<32x8xf32> -> vector<32x32xf32>
    %cst_93 = arith.constant dense<0.000000e+00> : vector<32xf32>
    %403 = vector.multi_reduction <add>, %402, %cst_93 [0] : vector<32x32xf32> to vector<32xf32>
    %404 = vector.shape_cast %403 : vector<32xf32> to vector<1x32xf32>
    %405 = arith.mulf %402, %402 : vector<32x32xf32>
    %cst_94 = arith.constant dense<0.000000e+00> : vector<32xf32>
    %406 = vector.multi_reduction <add>, %405, %cst_94 [0] : vector<32x32xf32> to vector<32xf32>
    %407 = vector.shape_cast %406 : vector<32xf32> to vector<1x32xf32>
    %cst_95 = arith.constant 3.125000e-02 : f32
    %408 = vector.broadcast %cst_95 : f32 to vector<1x32xf32>
    %409 = arith.mulf %404, %408 : vector<1x32xf32>
    %cst_96 = arith.constant 3.125000e-02 : f32
    %410 = vector.broadcast %cst_96 : f32 to vector<1x32xf32>
    %411 = arith.mulf %407, %410 : vector<1x32xf32>
    %412 = arith.mulf %409, %409 : vector<1x32xf32>
    %413 = arith.subf %411, %412 : vector<1x32xf32>
    %cst_97 = arith.constant 0.000000e+00 : f32
    %414 = vector.broadcast %cst_97 : f32 to vector<1x32xf32>
    %415 = arith.maximumf %413, %414 : vector<1x32xf32>
    %416 = vector.broadcast %409 : vector<1x32xf32> to vector<32x32xf32>
    %417 = arith.subf %402, %416 : vector<32x32xf32>
    %cst_98 = arith.constant 9.99999974E-6 : f32
    %418 = vector.broadcast %cst_98 : f32 to vector<1x32xf32>
    %419 = arith.addf %415, %418 : vector<1x32xf32>
    %420 = math.rsqrt %419 : vector<1x32xf32>
    %421 = vector.broadcast %420 : vector<1x32xf32> to vector<32x32xf32>
    %422 = arith.mulf %417, %421 : vector<32x32xf32>
    %423 = vector.broadcast %303 : vector<1x32xf32> to vector<32x32xf32>
    %424 = arith.mulf %422, %423 : vector<32x32xf32>
    %425 = vector.broadcast %304 : vector<1x32xf32> to vector<32x32xf32>
    %426 = arith.addf %424, %425 : vector<32x32xf32>
    %cst_99 = arith.constant 0.000000e+00 : f32
    %427 = vector.broadcast %cst_99 : f32 to vector<32x32xf32>
    %428 = arith.maximumf %426, %427 : vector<32x32xf32>
    %429 = vector.shape_cast %428 : vector<32x32xf32> to vector<2x16x32xf32>
    %430 = vector.shape_cast %429 : vector<2x16x32xf32> to vector<32x32xf32>
    %431 = arith.addf %430, %34 : vector<32x32xf32>
    %cst_100 = arith.constant 0.000000e+00 : f32
    %432 = vector.broadcast %cst_100 : f32 to vector<32x32xf32>
    %433 = arith.maximumf %431, %432 : vector<32x32xf32>
    %434 = vector.extract_strided_slice %433 {offsets = [0, 0], sizes = [16, 32], strides = [1, 1]} : vector<32x32xf32> to vector<16x32xf32>
    %435 = tpu.transpose %434, [1, 0] : vector<16x32xf32> -> vector<32x16xf32>
    %c0_101 = arith.constant 0 : index
    %c0_102 = arith.constant 0 : index
    %c0_103 = arith.constant 0 : index
    %436 = vector.load %arg19[%c0_101, %c0_102, %c0_103] : memref<2x32x16xf32, #tpu.memory_space<vmem>>, vector<1x32x16xf32>
    %437 = vector.shape_cast %436 : vector<1x32x16xf32> to vector<32x16xf32>
    %438 = vector.shape_cast %435 : vector<32x16xf32> to vector<1x32x16xf32>
    tpu.vector_store %arg19[%c0_101, %c0_102, %c0_103], %438 {strides = array<i32>} : memref<2x32x16xf32, #tpu.memory_space<vmem>>, vector<1x32x16xf32>,
    %439 = vector.extract_strided_slice %433 {offsets = [16, 0], sizes = [16, 32], strides = [1, 1]} : vector<32x32xf32> to vector<16x32xf32>
    %440 = tpu.transpose %439, [1, 0] : vector<16x32xf32> -> vector<32x16xf32>
    %c1 = arith.constant 1 : index
    %c0_104 = arith.constant 0 : index
    %c0_105 = arith.constant 0 : index
    %441 = vector.load %arg19[%c1, %c0_104, %c0_105] : memref<2x32x16xf32, #tpu.memory_space<vmem>>, vector<1x32x16xf32>
    %442 = vector.shape_cast %441 : vector<1x32x16xf32> to vector<32x16xf32>
    %443 = vector.shape_cast %440 : vector<32x16xf32> to vector<1x32x16xf32>
    tpu.vector_store %arg19[%c1, %c0_104, %c0_105], %443 {strides = array<i32>} : memref<2x32x16xf32, #tpu.memory_space<vmem>>, vector<1x32x16xf32>,
    return
  }
}

</mosaic_0001>

<llo_original>
// kernel: tpu_custom_call.1
$region0: #{tpu_custom_call.1}
  #allocation0 [shape = 'u32[]', space=smem, size = 0x4, offset = 0x4, fixed_abs, tag = 'smem constant byte address 0x4 - core index']
  #allocation1 [shape = 'u32[72,128]{1,0:T(1,128)}', space=vmem, size = 0x9000, scoped, tag = 'internal scratch']
  %s0 = inlined_call_operand.vmem [shape: bf16[2,16,4], index: 0, kind: input, shape index: {}]
  %s1 = inlined_call_operand.vmem [shape: bf16[4,64], index: 1, kind: input, shape index: {}]
  %s2 = inlined_call_operand.vmem [shape: f32[1,32], index: 2, kind: input, shape index: {}]
  %s3 = inlined_call_operand.vmem [shape: f32[1,32], index: 3, kind: input, shape index: {}]
  %s4 = inlined_call_operand.vmem [shape: f32[1,32], index: 4, kind: input, shape index: {}]
  %s5 = inlined_call_operand.vmem [shape: bf16[6,256,24], index: 5, kind: input, shape index: {}]
  %s6 = inlined_call_operand.vmem [shape: bf16[4,8], index: 6, kind: input, shape index: {}]
  %s7 = inlined_call_operand.vmem [shape: f32[1,32], index: 7, kind: input, shape index: {}]
  %s8 = inlined_call_operand.vmem [shape: f32[1,32], index: 8, kind: input, shape index: {}]
  %s9 = inlined_call_operand.vmem [shape: bf16[32,32], index: 9, kind: input, shape index: {}]
  %s10 = inlined_call_operand.vmem [shape: bf16[6,256,24], index: 10, kind: input, shape index: {}]
  %s11 = inlined_call_operand.vmem [shape: bf16[32,8], index: 11, kind: input, shape index: {}]
  %s12 = inlined_call_operand.vmem [shape: f32[1,32], index: 12, kind: input, shape index: {}]
  %s13 = inlined_call_operand.vmem [shape: f32[1,32], index: 13, kind: input, shape index: {}]
  %s14 = inlined_call_operand.vmem [shape: bf16[32,32], index: 14, kind: input, shape index: {}]
  %s15 = inlined_call_operand.vmem [shape: bf16[6,256,24], index: 15, kind: input, shape index: {}]
  %s16 = inlined_call_operand.vmem [shape: bf16[32,8], index: 16, kind: input, shape index: {}]
  %s17 = inlined_call_operand.vmem [shape: f32[1,32], index: 17, kind: input, shape index: {}]
  %s18 = inlined_call_operand.vmem [shape: f32[1,32], index: 18, kind: input, shape index: {}]
  %s19 = inlined_call_operand.vmem [shape: f32[2,32,16], index: 19, kind: output, shape index: {}]
  %s20 = sld [smem:[#allocation0]]
  $region86: #{tpu_custom_call.1} parent=0
    _
  %s22 = ssub.s32 1, %s20
  %s23 = scalar_select 0, %s22, %s20
  // Predicated region
  $region2: #{tpu_custom_call.1} parent=0 // pred_check
    _
  $region3: #{tpu_custom_call.1} parent=0 // pred_check_branch
    %25 = sbr.rel (0) target = $region5
  $region4: #{tpu_custom_call.1} parent=0 // pred_region
    _
  $region5: #{tpu_custom_call.1} parent=0 // pred_fallthru
    _
  // Predicated region
  $region6: #{tpu_custom_call.1} parent=0 // pred_check
    _
  $region7: #{tpu_custom_call.1} parent=0 // pred_check_branch
    %27 = sbr.rel (0) target = $region9
  $region8: #{tpu_custom_call.1} parent=0 // pred_region
    _
  $region9: #{tpu_custom_call.1} parent=0 // pred_fallthru
    _
  // Predicated region
  $region10: #{tpu_custom_call.1} parent=0 // pred_check
    _
  $region11: #{tpu_custom_call.1} parent=0 // pred_check_branch
    %29 = sbr.rel (0) target = $region13
  $region12: #{tpu_custom_call.1} parent=0 // pred_region
    _
  $region13: #{tpu_custom_call.1} parent=0 // pred_fallthru
    _
  // Predicated region
  $region14: #{tpu_custom_call.1} parent=0 // pred_check
    _
  $region15: #{tpu_custom_call.1} parent=0 // pred_check_branch
    %31 = sbr.rel (0) target = $region17
  $region16: #{tpu_custom_call.1} parent=0 // pred_region
    _
  $region17: #{tpu_custom_call.1} parent=0 // pred_fallthru
    _
  // Predicated region
  $region18: #{tpu_custom_call.1} parent=0 // pred_check
    _
  $region19: #{tpu_custom_call.1} parent=0 // pred_check_branch
    %33 = sbr.rel (0) target = $region21
  $region20: #{tpu_custom_call.1} parent=0 // pred_region
    _
  $region21: #{tpu_custom_call.1} parent=0 // pred_fallthru
    _
  // Predicated region
  $region22: #{tpu_custom_call.1} parent=0 // pred_check
    _
  $region23: #{tpu_custom_call.1} parent=0 // pred_check_branch
    %35 = sbr.rel (0) target = $region25
  $region24: #{tpu_custom_call.1} parent=0 // pred_region
    _
  $region25: #{tpu_custom_call.1} parent=0 // pred_fallthru
    _
  // Predicated region
  $region26: #{tpu_custom_call.1} parent=0 // pred_check
    _
  $region27: #{tpu_custom_call.1} parent=0 // pred_check_branch
    %37 = sbr.rel (0) target = $region29
  $region28: #{tpu_custom_call.1} parent=0 // pred_region
    _
  $region29: #{tpu_custom_call.1} parent=0 // pred_fallthru
    _
  // Predicated region
  $region30: #{tpu_custom_call.1} parent=0 // pred_check
    _
  $region31: #{tpu_custom_call.1} parent=0 // pred_check_branch
    %39 = sbr.rel (0) target = $region33
  $region32: #{tpu_custom_call.1} parent=0 // pred_region
    _
  $region33: #{tpu_custom_call.1} parent=0 // pred_fallthru
    _
  // Predicated region
  $region34: #{tpu_custom_call.1} parent=0 // pred_check
    _
  $region35: #{tpu_custom_call.1} parent=0 // pred_check_branch
    %41 = sbr.rel (0) target = $region37
  $region36: #{tpu_custom_call.1} parent=0 // pred_region
    _
  $region37: #{tpu_custom_call.1} parent=0 // pred_fallthru
    _
  // Predicated region
  $region38: #{tpu_custom_call.1} parent=0 // pred_check
    _
  $region39: #{tpu_custom_call.1} parent=0 // pred_check_branch
    %43 = sbr.rel (0) target = $region41
  $region40: #{tpu_custom_call.1} parent=0 // pred_region
    _
  $region41: #{tpu_custom_call.1} parent=0 // pred_fallthru
    _
  // Predicated region
  $region42: #{tpu_custom_call.1} parent=0 // pred_check
    _
  $region43: #{tpu_custom_call.1} parent=0 // pred_check_branch
    %45 = sbr.rel (0) target = $region45
  $region44: #{tpu_custom_call.1} parent=0 // pred_region
    _
  $region45: #{tpu_custom_call.1} parent=0 // pred_fallthru
    _
  // Predicated region
  $region46: #{tpu_custom_call.1} parent=0 // pred_check
    _
  $region47: #{tpu_custom_call.1} parent=0 // pred_check_branch
    %47 = sbr.rel (0) target = $region49
  $region48: #{tpu_custom_call.1} parent=0 // pred_region
    _
  $region49: #{tpu_custom_call.1} parent=0 // pred_fallthru
    _
  // Predicated region
  $region50: #{tpu_custom_call.1} parent=0 // pred_check
    _
  $region51: #{tpu_custom_call.1} parent=0 // pred_check_branch
    %49 = sbr.rel (0) target = $region53
  $region52: #{tpu_custom_call.1} parent=0 // pred_region
    _
  $region53: #{tpu_custom_call.1} parent=0 // pred_fallthru
    _
  // Predicated region
  $region54: #{tpu_custom_call.1} parent=0 // pred_check
    _
  $region55: #{tpu_custom_call.1} parent=0 // pred_check_branch
    %51 = sbr.rel (0) target = $region57
  $region56: #{tpu_custom_call.1} parent=0 // pred_region
    _
  $region57: #{tpu_custom_call.1} parent=0 // pred_fallthru
    _
  // Predicated region
  $region58: #{tpu_custom_call.1} parent=0 // pred_check
    _
  $region59: #{tpu_custom_call.1} parent=0 // pred_check_branch
    %53 = sbr.rel (0) target = $region61
  $region60: #{tpu_custom_call.1} parent=0 // pred_region
    _
  $region61: #{tpu_custom_call.1} parent=0 // pred_fallthru
    _
  // Predicated region
  $region62: #{tpu_custom_call.1} parent=0 // pred_check
    _
  $region63: #{tpu_custom_call.1} parent=0 // pred_check_branch
    %55 = sbr.rel (0) target = $region65
  $region64: #{tpu_custom_call.1} parent=0 // pred_region
    _
  $region65: #{tpu_custom_call.1} parent=0 // pred_fallthru
    _
  // Predicated region
  $region66: #{tpu_custom_call.1} parent=0 // pred_check
    _
  $region67: #{tpu_custom_call.1} parent=0 // pred_check_branch
    %57 = sbr.rel (0) target = $region69
  $region68: #{tpu_custom_call.1} parent=0 // pred_region
    _
  $region69: #{tpu_custom_call.1} parent=0 // pred_fallthru
    _
  // Predicated region
  $region70: #{tpu_custom_call.1} parent=0 // pred_check
    _
  $region71: #{tpu_custom_call.1} parent=0 // pred_check_branch
    %59 = sbr.rel (0) target = $region73
  $region72: #{tpu_custom_call.1} parent=0 // pred_region
    _
  $region73: #{tpu_custom_call.1} parent=0 // pred_fallthru
    _
  // Predicated region
  $region74: #{tpu_custom_call.1} parent=0 // pred_check
    _
  $region75: #{tpu_custom_call.1} parent=0 // pred_check_branch
    %61 = sbr.rel (0) target = $region77
  $region76: #{tpu_custom_call.1} parent=0 // pred_region
    _
  $region77: #{tpu_custom_call.1} parent=0 // pred_fallthru
    _
  %v64 = vld [vmem:[%s0] sm:$0xf]
  %v65 = vld [vmem:[%s0 + $0x4] sm:$0xf]
  %v66 = vld [vmem:[%s0 + $0x8] sm:$0xf]
  %v67 = vld [vmem:[%s0 + $0xc] sm:$0xf]
  %v68 = vld [vmem:[%s1] sm:$0x3]
  %v73 = vunpack.c.l.b16 %v64
  %v74 = vunpack.c.l.b16 %v65
  %v75 = vunpack.c.l.b16 %v66
  %v76 = vunpack.c.l.b16 %v67
  %v77 = vpack.c.b16 %v74, %v73
  %v78 = vpack.c.b16 %v76, %v75
  %vm79 = vcmask 31744
  %v81 = vsel %vm79, %v77, 0
  %v84 = vsel %vm79, %v78, 0
  %vm86 = vcmask 1041408
  %v88 = vsel %vm86, %v68, 0
  %90 = vmatpush.bf16.msra.mxu0 0
  %91 = vmatpush.bf16.msra.mxu0 0
  %92 = vmatpush.bf16.msra.mxu0 0
  %93 = vmatpush.bf16.msra.mxu0 0
  %94 = vmatpush.bf16.msra.mxu0 0
  %95 = vmatpush.bf16.msra.mxu0 0
  %96 = vmatpush.bf16.msra.mxu0 0
  %97 = vmatpush.bf16.msra.mxu0 %v88
  %98 = vmatmul.bf16.gmra.mxu0 %v81
  %v99 = vpop.f32.mrf.mxu0
  %v100 = vadd.f32 0.0, %v99
  %v101 = vpop.f32.mrf.mxu0
  %v102 = vadd.f32 0.0, %v101
  %103 = vmatmul.bf16.gmra.mxu0 %v84
  %v104 = vpop.f32.mrf.mxu0
  %v105 = vadd.f32 0.0, %v104
  %v106 = vpop.f32.mrf.mxu0
  %v107 = vadd.f32 0.0, %v106
  %108 = vdwg.mxu0
  %v109 = vld [vmem:[%s2] sm:$0x1]
  %v111 = vperm.slane %v109, 0
  %112 = vrot.lane.b32.xlu0 %v111, 32
  %v113 = vpop.permute.xlu0 %112
  %v115 = vadd.f32 %v100, %v113
  %v116 = vadd.f32 %v102, %v113
  %v117 = vadd.f32 %v105, %v113
  %v118 = vadd.f32 %v107, %v113
  %v119 = vld [vmem:[%s3] sm:$0x1]
  %v120 = vld [vmem:[%s4] sm:$0x1]
  %vm121 = vcmask 523520
  %v122 = vsel %vm121, %v115, 0.0
  %v123 = vsel %vm121, %v116, 0.0
  %v124 = vadd.f32 %v122, %v123
  %v125 = vsel %vm121, %v117, 0.0
  %v126 = vadd.f32 %v124, %v125
  %v127 = vsel %vm121, %v118, 0.0
  %v128 = vadd.f32 %v126, %v127
  %v129 = vrot.slane %v128, 4
  %v130 = vadd.f32 %v128, %v129
  %v131 = vrot.slane %v130, 2
  %v132 = vadd.f32 %v130, %v131
  %v133 = vrot.slane %v132, 1
  %v134 = vadd.f32 %v132, %v133
  %v135 = vmul.f32 %v115, %v115
  %v136 = vmul.f32 %v116, %v116
  %v137 = vmul.f32 %v117, %v117
  %v138 = vmul.f32 %v118, %v118
  %v139 = vsel %vm121, %v135, 0.0
  %v140 = vsel %vm121, %v136, 0.0
  %v141 = vadd.f32 %v139, %v140
  %v142 = vsel %vm121, %v137, 0.0
  %v143 = vadd.f32 %v141, %v142
  %v144 = vsel %vm121, %v138, 0.0
  %v145 = vadd.f32 %v143, %v144
  %v146 = vrot.slane %v145, 4
  %v147 = vadd.f32 %v145, %v146
  %v148 = vrot.slane %v147, 2
  %v149 = vadd.f32 %v147, %v148
  %v150 = vrot.slane %v149, 1
  %v151 = vadd.f32 %v149, %v150
  %v152 = vmul.f32 %v134, 0.03125
  %v153 = vmul.f32 %v151, 0.03125
  %v154 = vmul.f32 %v152, %v152
  %v155 = vsub.f32 %v153, %v154
  %v156 = vmax.f32 %v155, 0.0
  %v157 = vsub.f32 %v115, %v152
  %v158 = vsub.f32 %v116, %v152
  %v159 = vsub.f32 %v117, %v152
  %v160 = vsub.f32 %v118, %v152
  %v161 = vadd.f32 %v156, 1e-05
  %v162 = vrsqrt.pop %v161
  %v163 = vmul.f32 %v162, %v161
  %v164 = vmul.f32 %v163, %v162
  %v165 = vmul.f32 0.5, %v164
  %v166 = vsub.f32 1.5, %v165
  %v167 = vmul.f32 %v162, %v166
  %vm168 = vweird.f32 %v161
  %vm169 = vweird.f32 %v162
  %vm170 = vmor %vm168, %vm169
  %v171 = vsel %vm170, %v162, %v167
  %v172 = vmul.f32 %v157, %v171
  %v173 = vmul.f32 %v158, %v171
  %v174 = vmul.f32 %v159, %v171
  %v175 = vmul.f32 %v160, %v171
  %v177 = vperm.slane %v119, 0
  %178 = vrot.lane.b32.xlu0 %v177, 32
  %v179 = vpop.permute.xlu0 %178
  %v181 = vmul.f32 %v172, %v179
  %v182 = vmul.f32 %v173, %v179
  %v183 = vmul.f32 %v174, %v179
  %v184 = vmul.f32 %v175, %v179
  %v186 = vperm.slane %v120, 0
  %187 = vrot.lane.b32.xlu0 %v186, 32
  %v188 = vpop.permute.xlu0 %187
  %v190 = vadd.f32 %v181, %v188
  %v191 = vadd.f32 %v182, %v188
  %v192 = vadd.f32 %v183, %v188
  %v193 = vadd.f32 %v184, %v188
  %v194 = vld [vmem:[%s5] sm:$0xf]
  %v195 = vld [vmem:[%s5 + $0x4] sm:$0xf]
  %v196 = vld [vmem:[%s5 + $0x8] sm:$0xf]
  %v197 = vld [vmem:[%s5 + $0xc] sm:$0xf]
  %v198 = vld [vmem:[%s5 + $0x10] sm:$0xf]
  %v199 = vld [vmem:[%s5 + $0x14] sm:$0xf]
  %v200 = vld [vmem:[%s5 + $0x18] sm:$0xf]
  %v201 = vld [vmem:[%s5 + $0x1c] sm:$0xf]
  %v202 = vld [vmem:[%s5 + $0x20] sm:$0xf]
  %v203 = vld [vmem:[%s5 + $0x24] sm:$0xf]
  %v204 = vld [vmem:[%s5 + $0x28] sm:$0xf]
  %v205 = vld [vmem:[%s5 + $0x2c] sm:$0xf]
  %v206 = vld [vmem:[%s5 + $0x30] sm:$0xf]
  %v207 = vld [vmem:[%s5 + $0x34] sm:$0xf]
  %v208 = vld [vmem:[%s5 + $0x38] sm:$0xf]
  %v209 = vld [vmem:[%s5 + $0x3c] sm:$0xf]
  %v210 = vld [vmem:[%s5 + $0x40] sm:$0xf]
  %v211 = vld [vmem:[%s5 + $0x44] sm:$0xf]
  %v212 = vld [vmem:[%s5 + $0x48] sm:$0xf]
  %v213 = vld [vmem:[%s5 + $0x4c] sm:$0xf]
  %v214 = vld [vmem:[%s5 + $0x50] sm:$0xf]
  %v215 = vld [vmem:[%s5 + $0x54] sm:$0xf]
  %v216 = vld [vmem:[%s5 + $0x58] sm:$0xf]
  %v217 = vld [vmem:[%s5 + $0x5c] sm:$0xf]
  %v218 = vld [vmem:[%s5 + $0x60] sm:$0xf]
  %v219 = vld [vmem:[%s5 + $0x64] sm:$0xf]
  %v220 = vld [vmem:[%s5 + $0x68] sm:$0xf]
  %v221 = vld [vmem:[%s5 + $0x6c] sm:$0xf]
  %v222 = vld [vmem:[%s5 + $0x70] sm:$0xf]
  %v223 = vld [vmem:[%s5 + $0x74] sm:$0xf]
  %v224 = vld [vmem:[%s5 + $0x78] sm:$0xf]
  %v225 = vld [vmem:[%s5 + $0x7c] sm:$0xf]
  %v226 = vld [vmem:[%s5 + $0x80] sm:$0xf]
  %v227 = vld [vmem:[%s5 + $0x84] sm:$0xf]
  %v228 = vld [vmem:[%s5 + $0x88] sm:$0xf]
  %v229 = vld [vmem:[%s5 + $0x8c] sm:$0xf]
  %v230 = vld [vmem:[%s5 + $0x90] sm:$0xf]
  %v231 = vld [vmem:[%s5 + $0x94] sm:$0xf]
  %v232 = vld [vmem:[%s5 + $0x98] sm:$0xf]
  %v233 = vld [vmem:[%s5 + $0x9c] sm:$0xf]
  %v234 = vld [vmem:[%s5 + $0xa0] sm:$0xf]
  %v235 = vld [vmem:[%s5 + $0xa4] sm:$0xf]
  %v236 = vld [vmem:[%s5 + $0xa8] sm:$0xf]
  %v237 = vld [vmem:[%s5 + $0xac] sm:$0xf]
  %v238 = vld [vmem:[%s5 + $0xb0] sm:$0xf]
  %v239 = vld [vmem:[%s5 + $0xb4] sm:$0xf]
  %v240 = vld [vmem:[%s5 + $0xb8] sm:$0xf]
  %v241 = vld [vmem:[%s5 + $0xbc] sm:$0xf]
  %v242 = vld [vmem:[%s5 + $0xc0] sm:$0xf]
  %v243 = vld [vmem:[%s5 + $0xc4] sm:$0xf]
  %v244 = vld [vmem:[%s5 + $0xc8] sm:$0xf]
  %v245 = vld [vmem:[%s5 + $0xcc] sm:$0xf]
  %v246 = vld [vmem:[%s5 + $0xd0] sm:$0xf]
  %v247 = vld [vmem:[%s5 + $0xd4] sm:$0xf]
  %v248 = vld [vmem:[%s5 + $0xd8] sm:$0xf]
  %v249 = vld [vmem:[%s5 + $0xdc] sm:$0xf]
  %v250 = vld [vmem:[%s5 + $0xe0] sm:$0xf]
  %v251 = vld [vmem:[%s5 + $0xe4] sm:$0xf]
  %v252 = vld [vmem:[%s5 + $0xe8] sm:$0xf]
  %v253 = vld [vmem:[%s5 + $0xec] sm:$0xf]
  %v254 = vld [vmem:[%s5 + $0xf0] sm:$0xf]
  %v255 = vld [vmem:[%s5 + $0xf4] sm:$0xf]
  %v256 = vld [vmem:[%s5 + $0xf8] sm:$0xf]
  %v257 = vld [vmem:[%s5 + $0xfc] sm:$0xf]
  %v258 = vld [vmem:[%s5 + $0x100] sm:$0xf]
  %v259 = vld [vmem:[%s5 + $0x104] sm:$0xf]
  %v260 = vld [vmem:[%s5 + $0x108] sm:$0xf]
  %v261 = vld [vmem:[%s5 + $0x10c] sm:$0xf]
  %v262 = vld [vmem:[%s5 + $0x110] sm:$0xf]
  %v263 = vld [vmem:[%s5 + $0x114] sm:$0xf]
  %v264 = vld [vmem:[%s5 + $0x118] sm:$0xf]
  %v265 = vld [vmem:[%s5 + $0x11c] sm:$0xf]
  %v266 = vld [vmem:[%s5 + $0x120] sm:$0xf]
  %v267 = vld [vmem:[%s5 + $0x124] sm:$0xf]
  %v268 = vld [vmem:[%s5 + $0x128] sm:$0xf]
  %v269 = vld [vmem:[%s5 + $0x12c] sm:$0xf]
  %v270 = vld [vmem:[%s5 + $0x130] sm:$0xf]
  %v271 = vld [vmem:[%s5 + $0x134] sm:$0xf]
  %v272 = vld [vmem:[%s5 + $0x138] sm:$0xf]
  %v273 = vld [vmem:[%s5 + $0x13c] sm:$0xf]
  %v274 = vld [vmem:[%s5 + $0x140] sm:$0xf]
  %v275 = vld [vmem:[%s5 + $0x144] sm:$0xf]
  %v276 = vld [vmem:[%s5 + $0x148] sm:$0xf]
  %v277 = vld [vmem:[%s5 + $0x14c] sm:$0xf]
  %v278 = vld [vmem:[%s5 + $0x150] sm:$0xf]
  %v279 = vld [vmem:[%s5 + $0x154] sm:$0xf]
  %v280 = vld [vmem:[%s5 + $0x158] sm:$0xf]
  %v281 = vld [vmem:[%s5 + $0x15c] sm:$0xf]
  %v282 = vld [vmem:[%s5 + $0x160] sm:$0xf]
  %v283 = vld [vmem:[%s5 + $0x164] sm:$0xf]
  %v284 = vld [vmem:[%s5 + $0x168] sm:$0xf]
  %v285 = vld [vmem:[%s5 + $0x16c] sm:$0xf]
  %v286 = vld [vmem:[%s5 + $0x170] sm:$0xf]
  %v287 = vld [vmem:[%s5 + $0x174] sm:$0xf]
  %v288 = vld [vmem:[%s5 + $0x178] sm:$0xf]
  %v289 = vld [vmem:[%s5 + $0x17c] sm:$0xf]
  %v290 = vld [vmem:[%s5 + $0x180] sm:$0xf]
  %v291 = vld [vmem:[%s5 + $0x184] sm:$0xf]
  %v292 = vld [vmem:[%s5 + $0x188] sm:$0xf]
  %v293 = vld [vmem:[%s5 + $0x18c] sm:$0xf]
  %v294 = vld [vmem:[%s5 + $0x190] sm:$0xf]
  %v295 = vld [vmem:[%s5 + $0x194] sm:$0xf]
  %v296 = vld [vmem:[%s5 + $0x198] sm:$0xf]
  %v297 = vld [vmem:[%s5 + $0x19c] sm:$0xf]
  %v298 = vld [vmem:[%s5 + $0x1a0] sm:$0xf]
  %v299 = vld [vmem:[%s5 + $0x1a4] sm:$0xf]
  %v300 = vld [vmem:[%s5 + $0x1a8] sm:$0xf]
  %v301 = vld [vmem:[%s5 + $0x1ac] sm:$0xf]
  %v302 = vld [vmem:[%s5 + $0x1b0] sm:$0xf]
  %v303 = vld [vmem:[%s5 + $0x1b4] sm:$0xf]
  %v304 = vld [vmem:[%s5 + $0x1b8] sm:$0xf]
  %v305 = vld [vmem:[%s5 + $0x1bc] sm:$0xf]
  %v306 = vld [vmem:[%s5 + $0x1c0] sm:$0xf]
  %v307 = vld [vmem:[%s5 + $0x1c4] sm:$0xf]
  %v308 = vld [vmem:[%s5 + $0x1c8] sm:$0xf]
  %v309 = vld [vmem:[%s5 + $0x1cc] sm:$0xf]
  %v310 = vld [vmem:[%s5 + $0x1d0] sm:$0xf]
  %v311 = vld [vmem:[%s5 + $0x1d4] sm:$0xf]
  %v312 = vld [vmem:[%s5 + $0x1d8] sm:$0xf]
  %v313 = vld [vmem:[%s5 + $0x1dc] sm:$0xf]
  %v314 = vld [vmem:[%s5 + $0x1e0] sm:$0xf]
  %v315 = vld [vmem:[%s5 + $0x1e4] sm:$0xf]
  %v316 = vld [vmem:[%s5 + $0x1e8] sm:$0xf]
  %v317 = vld [vmem:[%s5 + $0x1ec] sm:$0xf]
  %v318 = vld [vmem:[%s5 + $0x1f0] sm:$0xf]
  %v319 = vld [vmem:[%s5 + $0x1f4] sm:$0xf]
  %v320 = vld [vmem:[%s5 + $0x1f8] sm:$0xf]
  %v321 = vld [vmem:[%s5 + $0x1fc] sm:$0xf]
  %v322 = vld [vmem:[%s5 + $0x200] sm:$0xf]
  %v323 = vld [vmem:[%s5 + $0x204] sm:$0xf]
  %v324 = vld [vmem:[%s5 + $0x208] sm:$0xf]
  %v325 = vld [vmem:[%s5 + $0x20c] sm:$0xf]
  %v326 = vld [vmem:[%s5 + $0x210] sm:$0xf]
  %v327 = vld [vmem:[%s5 + $0x214] sm:$0xf]
  %v328 = vld [vmem:[%s5 + $0x218] sm:$0xf]
  %v329 = vld [vmem:[%s5 + $0x21c] sm:$0xf]
  %v330 = vld [vmem:[%s5 + $0x220] sm:$0xf]
  %v331 = vld [vmem:[%s5 + $0x224] sm:$0xf]
  %v332 = vld [vmem:[%s5 + $0x228] sm:$0xf]
  %v333 = vld [vmem:[%s5 + $0x22c] sm:$0xf]
  %v334 = vld [vmem:[%s5 + $0x230] sm:$0xf]
  %v335 = vld [vmem:[%s5 + $0x234] sm:$0xf]
  %v336 = vld [vmem:[%s5 + $0x238] sm:$0xf]
  %v337 = vld [vmem:[%s5 + $0x23c] sm:$0xf]
  %v338 = vld [vmem:[%s5 + $0x240] sm:$0xf]
  %v339 = vld [vmem:[%s5 + $0x244] sm:$0xf]
  %v340 = vld [vmem:[%s5 + $0x248] sm:$0xf]
  %v341 = vld [vmem:[%s5 + $0x24c] sm:$0xf]
  %v342 = vld [vmem:[%s5 + $0x250] sm:$0xf]
  %v343 = vld [vmem:[%s5 + $0x254] sm:$0xf]
  %v344 = vld [vmem:[%s5 + $0x258] sm:$0xf]
  %v345 = vld [vmem:[%s5 + $0x25c] sm:$0xf]
  %v346 = vld [vmem:[%s5 + $0x260] sm:$0xf]
  %v347 = vld [vmem:[%s5 + $0x264] sm:$0xf]
  %v348 = vld [vmem:[%s5 + $0x268] sm:$0xf]
  %v349 = vld [vmem:[%s5 + $0x26c] sm:$0xf]
  %v350 = vld [vmem:[%s5 + $0x270] sm:$0xf]
  %v351 = vld [vmem:[%s5 + $0x274] sm:$0xf]
  %v352 = vld [vmem:[%s5 + $0x278] sm:$0xf]
  %v353 = vld [vmem:[%s5 + $0x27c] sm:$0xf]
  %v354 = vld [vmem:[%s5 + $0x280] sm:$0xf]
  %v355 = vld [vmem:[%s5 + $0x284] sm:$0xf]
  %v356 = vld [vmem:[%s5 + $0x288] sm:$0xf]
  %v357 = vld [vmem:[%s5 + $0x28c] sm:$0xf]
  %v358 = vld [vmem:[%s5 + $0x290] sm:$0xf]
  %v359 = vld [vmem:[%s5 + $0x294] sm:$0xf]
  %v360 = vld [vmem:[%s5 + $0x298] sm:$0xf]
  %v361 = vld [vmem:[%s5 + $0x29c] sm:$0xf]
  %v362 = vld [vmem:[%s5 + $0x2a0] sm:$0xf]
  %v363 = vld [vmem:[%s5 + $0x2a4] sm:$0xf]
  %v364 = vld [vmem:[%s5 + $0x2a8] sm:$0xf]
  %v365 = vld [vmem:[%s5 + $0x2ac] sm:$0xf]
  %v366 = vld [vmem:[%s5 + $0x2b0] sm:$0xf]
  %v367 = vld [vmem:[%s5 + $0x2b4] sm:$0xf]
  %v368 = vld [vmem:[%s5 + $0x2b8] sm:$0xf]
  %v369 = vld [vmem:[%s5 + $0x2bc] sm:$0xf]
  %v370 = vld [vmem:[%s5 + $0x2c0] sm:$0xf]
  %v371 = vld [vmem:[%s5 + $0x2c4] sm:$0xf]
  %v372 = vld [vmem:[%s5 + $0x2c8] sm:$0xf]
  %v373 = vld [vmem:[%s5 + $0x2cc] sm:$0xf]
  %v374 = vld [vmem:[%s5 + $0x2d0] sm:$0xf]
  %v375 = vld [vmem:[%s5 + $0x2d4] sm:$0xf]
  %v376 = vld [vmem:[%s5 + $0x2d8] sm:$0xf]
  %v377 = vld [vmem:[%s5 + $0x2dc] sm:$0xf]
  %v378 = vld [vmem:[%s5 + $0x2e0] sm:$0xf]
  %v379 = vld [vmem:[%s5 + $0x2e4] sm:$0xf]
  %v380 = vld [vmem:[%s5 + $0x2e8] sm:$0xf]
  %v381 = vld [vmem:[%s5 + $0x2ec] sm:$0xf]
  %v382 = vld [vmem:[%s5 + $0x2f0] sm:$0xf]
  %v383 = vld [vmem:[%s5 + $0x2f4] sm:$0xf]
  %v384 = vld [vmem:[%s5 + $0x2f8] sm:$0xf]
  %v385 = vld [vmem:[%s5 + $0x2fc] sm:$0xf]
  %v386 = vld [vmem:[%s6] sm:$0x3]
  %v387 = vld [vmem:[%s7] sm:$0x1]
  %v388 = vld [vmem:[%s8] sm:$0x1]
  %v389 = vpack.c.bf16 %v100, %v100
  %v390 = vpack.c.bf16 %v102, %v102
  %v391 = vpack.c.bf16 %v105, %v105
  %v392 = vpack.c.bf16 %v107, %v107
  %v397 = vunpack.c.l.b16 %v389
  %v398 = vunpack.c.l.b16 %v390
  %v399 = vunpack.c.l.b16 %v391
  %v400 = vunpack.c.l.b16 %v392
  %v401 = vpack.c.b16 %v398, %v397
  %v402 = vpack.c.b16 %v400, %v399
  %v403 = vrot.slane %v401, 6
  %v404 = vrot.slane %v402, 6
  %v407 = vsel %vm86, 0, %v403
  %v409 = vsel %vm86, 0, %v404
  %v410 = vsel %vm86, %v403, 0
  %v411 = vsel %vm86, %v404, 0
  %vm412 = vsmask.f32 7424
  %v413 = vshrl.u32 0, 16
  %v415 = vshll.u32 0, 16
  %v417 = vrot.slane %v415, 1
  %v418 = vor.u32 %v413, %v417
  %v419 = vshll.u32 %v407, 16
  %v421 = vrot.slane %v419, 1
  %v422 = vsel %vm412, %v418, %v421
  %v423 = vshll.u32 %v409, 16
  %v425 = vrot.slane %v423, 1
  %v426 = vsel %vm412, %v418, %v425
  %427 = vrot.lane.b32.xlu0 %v422, 32
  %v428 = vpop.permute.xlu0 %427
  %429 = vrot.lane.b32.xlu0 %v426, 32
  %v430 = vpop.permute.xlu0 %429
  %vm434 = vcmask 1046528
  %v435 = vrot.slane 0, 1
  %v436 = vrot.slane %v407, 1
  %v437 = vsel %vm434, %v435, %v436
  %v438 = vrot.slane %v409, 1
  %v439 = vsel %vm434, %v435, %v438
  %440 = vrot.lane.b32.xlu0 %v437, 64
  %v441 = vpop.permute.xlu0 %440
  %442 = vrot.lane.b32.xlu0 %v439, 64
  %v443 = vpop.permute.xlu0 %442
  %vm444 = vsmask.f32 6400
  %v445 = vrot.slane %v413, 1
  %v446 = vrot.slane %v415, 2
  %v447 = vor.u32 %v445, %v446
  %v448 = vshrl.u32 %v407, 16
  %v450 = vrot.slane %v448, 1
  %v451 = vrot.slane %v419, 2
  %v452 = vor.u32 %v450, %v451
  %v453 = vsel %vm444, %v447, %v452
  %v454 = vshrl.u32 %v409, 16
  %v456 = vrot.slane %v454, 1
  %v457 = vrot.slane %v423, 2
  %v458 = vor.u32 %v456, %v457
  %v459 = vsel %vm444, %v447, %v458
  %460 = vrot.lane.b32.xlu0 %v453, 96
  %v461 = vpop.permute.xlu0 %460
  %462 = vrot.lane.b32.xlu0 %v459, 96
  %v463 = vpop.permute.xlu0 %462
  %vm464 = vcmask 1045504
  %v465 = vrot.slane 0, 2
  %v466 = vrot.slane %v407, 2
  %v467 = vsel %vm464, %v465, %v466
  %v468 = vrot.slane %v409, 2
  %v469 = vsel %vm464, %v465, %v468
  %vm470 = vsmask.f32 5376
  %v471 = vrot.slane %v413, 2
  %v472 = vrot.slane %v415, 3
  %v473 = vor.u32 %v471, %v472
  %v474 = vrot.slane %v448, 2
  %v475 = vrot.slane %v419, 3
  %v476 = vor.u32 %v474, %v475
  %v477 = vsel %vm470, %v473, %v476
  %v478 = vrot.slane %v454, 2
  %v479 = vrot.slane %v423, 3
  %v480 = vor.u32 %v478, %v479
  %v481 = vsel %vm470, %v473, %v480
  %482 = vrot.lane.b32.xlu0 %v477, 32
  %v483 = vpop.permute.xlu0 %482
  %484 = vrot.lane.b32.xlu0 %v481, 32
  %v485 = vpop.permute.xlu0 %484
  %vm486 = vcmask 1044480
  %v487 = vrot.slane 0, 3
  %v488 = vrot.slane %v407, 3
  %v489 = vsel %vm486, %v487, %v488
  %v490 = vrot.slane %v409, 3
  %v491 = vsel %vm486, %v487, %v490
  %492 = vrot.lane.b32.xlu0 %v489, 64
  %v493 = vpop.permute.xlu0 %492
  %494 = vrot.lane.b32.xlu0 %v491, 64
  %v495 = vpop.permute.xlu0 %494
  %vm496 = vsmask.f32 4352
  %v497 = vrot.slane %v413, 3
  %v498 = vrot.slane %v415, 4
  %v499 = vor.u32 %v497, %v498
  %v500 = vrot.slane %v448, 3
  %v501 = vrot.slane %v419, 4
  %v502 = vor.u32 %v500, %v501
  %v503 = vsel %vm496, %v499, %v502
  %v504 = vrot.slane %v454, 3
  %v505 = vrot.slane %v423, 4
  %v506 = vor.u32 %v504, %v505
  %v507 = vsel %vm496, %v499, %v506
  %508 = vrot.lane.b32.xlu0 %v503, 96
  %v509 = vpop.permute.xlu0 %508
  %510 = vrot.lane.b32.xlu0 %v507, 96
  %v511 = vpop.permute.xlu0 %510
  %vm512 = vcmask 261120
  %v514 = vsel %vm512, 0, %v428
  %v516 = vsel %vm512, 0, %v430
  %vm517 = vcmask 523264
  %v519 = vsel %vm517, %v514, %v441
  %v521 = vsel %vm517, %v516, %v443
  %vm522 = vcmask 785408
  %v524 = vsel %vm522, %v519, %v461
  %v527 = vsel %vm522, %v521, %v463
  %v531 = vsel %vm512, %v467, %v483
  %v534 = vsel %vm512, %v469, %v485
  %v536 = vsel %vm517, %v531, %v493
  %v538 = vsel %vm517, %v534, %v495
  %v540 = vsel %vm522, %v536, %v509
  %v543 = vsel %vm522, %v538, %v511
  %v545 = vor.u32 %v448, %v421
  %v546 = vor.u32 %v454, %v425
  %547 = vrot.lane.b32.xlu0 %v545, 32
  %v548 = vpop.permute.xlu0 %547
  %549 = vrot.lane.b32.xlu0 %v546, 32
  %v550 = vpop.permute.xlu0 %549
  %551 = vrot.lane.b32.xlu0 %v436, 64
  %v552 = vpop.permute.xlu0 %551
  %553 = vrot.lane.b32.xlu0 %v438, 64
  %v554 = vpop.permute.xlu0 %553
  %555 = vrot.lane.b32.xlu0 %v452, 96
  %v556 = vpop.permute.xlu0 %555
  %557 = vrot.lane.b32.xlu0 %v458, 96
  %v558 = vpop.permute.xlu0 %557
  %559 = vrot.lane.b32.xlu0 %v476, 32
  %v560 = vpop.permute.xlu0 %559
  %561 = vrot.lane.b32.xlu0 %v480, 32
  %v562 = vpop.permute.xlu0 %561
  %563 = vrot.lane.b32.xlu0 %v488, 64
  %v564 = vpop.permute.xlu0 %563
  %565 = vrot.lane.b32.xlu0 %v490, 64
  %v566 = vpop.permute.xlu0 %565
  %v567 = vsel %vm496, %v497, %v502
  %v568 = vsel %vm496, %v497, %v506
  %569 = vrot.lane.b32.xlu0 %v567, 96
  %v570 = vpop.permute.xlu0 %569
  %571 = vrot.lane.b32.xlu0 %v502, 96
  %v572 = vpop.permute.xlu0 %571
  %573 = vrot.lane.b32.xlu0 %v568, 96
  %v574 = vpop.permute.xlu0 %573
  %575 = vrot.lane.b32.xlu0 %v506, 96
  %v576 = vpop.permute.xlu0 %575
  %v578 = vsel %vm512, %v407, %v548
  %v580 = vsel %vm512, %v409, %v550
  %v582 = vsel %vm517, %v578, %v552
  %v584 = vsel %vm517, %v580, %v554
  %v586 = vsel %vm522, %v582, %v556
  %v588 = vsel %vm522, %v584, %v558
  %v591 = vsel %vm512, %v466, %v560
  %v594 = vsel %vm512, %v468, %v562
  %v596 = vsel %vm517, %v591, %v564
  %v598 = vsel %vm517, %v594, %v566
  %v600 = vsel %vm522, %v536, %v570
  %v602 = vsel %vm522, %v596, %v572
  %v604 = vsel %vm522, %v538, %v574
  %v606 = vsel %vm522, %v598, %v576
  %vm615 = vcmask 1043456
  %v616 = vrot.slane %v524, 4
  %v617 = vrot.slane %v586, 4
  %v618 = vsel %vm615, %v616, %v617
  %v619 = vrot.slane %v600, 4
  %v620 = vrot.slane %v602, 4
  %v621 = vsel %vm615, %v619, %v620
  %v622 = vrot.slane %v527, 4
  %v623 = vrot.slane %v588, 4
  %v624 = vsel %vm615, %v622, %v623
  %v625 = vrot.slane %v604, 4
  %v626 = vrot.slane %v606, 4
  %v627 = vsel %vm615, %v625, %v626
  %v664 = vunpack.c.l.b16 %v226
  %v665 = vunpack.c.l.b16 %v227
  %v666 = vunpack.c.l.b16 %v228
  %v667 = vunpack.c.l.b16 %v229
  %v668 = vunpack.c.l.b16 %v230
  %v669 = vunpack.c.l.b16 %v231
  %v670 = vunpack.c.l.b16 %v232
  %v671 = vunpack.c.l.b16 %v233
  %v672 = vunpack.c.l.b16 %v234
  %v673 = vunpack.c.l.b16 %v235
  %v674 = vunpack.c.l.b16 %v236
  %v675 = vunpack.c.l.b16 %v237
  %v676 = vunpack.c.l.b16 %v238
  %v677 = vunpack.c.l.b16 %v239
  %v678 = vunpack.c.l.b16 %v240
  %v679 = vunpack.c.l.b16 %v241
  %v680 = vunpack.c.l.b16 %v242
  %v681 = vunpack.c.l.b16 %v243
  %v682 = vunpack.c.l.b16 %v244
  %v683 = vunpack.c.l.b16 %v245
  %v684 = vunpack.c.l.b16 %v246
  %v685 = vunpack.c.l.b16 %v247
  %v686 = vunpack.c.l.b16 %v248
  %v687 = vunpack.c.l.b16 %v249
  %v688 = vunpack.c.l.b16 %v250
  %v689 = vunpack.c.l.b16 %v251
  %v690 = vunpack.c.l.b16 %v252
  %v691 = vunpack.c.l.b16 %v253
  %v692 = vunpack.c.l.b16 %v254
  %v693 = vunpack.c.l.b16 %v255
  %v694 = vunpack.c.l.b16 %v256
  %v695 = vunpack.c.l.b16 %v257
  %v696 = vpack.c.b16 %v665, %v664
  %v697 = vpack.c.b16 %v667, %v666
  %v698 = vpack.c.b16 %v669, %v668
  %v699 = vpack.c.b16 %v671, %v670
  %v700 = vpack.c.b16 %v673, %v672
  %v701 = vpack.c.b16 %v675, %v674
  %v702 = vpack.c.b16 %v677, %v676
  %v703 = vpack.c.b16 %v679, %v678
  %v704 = vpack.c.b16 %v681, %v680
  %v705 = vpack.c.b16 %v683, %v682
  %v706 = vpack.c.b16 %v685, %v684
  %v707 = vpack.c.b16 %v687, %v686
  %v708 = vpack.c.b16 %v689, %v688
  %v709 = vpack.c.b16 %v691, %v690
  %v710 = vpack.c.b16 %v693, %v692
  %v711 = vpack.c.b16 %v695, %v694
  %728 = vmatpush.bf16.msra.mxu0 %v703
  %729 = vmatpush.bf16.msra.mxu0 %v702
  %730 = vmatpush.bf16.msra.mxu0 %v701
  %731 = vmatpush.bf16.msra.mxu0 %v700
  %732 = vmatpush.bf16.msra.mxu0 %v699
  %733 = vmatpush.bf16.msra.mxu0 %v698
  %734 = vmatpush.bf16.msra.mxu0 %v697
  %735 = vmatpush.bf16.msra.mxu0 %v696
  %736 = vmatmul.bf16.gmra.mxu0 %v618
  %v737 = vpop.f32.mrf.mxu0
  %v738 = vadd.f32 0.0, %v737
  %v739 = vpop.f32.mrf.mxu0
  %v740 = vadd.f32 0.0, %v739
  %741 = vmatmul.bf16.gmra.mxu0 %v624
  %v742 = vpop.f32.mrf.mxu0
  %v743 = vadd.f32 0.0, %v742
  %v744 = vpop.f32.mrf.mxu0
  %v745 = vadd.f32 0.0, %v744
  %746 = vdwg.mxu0
  %747 = vmatpush.bf16.msra.mxu0 %v711
  %748 = vmatpush.bf16.msra.mxu0 %v710
  %749 = vmatpush.bf16.msra.mxu0 %v709
  %750 = vmatpush.bf16.msra.mxu0 %v708
  %751 = vmatpush.bf16.msra.mxu0 %v707
  %752 = vmatpush.bf16.msra.mxu0 %v706
  %753 = vmatpush.bf16.msra.mxu0 %v705
  %754 = vmatpush.bf16.msra.mxu0 %v704
  %755 = vmatmul.bf16.gmra.mxu0 %v621
  %v756 = vpop.f32.mrf.mxu0
  %v757 = vadd.f32 %v738, %v756
  %v758 = vpop.f32.mrf.mxu0
  %v759 = vadd.f32 %v740, %v758
  %760 = vmatmul.bf16.gmra.mxu0 %v627
  %v761 = vpop.f32.mrf.mxu0
  %v762 = vadd.f32 %v743, %v761
  %v763 = vpop.f32.mrf.mxu0
  %v764 = vadd.f32 %v745, %v763
  %765 = vdwg.mxu0
  %v798 = vunpack.c.l.b16 %v194
  %v799 = vunpack.c.l.b16 %v195
  %v800 = vunpack.c.l.b16 %v196
  %v801 = vunpack.c.l.b16 %v197
  %v802 = vunpack.c.l.b16 %v198
  %v803 = vunpack.c.l.b16 %v199
  %v804 = vunpack.c.l.b16 %v200
  %v805 = vunpack.c.l.b16 %v201
  %v806 = vunpack.c.l.b16 %v202
  %v807 = vunpack.c.l.b16 %v203
  %v808 = vunpack.c.l.b16 %v204
  %v809 = vunpack.c.l.b16 %v205
  %v810 = vunpack.c.l.b16 %v206
  %v811 = vunpack.c.l.b16 %v207
  %v812 = vunpack.c.l.b16 %v208
  %v813 = vunpack.c.l.b16 %v209
  %v814 = vunpack.c.l.b16 %v210
  %v815 = vunpack.c.l.b16 %v211
  %v816 = vunpack.c.l.b16 %v212
  %v817 = vunpack.c.l.b16 %v213
  %v818 = vunpack.c.l.b16 %v214
  %v819 = vunpack.c.l.b16 %v215
  %v820 = vunpack.c.l.b16 %v216
  %v821 = vunpack.c.l.b16 %v217
  %v822 = vunpack.c.l.b16 %v218
  %v823 = vunpack.c.l.b16 %v219
  %v824 = vunpack.c.l.b16 %v220
  %v825 = vunpack.c.l.b16 %v221
  %v826 = vunpack.c.l.b16 %v222
  %v827 = vunpack.c.l.b16 %v223
  %v828 = vunpack.c.l.b16 %v224
  %v829 = vunpack.c.l.b16 %v225
  %v830 = vpack.c.b16 %v799, %v798
  %v831 = vpack.c.b16 %v801, %v800
  %v832 = vpack.c.b16 %v803, %v802
  %v833 = vpack.c.b16 %v805, %v804
  %v834 = vpack.c.b16 %v807, %v806
  %v835 = vpack.c.b16 %v809, %v808
  %v836 = vpack.c.b16 %v811, %v810
  %v837 = vpack.c.b16 %v813, %v812
  %v838 = vpack.c.b16 %v815, %v814
  %v839 = vpack.c.b16 %v817, %v816
  %v840 = vpack.c.b16 %v819, %v818
  %v841 = vpack.c.b16 %v821, %v820
  %v842 = vpack.c.b16 %v823, %v822
  %v843 = vpack.c.b16 %v825, %v824
  %v844 = vpack.c.b16 %v827, %v826
  %v845 = vpack.c.b16 %v829, %v828
  %862 = vmatpush.bf16.msra.mxu0 %v837
  %863 = vmatpush.bf16.msra.mxu0 %v836
  %864 = vmatpush.bf16.msra.mxu0 %v835
  %865 = vmatpush.bf16.msra.mxu0 %v834
  %866 = vmatpush.bf16.msra.mxu0 %v833
  %867 = vmatpush.bf16.msra.mxu0 %v832
  %868 = vmatpush.bf16.msra.mxu0 %v831
  %869 = vmatpush.bf16.msra.mxu0 %v830
  %870 = vmatmul.bf16.gmra.mxu0 %v524
  %v871 = vpop.f32.mrf.mxu0
  %v872 = vadd.f32 %v757, %v871
  %v873 = vpop.f32.mrf.mxu0
  %v874 = vadd.f32 %v759, %v873
  %875 = vmatmul.bf16.gmra.mxu0 %v527
  %v876 = vpop.f32.mrf.mxu0
  %v877 = vadd.f32 %v762, %v876
  %v878 = vpop.f32.mrf.mxu0
  %v879 = vadd.f32 %v764, %v878
  %880 = vdwg.mxu0
  %881 = vmatpush.bf16.msra.mxu0 %v845
  %882 = vmatpush.bf16.msra.mxu0 %v844
  %883 = vmatpush.bf16.msra.mxu0 %v843
  %884 = vmatpush.bf16.msra.mxu0 %v842
  %885 = vmatpush.bf16.msra.mxu0 %v841
  %886 = vmatpush.bf16.msra.mxu0 %v840
  %887 = vmatpush.bf16.msra.mxu0 %v839
  %888 = vmatpush.bf16.msra.mxu0 %v838
  %889 = vmatmul.bf16.gmra.mxu0 %v540
  %v890 = vpop.f32.mrf.mxu0
  %v891 = vadd.f32 %v872, %v890
  %v892 = vpop.f32.mrf.mxu0
  %v893 = vadd.f32 %v874, %v892
  %894 = vmatmul.bf16.gmra.mxu0 %v543
  %v895 = vpop.f32.mrf.mxu0
  %v896 = vadd.f32 %v877, %v895
  %v897 = vpop.f32.mrf.mxu0
  %v898 = vadd.f32 %v879, %v897
  %899 = vdwg.mxu0
  %v900 = vshll.u32 %v410, 16
  %v902 = vrot.slane %v900, 1
  %v903 = vsel %vm412, %v545, %v902
  %v904 = vshll.u32 %v411, 16
  %v906 = vrot.slane %v904, 1
  %v907 = vsel %vm412, %v546, %v906
  %908 = vrot.lane.b32.xlu0 %v903, 32
  %v909 = vpop.permute.xlu0 %908
  %910 = vrot.lane.b32.xlu0 %v907, 32
  %v911 = vpop.permute.xlu0 %910
  %v914 = vrot.slane %v410, 1
  %v915 = vsel %vm434, %v436, %v914
  %v916 = vrot.slane %v411, 1
  %v917 = vsel %vm434, %v438, %v916
  %918 = vrot.lane.b32.xlu0 %v915, 64
  %v919 = vpop.permute.xlu0 %918
  %920 = vrot.lane.b32.xlu0 %v917, 64
  %v921 = vpop.permute.xlu0 %920
  %v922 = vshrl.u32 %v410, 16
  %v924 = vrot.slane %v922, 1
  %v925 = vrot.slane %v900, 2
  %v926 = vor.u32 %v924, %v925
  %v927 = vsel %vm444, %v452, %v926
  %v928 = vshrl.u32 %v411, 16
  %v930 = vrot.slane %v928, 1
  %v931 = vrot.slane %v904, 2
  %v932 = vor.u32 %v930, %v931
  %v933 = vsel %vm444, %v458, %v932
  %934 = vrot.lane.b32.xlu0 %v927, 96
  %v935 = vpop.permute.xlu0 %934
  %936 = vrot.lane.b32.xlu0 %v933, 96
  %v937 = vpop.permute.xlu0 %936
  %v938 = vrot.slane %v410, 2
  %v939 = vsel %vm464, %v466, %v938
  %v940 = vrot.slane %v411, 2
  %v941 = vsel %vm464, %v468, %v940
  %v942 = vrot.slane %v922, 2
  %v943 = vrot.slane %v900, 3
  %v944 = vor.u32 %v942, %v943
  %v945 = vsel %vm470, %v476, %v944
  %v946 = vrot.slane %v928, 2
  %v947 = vrot.slane %v904, 3
  %v948 = vor.u32 %v946, %v947
  %v949 = vsel %vm470, %v480, %v948
  %950 = vrot.lane.b32.xlu0 %v945, 32
  %v951 = vpop.permute.xlu0 %950
  %952 = vrot.lane.b32.xlu0 %v949, 32
  %v953 = vpop.permute.xlu0 %952
  %v954 = vrot.slane %v410, 3
  %v955 = vsel %vm486, %v488, %v954
  %v956 = vrot.slane %v411, 3
  %v957 = vsel %vm486, %v490, %v956
  %958 = vrot.lane.b32.xlu0 %v955, 64
  %v959 = vpop.permute.xlu0 %958
  %960 = vrot.lane.b32.xlu0 %v957, 64
  %v961 = vpop.permute.xlu0 %960
  %v962 = vrot.slane %v922, 3
  %v963 = vrot.slane %v900, 4
  %v964 = vor.u32 %v962, %v963
  %v965 = vsel %vm496, %v502, %v964
  %v966 = vrot.slane %v928, 3
  %v967 = vrot.slane %v904, 4
  %v968 = vor.u32 %v966, %v967
  %v969 = vsel %vm496, %v506, %v968
  %970 = vrot.lane.b32.xlu0 %v965, 96
  %v971 = vpop.permute.xlu0 %970
  %972 = vrot.lane.b32.xlu0 %v969, 96
  %v973 = vpop.permute.xlu0 %972
  %v975 = vsel %vm512, %v407, %v909
  %v977 = vsel %vm512, %v409, %v911
  %v979 = vsel %vm517, %v975, %v919
  %v981 = vsel %vm517, %v977, %v921
  %v983 = vsel %vm522, %v979, %v935
  %v986 = vsel %vm522, %v981, %v937
  %v990 = vsel %vm512, %v939, %v951
  %v993 = vsel %vm512, %v941, %v953
  %v995 = vsel %vm517, %v990, %v959
  %v997 = vsel %vm517, %v993, %v961
  %v999 = vsel %vm522, %v995, %v971
  %v1002 = vsel %vm522, %v997, %v973
  %v1036 = vunpack.c.l.b16 %v258
  %v1037 = vunpack.c.l.b16 %v259
  %v1038 = vunpack.c.l.b16 %v260
  %v1039 = vunpack.c.l.b16 %v261
  %v1040 = vunpack.c.l.b16 %v262
  %v1041 = vunpack.c.l.b16 %v263
  %v1042 = vunpack.c.l.b16 %v264
  %v1043 = vunpack.c.l.b16 %v265
  %v1044 = vunpack.c.l.b16 %v266
  %v1045 = vunpack.c.l.b16 %v267
  %v1046 = vunpack.c.l.b16 %v268
  %v1047 = vunpack.c.l.b16 %v269
  %v1048 = vunpack.c.l.b16 %v270
  %v1049 = vunpack.c.l.b16 %v271
  %v1050 = vunpack.c.l.b16 %v272
  %v1051 = vunpack.c.l.b16 %v273
  %v1052 = vunpack.c.l.b16 %v274
  %v1053 = vunpack.c.l.b16 %v275
  %v1054 = vunpack.c.l.b16 %v276
  %v1055 = vunpack.c.l.b16 %v277
  %v1056 = vunpack.c.l.b16 %v278
  %v1057 = vunpack.c.l.b16 %v279
  %v1058 = vunpack.c.l.b16 %v280
  %v1059 = vunpack.c.l.b16 %v281
  %v1060 = vunpack.c.l.b16 %v282
  %v1061 = vunpack.c.l.b16 %v283
  %v1062 = vunpack.c.l.b16 %v284
  %v1063 = vunpack.c.l.b16 %v285
  %v1064 = vunpack.c.l.b16 %v286
  %v1065 = vunpack.c.l.b16 %v287
  %v1066 = vunpack.c.l.b16 %v288
  %v1067 = vunpack.c.l.b16 %v289
  %v1068 = vpack.c.b16 %v1037, %v1036
  %v1069 = vpack.c.b16 %v1039, %v1038
  %v1070 = vpack.c.b16 %v1041, %v1040
  %v1071 = vpack.c.b16 %v1043, %v1042
  %v1072 = vpack.c.b16 %v1045, %v1044
  %v1073 = vpack.c.b16 %v1047, %v1046
  %v1074 = vpack.c.b16 %v1049, %v1048
  %v1075 = vpack.c.b16 %v1051, %v1050
  %v1076 = vpack.c.b16 %v1053, %v1052
  %v1077 = vpack.c.b16 %v1055, %v1054
  %v1078 = vpack.c.b16 %v1057, %v1056
  %v1079 = vpack.c.b16 %v1059, %v1058
  %v1080 = vpack.c.b16 %v1061, %v1060
  %v1081 = vpack.c.b16 %v1063, %v1062
  %v1082 = vpack.c.b16 %v1065, %v1064
  %v1083 = vpack.c.b16 %v1067, %v1066
  %1100 = vmatpush.bf16.msra.mxu0 %v1075
  %1101 = vmatpush.bf16.msra.mxu0 %v1074
  %1102 = vmatpush.bf16.msra.mxu0 %v1073
  %1103 = vmatpush.bf16.msra.mxu0 %v1072
  %1104 = vmatpush.bf16.msra.mxu0 %v1071
  %1105 = vmatpush.bf16.msra.mxu0 %v1070
  %1106 = vmatpush.bf16.msra.mxu0 %v1069
  %1107 = vmatpush.bf16.msra.mxu0 %v1068
  %1108 = vmatmul.bf16.gmra.mxu0 %v983
  %v1109 = vpop.f32.mrf.mxu0
  %v1110 = vadd.f32 0.0, %v1109
  %v1111 = vpop.f32.mrf.mxu0
  %v1112 = vadd.f32 0.0, %v1111
  %1113 = vmatmul.bf16.gmra.mxu0 %v986
  %v1114 = vpop.f32.mrf.mxu0
  %v1115 = vadd.f32 0.0, %v1114
  %v1116 = vpop.f32.mrf.mxu0
  %v1117 = vadd.f32 0.0, %v1116
  %1118 = vdwg.mxu0
  %1119 = vmatpush.bf16.msra.mxu0 %v1083
  %1120 = vmatpush.bf16.msra.mxu0 %v1082
  %1121 = vmatpush.bf16.msra.mxu0 %v1081
  %1122 = vmatpush.bf16.msra.mxu0 %v1080
  %1123 = vmatpush.bf16.msra.mxu0 %v1079
  %1124 = vmatpush.bf16.msra.mxu0 %v1078
  %1125 = vmatpush.bf16.msra.mxu0 %v1077
  %1126 = vmatpush.bf16.msra.mxu0 %v1076
  %1127 = vmatmul.bf16.gmra.mxu0 %v999
  %v1128 = vpop.f32.mrf.mxu0
  %v1129 = vadd.f32 %v1110, %v1128
  %v1130 = vpop.f32.mrf.mxu0
  %v1131 = vadd.f32 %v1112, %v1130
  %1132 = vmatmul.bf16.gmra.mxu0 %v1002
  %v1133 = vpop.f32.mrf.mxu0
  %v1134 = vadd.f32 %v1115, %v1133
  %v1135 = vpop.f32.mrf.mxu0
  %v1136 = vadd.f32 %v1117, %v1135
  %1137 = vdwg.mxu0
  %v1138 = vadd.f32 %v891, %v1129
  %v1139 = vadd.f32 %v893, %v1131
  %v1140 = vadd.f32 %v896, %v1134
  %v1141 = vadd.f32 %v898, %v1136
  %v1142 = vor.u32 %v922, %v902
  %v1143 = vor.u32 %v928, %v906
  %1144 = vrot.lane.b32.xlu0 %v1142, 32
  %v1145 = vpop.permute.xlu0 %1144
  %1146 = vrot.lane.b32.xlu0 %v1143, 32
  %v1147 = vpop.permute.xlu0 %1146
  %1148 = vrot.lane.b32.xlu0 %v914, 64
  %v1149 = vpop.permute.xlu0 %1148
  %1150 = vrot.lane.b32.xlu0 %v916, 64
  %v1151 = vpop.permute.xlu0 %1150
  %1152 = vrot.lane.b32.xlu0 %v926, 96
  %v1153 = vpop.permute.xlu0 %1152
  %1154 = vrot.lane.b32.xlu0 %v932, 96
  %v1155 = vpop.permute.xlu0 %1154
  %1156 = vrot.lane.b32.xlu0 %v944, 32
  %v1157 = vpop.permute.xlu0 %1156
  %1158 = vrot.lane.b32.xlu0 %v948, 32
  %v1159 = vpop.permute.xlu0 %1158
  %1160 = vrot.lane.b32.xlu0 %v954, 64
  %v1161 = vpop.permute.xlu0 %1160
  %1162 = vrot.lane.b32.xlu0 %v956, 64
  %v1163 = vpop.permute.xlu0 %1162
  %v1164 = vsel %vm496, %v500, %v964
  %v1165 = vsel %vm496, %v504, %v968
  %1166 = vrot.lane.b32.xlu0 %v1164, 96
  %v1167 = vpop.permute.xlu0 %1166
  %1168 = vrot.lane.b32.xlu0 %v964, 96
  %v1169 = vpop.permute.xlu0 %1168
  %1170 = vrot.lane.b32.xlu0 %v1165, 96
  %v1171 = vpop.permute.xlu0 %1170
  %1172 = vrot.lane.b32.xlu0 %v968, 96
  %v1173 = vpop.permute.xlu0 %1172
  %v1175 = vsel %vm512, %v410, %v1145
  %v1177 = vsel %vm512, %v411, %v1147
  %v1179 = vsel %vm517, %v1175, %v1149
  %v1181 = vsel %vm517, %v1177, %v1151
  %v1183 = vsel %vm522, %v1179, %v1153
  %v1185 = vsel %vm522, %v1181, %v1155
  %v1188 = vsel %vm512, %v938, %v1157
  %v1191 = vsel %vm512, %v940, %v1159
  %v1193 = vsel %vm517, %v1188, %v1161
  %v1195 = vsel %vm517, %v1191, %v1163
  %v1197 = vsel %vm522, %v995, %v1167
  %v1199 = vsel %vm522, %v1193, %v1169
  %v1201 = vsel %vm522, %v997, %v1171
  %v1203 = vsel %vm522, %v1195, %v1173
  %v1212 = vrot.slane %v983, 4
  %v1213 = vrot.slane %v1183, 4
  %v1214 = vsel %vm615, %v1212, %v1213
  %v1215 = vrot.slane %v1197, 4
  %v1216 = vrot.slane %v1199, 4
  %v1217 = vsel %vm615, %v1215, %v1216
  %v1218 = vrot.slane %v986, 4
  %v1219 = vrot.slane %v1185, 4
  %v1220 = vsel %vm615, %v1218, %v1219
  %v1221 = vrot.slane %v1201, 4
  %v1222 = vrot.slane %v1203, 4
  %v1223 = vsel %vm615, %v1221, %v1222
  %v1260 = vunpack.c.l.b16 %v290
  %v1261 = vunpack.c.l.b16 %v291
  %v1262 = vunpack.c.l.b16 %v292
  %v1263 = vunpack.c.l.b16 %v293
  %v1264 = vunpack.c.l.b16 %v294
  %v1265 = vunpack.c.l.b16 %v295
  %v1266 = vunpack.c.l.b16 %v296
  %v1267 = vunpack.c.l.b16 %v297
  %v1268 = vunpack.c.l.b16 %v298
  %v1269 = vunpack.c.l.b16 %v299
  %v1270 = vunpack.c.l.b16 %v300
  %v1271 = vunpack.c.l.b16 %v301
  %v1272 = vunpack.c.l.b16 %v302
  %v1273 = vunpack.c.l.b16 %v303
  %v1274 = vunpack.c.l.b16 %v304
  %v1275 = vunpack.c.l.b16 %v305
  %v1276 = vunpack.c.l.b16 %v306
  %v1277 = vunpack.c.l.b16 %v307
  %v1278 = vunpack.c.l.b16 %v308
  %v1279 = vunpack.c.l.b16 %v309
  %v1280 = vunpack.c.l.b16 %v310
  %v1281 = vunpack.c.l.b16 %v311
  %v1282 = vunpack.c.l.b16 %v312
  %v1283 = vunpack.c.l.b16 %v313
  %v1284 = vunpack.c.l.b16 %v314
  %v1285 = vunpack.c.l.b16 %v315
  %v1286 = vunpack.c.l.b16 %v316
  %v1287 = vunpack.c.l.b16 %v317
  %v1288 = vunpack.c.l.b16 %v318
  %v1289 = vunpack.c.l.b16 %v319
  %v1290 = vunpack.c.l.b16 %v320
  %v1291 = vunpack.c.l.b16 %v321
  %v1292 = vpack.c.b16 %v1261, %v1260
  %v1293 = vpack.c.b16 %v1263, %v1262
  %v1294 = vpack.c.b16 %v1265, %v1264
  %v1295 = vpack.c.b16 %v1267, %v1266
  %v1296 = vpack.c.b16 %v1269, %v1268
  %v1297 = vpack.c.b16 %v1271, %v1270
  %v1298 = vpack.c.b16 %v1273, %v1272
  %v1299 = vpack.c.b16 %v1275, %v1274
  %v1300 = vpack.c.b16 %v1277, %v1276
  %v1301 = vpack.c.b16 %v1279, %v1278
  %v1302 = vpack.c.b16 %v1281, %v1280
  %v1303 = vpack.c.b16 %v1283, %v1282
  %v1304 = vpack.c.b16 %v1285, %v1284
  %v1305 = vpack.c.b16 %v1287, %v1286
  %v1306 = vpack.c.b16 %v1289, %v1288
  %v1307 = vpack.c.b16 %v1291, %v1290
  %1324 = vmatpush.bf16.msra.mxu0 %v1299
  %1325 = vmatpush.bf16.msra.mxu0 %v1298
  %1326 = vmatpush.bf16.msra.mxu0 %v1297
  %1327 = vmatpush.bf16.msra.mxu0 %v1296
  %1328 = vmatpush.bf16.msra.mxu0 %v1295
  %1329 = vmatpush.bf16.msra.mxu0 %v1294
  %1330 = vmatpush.bf16.msra.mxu0 %v1293
  %1331 = vmatpush.bf16.msra.mxu0 %v1292
  %1332 = vmatmul.bf16.gmra.mxu0 %v1214
  %v1333 = vpop.f32.mrf.mxu0
  %v1334 = vadd.f32 0.0, %v1333
  %v1335 = vpop.f32.mrf.mxu0
  %v1336 = vadd.f32 0.0, %v1335
  %1337 = vmatmul.bf16.gmra.mxu0 %v1220
  %v1338 = vpop.f32.mrf.mxu0
  %v1339 = vadd.f32 0.0, %v1338
  %v1340 = vpop.f32.mrf.mxu0
  %v1341 = vadd.f32 0.0, %v1340
  %1342 = vdwg.mxu0
  %1343 = vmatpush.bf16.msra.mxu0 %v1307
  %1344 = vmatpush.bf16.msra.mxu0 %v1306
  %1345 = vmatpush.bf16.msra.mxu0 %v1305
  %1346 = vmatpush.bf16.msra.mxu0 %v1304
  %1347 = vmatpush.bf16.msra.mxu0 %v1303
  %1348 = vmatpush.bf16.msra.mxu0 %v1302
  %1349 = vmatpush.bf16.msra.mxu0 %v1301
  %1350 = vmatpush.bf16.msra.mxu0 %v1300
  %1351 = vmatmul.bf16.gmra.mxu0 %v1217
  %v1352 = vpop.f32.mrf.mxu0
  %v1353 = vadd.f32 %v1334, %v1352
  %v1354 = vpop.f32.mrf.mxu0
  %v1355 = vadd.f32 %v1336, %v1354
  %1356 = vmatmul.bf16.gmra.mxu0 %v1223
  %v1357 = vpop.f32.mrf.mxu0
  %v1358 = vadd.f32 %v1339, %v1357
  %v1359 = vpop.f32.mrf.mxu0
  %v1360 = vadd.f32 %v1341, %v1359
  %1361 = vdwg.mxu0
  %v1362 = vadd.f32 %v1138, %v1353
  %v1363 = vadd.f32 %v1139, %v1355
  %v1364 = vadd.f32 %v1140, %v1358
  %v1365 = vadd.f32 %v1141, %v1360
  %v1366 = vsel %vm412, %v1142, %v417
  %v1367 = vsel %vm412, %v1143, %v417
  %1368 = vrot.lane.b32.xlu0 %v1366, 32
  %v1369 = vpop.permute.xlu0 %1368
  %1370 = vrot.lane.b32.xlu0 %v1367, 32
  %v1371 = vpop.permute.xlu0 %1370
  %v1372 = vsel %vm434, %v914, %v435
  %v1373 = vsel %vm434, %v916, %v435
  %1374 = vrot.lane.b32.xlu0 %v1372, 64
  %v1375 = vpop.permute.xlu0 %1374
  %1376 = vrot.lane.b32.xlu0 %v1373, 64
  %v1377 = vpop.permute.xlu0 %1376
  %v1378 = vsel %vm444, %v926, %v447
  %v1379 = vsel %vm444, %v932, %v447
  %1380 = vrot.lane.b32.xlu0 %v1378, 96
  %v1381 = vpop.permute.xlu0 %1380
  %1382 = vrot.lane.b32.xlu0 %v1379, 96
  %v1383 = vpop.permute.xlu0 %1382
  %v1384 = vsel %vm464, %v938, %v465
  %v1385 = vsel %vm464, %v940, %v465
  %v1386 = vsel %vm470, %v944, %v473
  %v1387 = vsel %vm470, %v948, %v473
  %1388 = vrot.lane.b32.xlu0 %v1386, 32
  %v1389 = vpop.permute.xlu0 %1388
  %1390 = vrot.lane.b32.xlu0 %v1387, 32
  %v1391 = vpop.permute.xlu0 %1390
  %v1392 = vsel %vm486, %v954, %v487
  %v1393 = vsel %vm486, %v956, %v487
  %1394 = vrot.lane.b32.xlu0 %v1392, 64
  %v1395 = vpop.permute.xlu0 %1394
  %1396 = vrot.lane.b32.xlu0 %v1393, 64
  %v1397 = vpop.permute.xlu0 %1396
  %v1398 = vsel %vm496, %v964, %v499
  %v1399 = vsel %vm496, %v968, %v499
  %1400 = vrot.lane.b32.xlu0 %v1398, 96
  %v1401 = vpop.permute.xlu0 %1400
  %1402 = vrot.lane.b32.xlu0 %v1399, 96
  %v1403 = vpop.permute.xlu0 %1402
  %v1405 = vsel %vm512, %v410, %v1369
  %v1407 = vsel %vm512, %v411, %v1371
  %v1409 = vsel %vm517, %v1405, %v1375
  %v1411 = vsel %vm517, %v1407, %v1377
  %v1413 = vsel %vm522, %v1409, %v1381
  %v1416 = vsel %vm522, %v1411, %v1383
  %v1420 = vsel %vm512, %v1384, %v1389
  %v1423 = vsel %vm512, %v1385, %v1391
  %v1425 = vsel %vm517, %v1420, %v1395
  %v1427 = vsel %vm517, %v1423, %v1397
  %v1429 = vsel %vm522, %v1425, %v1401
  %v1432 = vsel %vm522, %v1427, %v1403
  %v1466 = vunpack.c.l.b16 %v322
  %v1467 = vunpack.c.l.b16 %v323
  %v1468 = vunpack.c.l.b16 %v324
  %v1469 = vunpack.c.l.b16 %v325
  %v1470 = vunpack.c.l.b16 %v326
  %v1471 = vunpack.c.l.b16 %v327
  %v1472 = vunpack.c.l.b16 %v328
  %v1473 = vunpack.c.l.b16 %v329
  %v1474 = vunpack.c.l.b16 %v330
  %v1475 = vunpack.c.l.b16 %v331
  %v1476 = vunpack.c.l.b16 %v332
  %v1477 = vunpack.c.l.b16 %v333
  %v1478 = vunpack.c.l.b16 %v334
  %v1479 = vunpack.c.l.b16 %v335
  %v1480 = vunpack.c.l.b16 %v336
  %v1481 = vunpack.c.l.b16 %v337
  %v1482 = vunpack.c.l.b16 %v338
  %v1483 = vunpack.c.l.b16 %v339
  %v1484 = vunpack.c.l.b16 %v340
  %v1485 = vunpack.c.l.b16 %v341
  %v1486 = vunpack.c.l.b16 %v342
  %v1487 = vunpack.c.l.b16 %v343
  %v1488 = vunpack.c.l.b16 %v344
  %v1489 = vunpack.c.l.b16 %v345
  %v1490 = vunpack.c.l.b16 %v346
  %v1491 = vunpack.c.l.b16 %v347
  %v1492 = vunpack.c.l.b16 %v348
  %v1493 = vunpack.c.l.b16 %v349
  %v1494 = vunpack.c.l.b16 %v350
  %v1495 = vunpack.c.l.b16 %v351
  %v1496 = vunpack.c.l.b16 %v352
  %v1497 = vunpack.c.l.b16 %v353
  %v1498 = vpack.c.b16 %v1467, %v1466
  %v1499 = vpack.c.b16 %v1469, %v1468
  %v1500 = vpack.c.b16 %v1471, %v1470
  %v1501 = vpack.c.b16 %v1473, %v1472
  %v1502 = vpack.c.b16 %v1475, %v1474
  %v1503 = vpack.c.b16 %v1477, %v1476
  %v1504 = vpack.c.b16 %v1479, %v1478
  %v1505 = vpack.c.b16 %v1481, %v1480
  %v1506 = vpack.c.b16 %v1483, %v1482
  %v1507 = vpack.c.b16 %v1485, %v1484
  %v1508 = vpack.c.b16 %v1487, %v1486
  %v1509 = vpack.c.b16 %v1489, %v1488
  %v1510 = vpack.c.b16 %v1491, %v1490
  %v1511 = vpack.c.b16 %v1493, %v1492
  %v1512 = vpack.c.b16 %v1495, %v1494
  %v1513 = vpack.c.b16 %v1497, %v1496
  %1530 = vmatpush.bf16.msra.mxu0 %v1505
  %1531 = vmatpush.bf16.msra.mxu0 %v1504
  %1532 = vmatpush.bf16.msra.mxu0 %v1503
  %1533 = vmatpush.bf16.msra.mxu0 %v1502
  %1534 = vmatpush.bf16.msra.mxu0 %v1501
  %1535 = vmatpush.bf16.msra.mxu0 %v1500
  %1536 = vmatpush.bf16.msra.mxu0 %v1499
  %1537 = vmatpush.bf16.msra.mxu0 %v1498
  %1538 = vmatmul.bf16.gmra.mxu0 %v1413
  %v1539 = vpop.f32.mrf.mxu0
  %v1540 = vadd.f32 0.0, %v1539
  %v1541 = vpop.f32.mrf.mxu0
  %v1542 = vadd.f32 0.0, %v1541
  %1543 = vmatmul.bf16.gmra.mxu0 %v1416
  %v1544 = vpop.f32.mrf.mxu0
  %v1545 = vadd.f32 0.0, %v1544
  %v1546 = vpop.f32.mrf.mxu0
  %v1547 = vadd.f32 0.0, %v1546
  %1548 = vdwg.mxu0
  %1549 = vmatpush.bf16.msra.mxu0 %v1513
  %1550 = vmatpush.bf16.msra.mxu0 %v1512
  %1551 = vmatpush.bf16.msra.mxu0 %v1511
  %1552 = vmatpush.bf16.msra.mxu0 %v1510
  %1553 = vmatpush.bf16.msra.mxu0 %v1509
  %1554 = vmatpush.bf16.msra.mxu0 %v1508
  %1555 = vmatpush.bf16.msra.mxu0 %v1507
  %1556 = vmatpush.bf16.msra.mxu0 %v1506
  %1557 = vmatmul.bf16.gmra.mxu0 %v1429
  %v1558 = vpop.f32.mrf.mxu0
  %v1559 = vadd.f32 %v1540, %v1558
  %v1560 = vpop.f32.mrf.mxu0
  %v1561 = vadd.f32 %v1542, %v1560
  %1562 = vmatmul.bf16.gmra.mxu0 %v1432
  %v1563 = vpop.f32.mrf.mxu0
  %v1564 = vadd.f32 %v1545, %v1563
  %v1565 = vpop.f32.mrf.mxu0
  %v1566 = vadd.f32 %v1547, %v1565
  %1567 = vdwg.mxu0
  %v1568 = vadd.f32 %v1362, %v1559
  %v1569 = vadd.f32 %v1363, %v1561
  %v1570 = vadd.f32 %v1364, %v1564
  %v1571 = vadd.f32 %v1365, %v1566
  %1572 = vrot.lane.b32.xlu0 %v418, 32
  %v1573 = vpop.permute.xlu0 %1572
  %1574 = vrot.lane.b32.xlu0 %v435, 64
  %v1575 = vpop.permute.xlu0 %1574
  %1576 = vrot.lane.b32.xlu0 %v447, 96
  %v1577 = vpop.permute.xlu0 %1576
  %1578 = vrot.lane.b32.xlu0 %v473, 32
  %v1579 = vpop.permute.xlu0 %1578
  %1580 = vrot.lane.b32.xlu0 %v487, 64
  %v1581 = vpop.permute.xlu0 %1580
  %v1582 = vsel %vm496, %v962, %v499
  %v1583 = vsel %vm496, %v966, %v499
  %1584 = vrot.lane.b32.xlu0 %v1582, 96
  %v1585 = vpop.permute.xlu0 %1584
  %1586 = vrot.lane.b32.xlu0 %v499, 96
  %v1587 = vpop.permute.xlu0 %1586
  %1588 = vrot.lane.b32.xlu0 %v1583, 96
  %v1589 = vpop.permute.xlu0 %1588
  %v1591 = vsel %vm512, 0, %v1573
  %v1593 = vsel %vm517, %v1591, %v1575
  %v1595 = vsel %vm522, %v1593, %v1577
  %v1598 = vsel %vm512, %v465, %v1579
  %v1600 = vsel %vm517, %v1598, %v1581
  %v1602 = vsel %vm522, %v1425, %v1585
  %v1604 = vsel %vm522, %v1600, %v1587
  %v1606 = vsel %vm522, %v1427, %v1589
  %v1613 = vrot.slane %v1413, 4
  %v1614 = vrot.slane %v1595, 4
  %v1615 = vsel %vm615, %v1613, %v1614
  %v1616 = vrot.slane %v1602, 4
  %v1617 = vrot.slane %v1604, 4
  %v1618 = vsel %vm615, %v1616, %v1617
  %v1619 = vrot.slane %v1416, 4
  %v1620 = vsel %vm615, %v1619, %v1614
  %v1621 = vrot.slane %v1606, 4
  %v1622 = vsel %vm615, %v1621, %v1617
  %v1659 = vunpack.c.l.b16 %v354
  %v1660 = vunpack.c.l.b16 %v355
  %v1661 = vunpack.c.l.b16 %v356
  %v1662 = vunpack.c.l.b16 %v357
  %v1663 = vunpack.c.l.b16 %v358
  %v1664 = vunpack.c.l.b16 %v359
  %v1665 = vunpack.c.l.b16 %v360
  %v1666 = vunpack.c.l.b16 %v361
  %v1667 = vunpack.c.l.b16 %v362
  %v1668 = vunpack.c.l.b16 %v363
  %v1669 = vunpack.c.l.b16 %v364
  %v1670 = vunpack.c.l.b16 %v365
  %v1671 = vunpack.c.l.b16 %v366
  %v1672 = vunpack.c.l.b16 %v367
  %v1673 = vunpack.c.l.b16 %v368
  %v1674 = vunpack.c.l.b16 %v369
  %v1675 = vunpack.c.l.b16 %v370
  %v1676 = vunpack.c.l.b16 %v371
  %v1677 = vunpack.c.l.b16 %v372
  %v1678 = vunpack.c.l.b16 %v373
  %v1679 = vunpack.c.l.b16 %v374
  %v1680 = vunpack.c.l.b16 %v375
  %v1681 = vunpack.c.l.b16 %v376
  %v1682 = vunpack.c.l.b16 %v377
  %v1683 = vunpack.c.l.b16 %v378
  %v1684 = vunpack.c.l.b16 %v379
  %v1685 = vunpack.c.l.b16 %v380
  %v1686 = vunpack.c.l.b16 %v381
  %v1687 = vunpack.c.l.b16 %v382
  %v1688 = vunpack.c.l.b16 %v383
  %v1689 = vunpack.c.l.b16 %v384
  %v1690 = vunpack.c.l.b16 %v385
  %v1691 = vpack.c.b16 %v1660, %v1659
  %v1692 = vpack.c.b16 %v1662, %v1661
  %v1693 = vpack.c.b16 %v1664, %v1663
  %v1694 = vpack.c.b16 %v1666, %v1665
  %v1695 = vpack.c.b16 %v1668, %v1667
  %v1696 = vpack.c.b16 %v1670, %v1669
  %v1697 = vpack.c.b16 %v1672, %v1671
  %v1698 = vpack.c.b16 %v1674, %v1673
  %v1699 = vpack.c.b16 %v1676, %v1675
  %v1700 = vpack.c.b16 %v1678, %v1677
  %v1701 = vpack.c.b16 %v1680, %v1679
  %v1702 = vpack.c.b16 %v1682, %v1681
  %v1703 = vpack.c.b16 %v1684, %v1683
  %v1704 = vpack.c.b16 %v1686, %v1685
  %v1705 = vpack.c.b16 %v1688, %v1687
  %v1706 = vpack.c.b16 %v1690, %v1689
  %1723 = vmatpush.bf16.msra.mxu0 %v1698
  %1724 = vmatpush.bf16.msra.mxu0 %v1697
  %1725 = vmatpush.bf16.msra.mxu0 %v1696
  %1726 = vmatpush.bf16.msra.mxu0 %v1695
  %1727 = vmatpush.bf16.msra.mxu0 %v1694
  %1728 = vmatpush.bf16.msra.mxu0 %v1693
  %1729 = vmatpush.bf16.msra.mxu0 %v1692
  %1730 = vmatpush.bf16.msra.mxu0 %v1691
  %1731 = vmatmul.bf16.gmra.mxu0 %v1615
  %v1732 = vpop.f32.mrf.mxu0
  %v1733 = vadd.f32 0.0, %v1732
  %v1734 = vpop.f32.mrf.mxu0
  %v1735 = vadd.f32 0.0, %v1734
  %1736 = vmatmul.bf16.gmra.mxu0 %v1620
  %v1737 = vpop.f32.mrf.mxu0
  %v1738 = vadd.f32 0.0, %v1737
  %v1739 = vpop.f32.mrf.mxu0
  %v1740 = vadd.f32 0.0, %v1739
  %1741 = vdwg.mxu0
  %1742 = vmatpush.bf16.msra.mxu0 %v1706
  %1743 = vmatpush.bf16.msra.mxu0 %v1705
  %1744 = vmatpush.bf16.msra.mxu0 %v1704
  %1745 = vmatpush.bf16.msra.mxu0 %v1703
  %1746 = vmatpush.bf16.msra.mxu0 %v1702
  %1747 = vmatpush.bf16.msra.mxu0 %v1701
  %1748 = vmatpush.bf16.msra.mxu0 %v1700
  %1749 = vmatpush.bf16.msra.mxu0 %v1699
  %1750 = vmatmul.bf16.gmra.mxu0 %v1618
  %v1751 = vpop.f32.mrf.mxu0
  %v1752 = vadd.f32 %v1733, %v1751
  %v1753 = vpop.f32.mrf.mxu0
  %v1754 = vadd.f32 %v1735, %v1753
  %1755 = vmatmul.bf16.gmra.mxu0 %v1622
  %v1756 = vpop.f32.mrf.mxu0
  %v1757 = vadd.f32 %v1738, %v1756
  %v1758 = vpop.f32.mrf.mxu0
  %v1759 = vadd.f32 %v1740, %v1758
  %1760 = vdwg.mxu0
  %v1761 = vadd.f32 %v1568, %v1752
  %v1762 = vadd.f32 %v1569, %v1754
  %v1763 = vadd.f32 %v1570, %v1757
  %v1764 = vadd.f32 %v1571, %v1759
  %v1765 = vshrl.u32 %v77, 16
  %v1767 = vrot.slane %v1765, 7
  %v1768 = vshll.u32 %v77, 16
  %v1770 = vor.u32 %v1767, %v1768
  %v1771 = vshrl.u32 %v78, 16
  %v1773 = vrot.slane %v1771, 7
  %v1774 = vshll.u32 %v78, 16
  %v1776 = vor.u32 %v1773, %v1774
  %vm1781 = vcmask 1040384
  %vm1782 = vsmask.f32 256
  %vm1783 = vmand %vm1781, %vm1782
  %v1784 = vsel %vm1783, 4286644096, %v1770
  %v1785 = vsel %vm1783, 4286644096, %v1776
  %v1786 = vsel %vm1783, %v1767, 4286644096
  %v1787 = vsel %vm1783, %v1773, 4286644096
  %v1788 = vunpack.c.l.bf16 %v1784
  %v1789 = vunpack.c.h.bf16 %v1784
  %v1790 = vunpack.c.l.bf16 %v1785
  %v1791 = vunpack.c.h.bf16 %v1785
  %v1792 = vunpack.c.l.bf16 %v1786
  %v1793 = vunpack.c.l.bf16 %v1787
  %vm1800 = vcmask 1046528
  %v1801 = vrot.slane %v1788, 1
  %v1802 = vrot.slane %v1789, 1
  %v1803 = vsel %vm1800, %v1801, %v1802
  %v1804 = vrot.slane %v1792, 1
  %v1805 = vsel %vm1800, %v1802, %v1804
  %v1806 = vrot.slane %v1790, 1
  %v1807 = vrot.slane %v1791, 1
  %v1808 = vsel %vm1800, %v1806, %v1807
  %v1809 = vrot.slane %v1793, 1
  %v1810 = vsel %vm1800, %v1807, %v1809
  %v1815 = vmax.f32 %v1788, %v1803
  %v1816 = vmax.f32 %v1789, %v1805
  %v1817 = vmax.f32 %v1790, %v1808
  %v1818 = vmax.f32 %v1791, %v1810
  %v1819 = vpack.c.bf16 %v1815, %v1815
  %v1820 = vpack.c.bf16 %v1816, %v1816
  %v1821 = vpack.c.bf16 %v1817, %v1817
  %v1822 = vpack.c.bf16 %v1818, %v1818
  %v1823 = vunpack.c.l.bf16 %v1819
  %v1824 = vunpack.c.l.bf16 %v1820
  %v1825 = vunpack.c.l.bf16 %v1821
  %v1826 = vunpack.c.l.bf16 %v1822
  %vm1827 = vcmask 1045504
  %v1828 = vrot.slane %v1788, 2
  %v1829 = vrot.slane %v1789, 2
  %v1830 = vsel %vm1827, %v1828, %v1829
  %v1831 = vrot.slane %v1792, 2
  %v1832 = vsel %vm1827, %v1829, %v1831
  %v1833 = vrot.slane %v1790, 2
  %v1834 = vrot.slane %v1791, 2
  %v1835 = vsel %vm1827, %v1833, %v1834
  %v1836 = vrot.slane %v1793, 2
  %v1837 = vsel %vm1827, %v1834, %v1836
  %v1842 = vmax.f32 %v1823, %v1830
  %v1843 = vmax.f32 %v1824, %v1832
  %v1844 = vmax.f32 %v1825, %v1835
  %v1845 = vmax.f32 %v1826, %v1837
  %v1846 = vpack.c.bf16 %v1842, %v1842
  %v1847 = vpack.c.bf16 %v1843, %v1843
  %v1848 = vpack.c.bf16 %v1844, %v1844
  %v1849 = vpack.c.bf16 %v1845, %v1845
  %v1854 = vunpack.c.l.b16 %v1846
  %v1855 = vunpack.c.l.b16 %v1847
  %v1856 = vunpack.c.l.b16 %v1848
  %v1857 = vunpack.c.l.b16 %v1849
  %v1858 = vpack.c.b16 %v1855, %v1854
  %v1859 = vpack.c.b16 %v1857, %v1856
  %v1861 = vsel %vm79, %v1858, 0
  %v1864 = vsel %vm79, %v1859, 0
  %v1867 = vsel %vm86, %v386, 0
  %1869 = vmatpush.bf16.msra.mxu0 0
  %1870 = vmatpush.bf16.msra.mxu0 0
  %1871 = vmatpush.bf16.msra.mxu0 0
  %1872 = vmatpush.bf16.msra.mxu0 0
  %1873 = vmatpush.bf16.msra.mxu0 0
  %1874 = vmatpush.bf16.msra.mxu0 0
  %1875 = vmatpush.bf16.msra.mxu0 0
  %1876 = vmatpush.bf16.msra.mxu0 %v1867
  %1877 = vmatmul.bf16.gmra.mxu0 %v1861
  %v1878 = vpop.f32.mrf.mxu0
  %v1879 = vadd.f32 0.0, %v1878
  %v1880 = vpop.f32.mrf.mxu0
  %v1881 = vadd.f32 0.0, %v1880
  %1882 = vmatmul.bf16.gmra.mxu0 %v1864
  %v1883 = vpop.f32.mrf.mxu0
  %v1884 = vadd.f32 0.0, %v1883
  %v1885 = vpop.f32.mrf.mxu0
  %v1886 = vadd.f32 0.0, %v1885
  %1887 = vdwg.mxu0
  %1892 = vrot.lane.b32.xlu0 %v1879, 24
  %v1893 = vpop.permute.xlu0 %1892
  %1894 = vrot.lane.b32.xlu0 %v1881, 24
  %v1895 = vpop.permute.xlu0 %1894
  %1896 = vrot.lane.b32.xlu0 %v1884, 24
  %v1897 = vpop.permute.xlu0 %1896
  %1898 = vrot.lane.b32.xlu0 %v1886, 24
  %v1899 = vpop.permute.xlu0 %1898
  %vm1904 = vcmask 195584
  %v1905 = vsel %vm1904, %v1761, %v1893
  %v1906 = vsel %vm1904, %v1762, %v1895
  %v1907 = vsel %vm1904, %v1763, %v1897
  %v1908 = vsel %vm1904, %v1764, %v1899
  %v1909 = vsel %vm512, %v1905, 0.0
  %v1910 = vsel %vm512, %v1906, 0.0
  %v1911 = vadd.f32 %v1909, %v1910
  %v1912 = vsel %vm512, %v1907, 0.0
  %v1913 = vadd.f32 %v1911, %v1912
  %v1914 = vsel %vm512, %v1908, 0.0
  %v1915 = vadd.f32 %v1913, %v1914
  %v1916 = vrot.slane %v1915, 4
  %v1917 = vadd.f32 %v1915, %v1916
  %v1918 = vrot.slane %v1917, 2
  %v1919 = vadd.f32 %v1917, %v1918
  %v1920 = vrot.slane %v1919, 1
  %v1921 = vadd.f32 %v1919, %v1920
  %v1922 = vmul.f32 %v1905, %v1905
  %v1923 = vmul.f32 %v1906, %v1906
  %v1924 = vmul.f32 %v1907, %v1907
  %v1925 = vmul.f32 %v1908, %v1908
  %v1926 = vsel %vm512, %v1922, 0.0
  %v1927 = vsel %vm512, %v1923, 0.0
  %v1928 = vadd.f32 %v1926, %v1927
  %v1929 = vsel %vm512, %v1924, 0.0
  %v1930 = vadd.f32 %v1928, %v1929
  %v1931 = vsel %vm512, %v1925, 0.0
  %v1932 = vadd.f32 %v1930, %v1931
  %v1933 = vrot.slane %v1932, 4
  %v1934 = vadd.f32 %v1932, %v1933
  %v1935 = vrot.slane %v1934, 2
  %v1936 = vadd.f32 %v1934, %v1935
  %v1937 = vrot.slane %v1936, 1
  %v1938 = vadd.f32 %v1936, %v1937
  %v1939 = vmul.f32 %v1921, 0.03125
  %v1940 = vmul.f32 %v1938, 0.03125
  %v1941 = vmul.f32 %v1939, %v1939
  %v1942 = vsub.f32 %v1940, %v1941
  %v1943 = vmax.f32 %v1942, 0.0
  %v1944 = vsub.f32 %v1905, %v1939
  %v1945 = vsub.f32 %v1906, %v1939
  %v1946 = vsub.f32 %v1907, %v1939
  %v1947 = vsub.f32 %v1908, %v1939
  %v1948 = vadd.f32 %v1943, 1e-05
  %v1949 = vrsqrt.pop %v1948
  %v1950 = vmul.f32 %v1949, %v1948
  %v1951 = vmul.f32 %v1950, %v1949
  %v1952 = vmul.f32 0.5, %v1951
  %v1953 = vsub.f32 1.5, %v1952
  %v1954 = vmul.f32 %v1949, %v1953
  %vm1955 = vweird.f32 %v1948
  %vm1956 = vweird.f32 %v1949
  %vm1957 = vmor %vm1955, %vm1956
  %v1958 = vsel %vm1957, %v1949, %v1954
  %v1959 = vmul.f32 %v1944, %v1958
  %v1960 = vmul.f32 %v1945, %v1958
  %v1961 = vmul.f32 %v1946, %v1958
  %v1962 = vmul.f32 %v1947, %v1958
  %v1964 = vperm.slane %v387, 0
  %v1966 = vmul.f32 %v1959, %v1964
  %v1967 = vmul.f32 %v1960, %v1964
  %v1968 = vmul.f32 %v1961, %v1964
  %v1969 = vmul.f32 %v1962, %v1964
  %v1971 = vperm.slane %v388, 0
  %v1973 = vadd.f32 %v1966, %v1971
  %v1974 = vadd.f32 %v1967, %v1971
  %v1975 = vadd.f32 %v1968, %v1971
  %v1976 = vadd.f32 %v1969, %v1971
  %v1977 = vmax.f32 %v1973, 0.0
  %v1978 = vmax.f32 %v1974, 0.0
  %v1979 = vmax.f32 %v1975, 0.0
  %v1980 = vmax.f32 %v1976, 0.0
  %v1981 = vpack.c.bf16 %v1977, %v1977
  %v1982 = vpack.c.bf16 %v1978, %v1978
  %v1983 = vpack.c.bf16 %v1979, %v1979
  %v1984 = vpack.c.bf16 %v1980, %v1980
  %v1985 = vld [vmem:[%s9] sm:$0xf]
  %v1986 = vld [vmem:[%s9 + $0x4] sm:$0xf]
  %v1987 = vld [vmem:[%s9 + $0x8] sm:$0xf]
  %v1988 = vld [vmem:[%s9 + $0xc] sm:$0xf]
  %v1993 = vunpack.c.l.b16 %v1981
  %v1994 = vunpack.c.l.b16 %v1982
  %v1995 = vunpack.c.l.b16 %v1983
  %v1996 = vunpack.c.l.b16 %v1984
  %v1997 = vpack.c.b16 %v1994, %v1993
  %v1998 = vpack.c.b16 %v1996, %v1995
  %v2003 = vunpack.c.l.b16 %v1985
  %v2004 = vunpack.c.l.b16 %v1986
  %v2005 = vunpack.c.l.b16 %v1987
  %v2006 = vunpack.c.l.b16 %v1988
  %v2007 = vpack.c.b16 %v2004, %v2003
  %v2008 = vpack.c.b16 %v2006, %v2005
  %v2012 = vsel %vm512, %v1997, 0
  %v2015 = vsel %vm512, %v1998, 0
  %2017 = vmatpush.bf16.msra.mxu0 0
  %2018 = vmatpush.bf16.msra.mxu0 0
  %2019 = vmatpush.bf16.msra.mxu0 0
  %2020 = vmatpush.bf16.msra.mxu0 0
  %2021 = vmatpush.bf16.msra.mxu0 0
  %2022 = vmatpush.bf16.msra.mxu0 0
  %2023 = vmatpush.bf16.msra.mxu0 %v2008
  %2024 = vmatpush.bf16.msra.mxu0 %v2007
  %2025 = vmatmul.bf16.gmra.mxu0 %v2012
  %v2026 = vpop.f32.mrf.mxu0
  %v2027 = vadd.f32 0.0, %v2026
  %v2028 = vpop.f32.mrf.mxu0
  %v2029 = vadd.f32 0.0, %v2028
  %2030 = vmatmul.bf16.gmra.mxu0 %v2015
  %v2031 = vpop.f32.mrf.mxu0
  %v2032 = vadd.f32 0.0, %v2031
  %v2033 = vpop.f32.mrf.mxu0
  %v2034 = vadd.f32 0.0, %v2033
  %2035 = vdwg.mxu0
  %v2036 = vld [vmem:[%s10] sm:$0xf]
  %v2037 = vld [vmem:[%s10 + $0x4] sm:$0xf]
  %v2038 = vld [vmem:[%s10 + $0x8] sm:$0xf]
  %v2039 = vld [vmem:[%s10 + $0xc] sm:$0xf]
  %v2040 = vld [vmem:[%s10 + $0x10] sm:$0xf]
  %v2041 = vld [vmem:[%s10 + $0x14] sm:$0xf]
  %v2042 = vld [vmem:[%s10 + $0x18] sm:$0xf]
  %v2043 = vld [vmem:[%s10 + $0x1c] sm:$0xf]
  %v2044 = vld [vmem:[%s10 + $0x20] sm:$0xf]
  %v2045 = vld [vmem:[%s10 + $0x24] sm:$0xf]
  %v2046 = vld [vmem:[%s10 + $0x28] sm:$0xf]
  %v2047 = vld [vmem:[%s10 + $0x2c] sm:$0xf]
  %v2048 = vld [vmem:[%s10 + $0x30] sm:$0xf]
  %v2049 = vld [vmem:[%s10 + $0x34] sm:$0xf]
  %v2050 = vld [vmem:[%s10 + $0x38] sm:$0xf]
  %v2051 = vld [vmem:[%s10 + $0x3c] sm:$0xf]
  %v2052 = vld [vmem:[%s10 + $0x40] sm:$0xf]
  %v2053 = vld [vmem:[%s10 + $0x44] sm:$0xf]
  %v2054 = vld [vmem:[%s10 + $0x48] sm:$0xf]
  %v2055 = vld [vmem:[%s10 + $0x4c] sm:$0xf]
  %v2056 = vld [vmem:[%s10 + $0x50] sm:$0xf]
  %v2057 = vld [vmem:[%s10 + $0x54] sm:$0xf]
  %v2058 = vld [vmem:[%s10 + $0x58] sm:$0xf]
  %v2059 = vld [vmem:[%s10 + $0x5c] sm:$0xf]
  %v2060 = vld [vmem:[%s10 + $0x60] sm:$0xf]
  %v2061 = vld [vmem:[%s10 + $0x64] sm:$0xf]
  %v2062 = vld [vmem:[%s10 + $0x68] sm:$0xf]
  %v2063 = vld [vmem:[%s10 + $0x6c] sm:$0xf]
  %v2064 = vld [vmem:[%s10 + $0x70] sm:$0xf]
  %v2065 = vld [vmem:[%s10 + $0x74] sm:$0xf]
  %v2066 = vld [vmem:[%s10 + $0x78] sm:$0xf]
  %v2067 = vld [vmem:[%s10 + $0x7c] sm:$0xf]
  %v2068 = vld [vmem:[%s10 + $0x80] sm:$0xf]
  %v2069 = vld [vmem:[%s10 + $0x84] sm:$0xf]
  %v2070 = vld [vmem:[%s10 + $0x88] sm:$0xf]
  %v2071 = vld [vmem:[%s10 + $0x8c] sm:$0xf]
  %v2072 = vld [vmem:[%s10 + $0x90] sm:$0xf]
  %v2073 = vld [vmem:[%s10 + $0x94] sm:$0xf]
  %v2074 = vld [vmem:[%s10 + $0x98] sm:$0xf]
  %v2075 = vld [vmem:[%s10 + $0x9c] sm:$0xf]
  %v2076 = vld [vmem:[%s10 + $0xa0] sm:$0xf]
  %v2077 = vld [vmem:[%s10 + $0xa4] sm:$0xf]
  %v2078 = vld [vmem:[%s10 + $0xa8] sm:$0xf]
  %v2079 = vld [vmem:[%s10 + $0xac] sm:$0xf]
  %v2080 = vld [vmem:[%s10 + $0xb0] sm:$0xf]
  %v2081 = vld [vmem:[%s10 + $0xb4] sm:$0xf]
  %v2082 = vld [vmem:[%s10 + $0xb8] sm:$0xf]
  %v2083 = vld [vmem:[%s10 + $0xbc] sm:$0xf]
  %v2084 = vld [vmem:[%s10 + $0xc0] sm:$0xf]
  %v2085 = vld [vmem:[%s10 + $0xc4] sm:$0xf]
  %v2086 = vld [vmem:[%s10 + $0xc8] sm:$0xf]
  %v2087 = vld [vmem:[%s10 + $0xcc] sm:$0xf]
  %v2088 = vld [vmem:[%s10 + $0xd0] sm:$0xf]
  %v2089 = vld [vmem:[%s10 + $0xd4] sm:$0xf]
  %v2090 = vld [vmem:[%s10 + $0xd8] sm:$0xf]
  %v2091 = vld [vmem:[%s10 + $0xdc] sm:$0xf]
  %v2092 = vld [vmem:[%s10 + $0xe0] sm:$0xf]
  %v2093 = vld [vmem:[%s10 + $0xe4] sm:$0xf]
  %v2094 = vld [vmem:[%s10 + $0xe8] sm:$0xf]
  %v2095 = vld [vmem:[%s10 + $0xec] sm:$0xf]
  %v2096 = vld [vmem:[%s10 + $0xf0] sm:$0xf]
  %v2097 = vld [vmem:[%s10 + $0xf4] sm:$0xf]
  %v2098 = vld [vmem:[%s10 + $0xf8] sm:$0xf]
  %v2099 = vld [vmem:[%s10 + $0xfc] sm:$0xf]
  %v2100 = vld [vmem:[%s10 + $0x100] sm:$0xf]
  %v2101 = vld [vmem:[%s10 + $0x104] sm:$0xf]
  %v2102 = vld [vmem:[%s10 + $0x108] sm:$0xf]
  %v2103 = vld [vmem:[%s10 + $0x10c] sm:$0xf]
  %v2104 = vld [vmem:[%s10 + $0x110] sm:$0xf]
  %v2105 = vld [vmem:[%s10 + $0x114] sm:$0xf]
  %v2106 = vld [vmem:[%s10 + $0x118] sm:$0xf]
  %v2107 = vld [vmem:[%s10 + $0x11c] sm:$0xf]
  %v2108 = vld [vmem:[%s10 + $0x120] sm:$0xf]
  %v2109 = vld [vmem:[%s10 + $0x124] sm:$0xf]
  %v2110 = vld [vmem:[%s10 + $0x128] sm:$0xf]
  %v2111 = vld [vmem:[%s10 + $0x12c] sm:$0xf]
  %v2112 = vld [vmem:[%s10 + $0x130] sm:$0xf]
  %v2113 = vld [vmem:[%s10 + $0x134] sm:$0xf]
  %v2114 = vld [vmem:[%s10 + $0x138] sm:$0xf]
  %v2115 = vld [vmem:[%s10 + $0x13c] sm:$0xf]
  %v2116 = vld [vmem:[%s10 + $0x140] sm:$0xf]
  %v2117 = vld [vmem:[%s10 + $0x144] sm:$0xf]
  %v2118 = vld [vmem:[%s10 + $0x148] sm:$0xf]
  %v2119 = vld [vmem:[%s10 + $0x14c] sm:$0xf]
  %v2120 = vld [vmem:[%s10 + $0x150] sm:$0xf]
  %v2121 = vld [vmem:[%s10 + $0x154] sm:$0xf]
  %v2122 = vld [vmem:[%s10 + $0x158] sm:$0xf]
  %v2123 = vld [vmem:[%s10 + $0x15c] sm:$0xf]
  %v2124 = vld [vmem:[%s10 + $0x160] sm:$0xf]
  %v2125 = vld [vmem:[%s10 + $0x164] sm:$0xf]
  %v2126 = vld [vmem:[%s10 + $0x168] sm:$0xf]
  %v2127 = vld [vmem:[%s10 + $0x16c] sm:$0xf]
  %v2128 = vld [vmem:[%s10 + $0x170] sm:$0xf]
  %v2129 = vld [vmem:[%s10 + $0x174] sm:$0xf]
  %v2130 = vld [vmem:[%s10 + $0x178] sm:$0xf]
  %v2131 = vld [vmem:[%s10 + $0x17c] sm:$0xf]
  %v2132 = vld [vmem:[%s10 + $0x180] sm:$0xf]
  %v2133 = vld [vmem:[%s10 + $0x184] sm:$0xf]
  %v2134 = vld [vmem:[%s10 + $0x188] sm:$0xf]
  %v2135 = vld [vmem:[%s10 + $0x18c] sm:$0xf]
  %v2136 = vld [vmem:[%s10 + $0x190] sm:$0xf]
  %v2137 = vld [vmem:[%s10 + $0x194] sm:$0xf]
  %v2138 = vld [vmem:[%s10 + $0x198] sm:$0xf]
  %v2139 = vld [vmem:[%s10 + $0x19c] sm:$0xf]
  %v2140 = vld [vmem:[%s10 + $0x1a0] sm:$0xf]
  %v2141 = vld [vmem:[%s10 + $0x1a4] sm:$0xf]
  %v2142 = vld [vmem:[%s10 + $0x1a8] sm:$0xf]
  %v2143 = vld [vmem:[%s10 + $0x1ac] sm:$0xf]
  %v2144 = vld [vmem:[%s10 + $0x1b0] sm:$0xf]
  %v2145 = vld [vmem:[%s10 + $0x1b4] sm:$0xf]
  %v2146 = vld [vmem:[%s10 + $0x1b8] sm:$0xf]
  %v2147 = vld [vmem:[%s10 + $0x1bc] sm:$0xf]
  %v2148 = vld [vmem:[%s10 + $0x1c0] sm:$0xf]
  %v2149 = vld [vmem:[%s10 + $0x1c4] sm:$0xf]
  %v2150 = vld [vmem:[%s10 + $0x1c8] sm:$0xf]
  %v2151 = vld [vmem:[%s10 + $0x1cc] sm:$0xf]
  %v2152 = vld [vmem:[%s10 + $0x1d0] sm:$0xf]
  %v2153 = vld [vmem:[%s10 + $0x1d4] sm:$0xf]
  %v2154 = vld [vmem:[%s10 + $0x1d8] sm:$0xf]
  %v2155 = vld [vmem:[%s10 + $0x1dc] sm:$0xf]
  %v2156 = vld [vmem:[%s10 + $0x1e0] sm:$0xf]
  %v2157 = vld [vmem:[%s10 + $0x1e4] sm:$0xf]
  %v2158 = vld [vmem:[%s10 + $0x1e8] sm:$0xf]
  %v2159 = vld [vmem:[%s10 + $0x1ec] sm:$0xf]
  %v2160 = vld [vmem:[%s10 + $0x1f0] sm:$0xf]
  %v2161 = vld [vmem:[%s10 + $0x1f4] sm:$0xf]
  %v2162 = vld [vmem:[%s10 + $0x1f8] sm:$0xf]
  %v2163 = vld [vmem:[%s10 + $0x1fc] sm:$0xf]
  %v2164 = vld [vmem:[%s10 + $0x200] sm:$0xf]
  %v2165 = vld [vmem:[%s10 + $0x204] sm:$0xf]
  %v2166 = vld [vmem:[%s10 + $0x208] sm:$0xf]
  %v2167 = vld [vmem:[%s10 + $0x20c] sm:$0xf]
  %v2168 = vld [vmem:[%s10 + $0x210] sm:$0xf]
  %v2169 = vld [vmem:[%s10 + $0x214] sm:$0xf]
  %v2170 = vld [vmem:[%s10 + $0x218] sm:$0xf]
  %v2171 = vld [vmem:[%s10 + $0x21c] sm:$0xf]
  %v2172 = vld [vmem:[%s10 + $0x220] sm:$0xf]
  %v2173 = vld [vmem:[%s10 + $0x224] sm:$0xf]
  %v2174 = vld [vmem:[%s10 + $0x228] sm:$0xf]
  %v2175 = vld [vmem:[%s10 + $0x22c] sm:$0xf]
  %v2176 = vld [vmem:[%s10 + $0x230] sm:$0xf]
  %v2177 = vld [vmem:[%s10 + $0x234] sm:$0xf]
  %v2178 = vld [vmem:[%s10 + $0x238] sm:$0xf]
  %v2179 = vld [vmem:[%s10 + $0x23c] sm:$0xf]
  %v2180 = vld [vmem:[%s10 + $0x240] sm:$0xf]
  %v2181 = vld [vmem:[%s10 + $0x244] sm:$0xf]
  %v2182 = vld [vmem:[%s10 + $0x248] sm:$0xf]
  %v2183 = vld [vmem:[%s10 + $0x24c] sm:$0xf]
  %v2184 = vld [vmem:[%s10 + $0x250] sm:$0xf]
  %v2185 = vld [vmem:[%s10 + $0x254] sm:$0xf]
  %v2186 = vld [vmem:[%s10 + $0x258] sm:$0xf]
  %v2187 = vld [vmem:[%s10 + $0x25c] sm:$0xf]
  %v2188 = vld [vmem:[%s10 + $0x260] sm:$0xf]
  %v2189 = vld [vmem:[%s10 + $0x264] sm:$0xf]
  %v2190 = vld [vmem:[%s10 + $0x268] sm:$0xf]
  %v2191 = vld [vmem:[%s10 + $0x26c] sm:$0xf]
  %v2192 = vld [vmem:[%s10 + $0x270] sm:$0xf]
  %v2193 = vld [vmem:[%s10 + $0x274] sm:$0xf]
  %v2194 = vld [vmem:[%s10 + $0x278] sm:$0xf]
  %v2195 = vld [vmem:[%s10 + $0x27c] sm:$0xf]
  %v2196 = vld [vmem:[%s10 + $0x280] sm:$0xf]
  %v2197 = vld [vmem:[%s10 + $0x284] sm:$0xf]
  %v2198 = vld [vmem:[%s10 + $0x288] sm:$0xf]
  %v2199 = vld [vmem:[%s10 + $0x28c] sm:$0xf]
  %v2200 = vld [vmem:[%s10 + $0x290] sm:$0xf]
  %v2201 = vld [vmem:[%s10 + $0x294] sm:$0xf]
  %v2202 = vld [vmem:[%s10 + $0x298] sm:$0xf]
  %v2203 = vld [vmem:[%s10 + $0x29c] sm:$0xf]
  %v2204 = vld [vmem:[%s10 + $0x2a0] sm:$0xf]
  %v2205 = vld [vmem:[%s10 + $0x2a4] sm:$0xf]
  %v2206 = vld [vmem:[%s10 + $0x2a8] sm:$0xf]
  %v2207 = vld [vmem:[%s10 + $0x2ac] sm:$0xf]
  %v2208 = vld [vmem:[%s10 + $0x2b0] sm:$0xf]
  %v2209 = vld [vmem:[%s10 + $0x2b4] sm:$0xf]
  %v2210 = vld [vmem:[%s10 + $0x2b8] sm:$0xf]
  %v2211 = vld [vmem:[%s10 + $0x2bc] sm:$0xf]
  %v2212 = vld [vmem:[%s10 + $0x2c0] sm:$0xf]
  %v2213 = vld [vmem:[%s10 + $0x2c4] sm:$0xf]
  %v2214 = vld [vmem:[%s10 + $0x2c8] sm:$0xf]
  %v2215 = vld [vmem:[%s10 + $0x2cc] sm:$0xf]
  %v2216 = vld [vmem:[%s10 + $0x2d0] sm:$0xf]
  %v2217 = vld [vmem:[%s10 + $0x2d4] sm:$0xf]
  %v2218 = vld [vmem:[%s10 + $0x2d8] sm:$0xf]
  %v2219 = vld [vmem:[%s10 + $0x2dc] sm:$0xf]
  %v2220 = vld [vmem:[%s10 + $0x2e0] sm:$0xf]
  %v2221 = vld [vmem:[%s10 + $0x2e4] sm:$0xf]
  %v2222 = vld [vmem:[%s10 + $0x2e8] sm:$0xf]
  %v2223 = vld [vmem:[%s10 + $0x2ec] sm:$0xf]
  %v2224 = vld [vmem:[%s10 + $0x2f0] sm:$0xf]
  %v2225 = vld [vmem:[%s10 + $0x2f4] sm:$0xf]
  %v2226 = vld [vmem:[%s10 + $0x2f8] sm:$0xf]
  %v2227 = vld [vmem:[%s10 + $0x2fc] sm:$0xf]
  %v2228 = vld [vmem:[%s11] sm:$0xf]
  %v2229 = vld [vmem:[%s11 + $0x4] sm:$0xf]
  %v2230 = vld [vmem:[%s11 + $0x8] sm:$0xf]
  %v2231 = vld [vmem:[%s11 + $0xc] sm:$0xf]
  %v2232 = vld [vmem:[%s12] sm:$0x1]
  %v2233 = vld [vmem:[%s13] sm:$0x1]
  %v2234 = vpack.c.bf16 %v2027, %v2027
  %v2235 = vpack.c.bf16 %v2029, %v2029
  %v2236 = vpack.c.bf16 %v2032, %v2032
  %v2237 = vpack.c.bf16 %v2034, %v2034
  %v2242 = vunpack.c.l.b16 %v2234
  %v2243 = vunpack.c.l.b16 %v2235
  %v2244 = vunpack.c.l.b16 %v2236
  %v2245 = vunpack.c.l.b16 %v2237
  %v2246 = vpack.c.b16 %v2243, %v2242
  %v2247 = vpack.c.b16 %v2245, %v2244
  %v2248 = vrot.slane %v2246, 6
  %v2249 = vrot.slane %v2247, 6
  %v2251 = vsel %vm86, 0, %v2248
  %v2253 = vsel %vm86, 0, %v2249
  %v2254 = vsel %vm86, %v2248, 0
  %v2255 = vsel %vm86, %v2249, 0
  %v2256 = vshll.u32 %v2251, 16
  %v2258 = vrot.slane %v2256, 1
  %v2259 = vsel %vm412, %v418, %v2258
  %v2260 = vshll.u32 %v2253, 16
  %v2262 = vrot.slane %v2260, 1
  %v2263 = vsel %vm412, %v418, %v2262
  %2264 = vrot.lane.b32.xlu0 %v2259, 32
  %v2265 = vpop.permute.xlu0 %2264
  %2266 = vrot.lane.b32.xlu0 %v2263, 32
  %v2267 = vpop.permute.xlu0 %2266
  %v2270 = vrot.slane %v2251, 1
  %v2271 = vsel %vm434, %v435, %v2270
  %v2272 = vrot.slane %v2253, 1
  %v2273 = vsel %vm434, %v435, %v2272
  %2274 = vrot.lane.b32.xlu0 %v2271, 64
  %v2275 = vpop.permute.xlu0 %2274
  %2276 = vrot.lane.b32.xlu0 %v2273, 64
  %v2277 = vpop.permute.xlu0 %2276
  %v2278 = vshrl.u32 %v2251, 16
  %v2280 = vrot.slane %v2278, 1
  %v2281 = vrot.slane %v2256, 2
  %v2282 = vor.u32 %v2280, %v2281
  %v2283 = vsel %vm444, %v447, %v2282
  %v2284 = vshrl.u32 %v2253, 16
  %v2286 = vrot.slane %v2284, 1
  %v2287 = vrot.slane %v2260, 2
  %v2288 = vor.u32 %v2286, %v2287
  %v2289 = vsel %vm444, %v447, %v2288
  %2290 = vrot.lane.b32.xlu0 %v2283, 96
  %v2291 = vpop.permute.xlu0 %2290
  %2292 = vrot.lane.b32.xlu0 %v2289, 96
  %v2293 = vpop.permute.xlu0 %2292
  %v2294 = vrot.slane %v2251, 2
  %v2295 = vsel %vm464, %v465, %v2294
  %v2296 = vrot.slane %v2253, 2
  %v2297 = vsel %vm464, %v465, %v2296
  %v2298 = vrot.slane %v2278, 2
  %v2299 = vrot.slane %v2256, 3
  %v2300 = vor.u32 %v2298, %v2299
  %v2301 = vsel %vm470, %v473, %v2300
  %v2302 = vrot.slane %v2284, 2
  %v2303 = vrot.slane %v2260, 3
  %v2304 = vor.u32 %v2302, %v2303
  %v2305 = vsel %vm470, %v473, %v2304
  %2306 = vrot.lane.b32.xlu0 %v2301, 32
  %v2307 = vpop.permute.xlu0 %2306
  %2308 = vrot.lane.b32.xlu0 %v2305, 32
  %v2309 = vpop.permute.xlu0 %2308
  %v2310 = vrot.slane %v2251, 3
  %v2311 = vsel %vm486, %v487, %v2310
  %v2312 = vrot.slane %v2253, 3
  %v2313 = vsel %vm486, %v487, %v2312
  %2314 = vrot.lane.b32.xlu0 %v2311, 64
  %v2315 = vpop.permute.xlu0 %2314
  %2316 = vrot.lane.b32.xlu0 %v2313, 64
  %v2317 = vpop.permute.xlu0 %2316
  %v2318 = vrot.slane %v2278, 3
  %v2319 = vrot.slane %v2256, 4
  %v2320 = vor.u32 %v2318, %v2319
  %v2321 = vsel %vm496, %v499, %v2320
  %v2322 = vrot.slane %v2284, 3
  %v2323 = vrot.slane %v2260, 4
  %v2324 = vor.u32 %v2322, %v2323
  %v2325 = vsel %vm496, %v499, %v2324
  %2326 = vrot.lane.b32.xlu0 %v2321, 96
  %v2327 = vpop.permute.xlu0 %2326
  %2328 = vrot.lane.b32.xlu0 %v2325, 96
  %v2329 = vpop.permute.xlu0 %2328
  %v2331 = vsel %vm512, 0, %v2265
  %v2333 = vsel %vm512, 0, %v2267
  %v2335 = vsel %vm517, %v2331, %v2275
  %v2337 = vsel %vm517, %v2333, %v2277
  %v2339 = vsel %vm522, %v2335, %v2291
  %v2342 = vsel %vm522, %v2337, %v2293
  %v2346 = vsel %vm512, %v2295, %v2307
  %v2349 = vsel %vm512, %v2297, %v2309
  %v2351 = vsel %vm517, %v2346, %v2315
  %v2353 = vsel %vm517, %v2349, %v2317
  %v2355 = vsel %vm522, %v2351, %v2327
  %v2358 = vsel %vm522, %v2353, %v2329
  %v2360 = vor.u32 %v2278, %v2258
  %v2361 = vor.u32 %v2284, %v2262
  %2362 = vrot.lane.b32.xlu0 %v2360, 32
  %v2363 = vpop.permute.xlu0 %2362
  %2364 = vrot.lane.b32.xlu0 %v2361, 32
  %v2365 = vpop.permute.xlu0 %2364
  %2366 = vrot.lane.b32.xlu0 %v2270, 64
  %v2367 = vpop.permute.xlu0 %2366
  %2368 = vrot.lane.b32.xlu0 %v2272, 64
  %v2369 = vpop.permute.xlu0 %2368
  %2370 = vrot.lane.b32.xlu0 %v2282, 96
  %v2371 = vpop.permute.xlu0 %2370
  %2372 = vrot.lane.b32.xlu0 %v2288, 96
  %v2373 = vpop.permute.xlu0 %2372
  %2374 = vrot.lane.b32.xlu0 %v2300, 32
  %v2375 = vpop.permute.xlu0 %2374
  %2376 = vrot.lane.b32.xlu0 %v2304, 32
  %v2377 = vpop.permute.xlu0 %2376
  %2378 = vrot.lane.b32.xlu0 %v2310, 64
  %v2379 = vpop.permute.xlu0 %2378
  %2380 = vrot.lane.b32.xlu0 %v2312, 64
  %v2381 = vpop.permute.xlu0 %2380
  %v2382 = vsel %vm496, %v497, %v2320
  %v2383 = vsel %vm496, %v497, %v2324
  %2384 = vrot.lane.b32.xlu0 %v2382, 96
  %v2385 = vpop.permute.xlu0 %2384
  %2386 = vrot.lane.b32.xlu0 %v2320, 96
  %v2387 = vpop.permute.xlu0 %2386
  %2388 = vrot.lane.b32.xlu0 %v2383, 96
  %v2389 = vpop.permute.xlu0 %2388
  %2390 = vrot.lane.b32.xlu0 %v2324, 96
  %v2391 = vpop.permute.xlu0 %2390
  %v2393 = vsel %vm512, %v2251, %v2363
  %v2395 = vsel %vm512, %v2253, %v2365
  %v2397 = vsel %vm517, %v2393, %v2367
  %v2399 = vsel %vm517, %v2395, %v2369
  %v2401 = vsel %vm522, %v2397, %v2371
  %v2403 = vsel %vm522, %v2399, %v2373
  %v2406 = vsel %vm512, %v2294, %v2375
  %v2409 = vsel %vm512, %v2296, %v2377
  %v2411 = vsel %vm517, %v2406, %v2379
  %v2413 = vsel %vm517, %v2409, %v2381
  %v2415 = vsel %vm522, %v2351, %v2385
  %v2417 = vsel %vm522, %v2411, %v2387
  %v2419 = vsel %vm522, %v2353, %v2389
  %v2421 = vsel %vm522, %v2413, %v2391
  %v2430 = vrot.slane %v2339, 4
  %v2431 = vrot.slane %v2401, 4
  %v2432 = vsel %vm615, %v2430, %v2431
  %v2433 = vrot.slane %v2415, 4
  %v2434 = vrot.slane %v2417, 4
  %v2435 = vsel %vm615, %v2433, %v2434
  %v2436 = vrot.slane %v2342, 4
  %v2437 = vrot.slane %v2403, 4
  %v2438 = vsel %vm615, %v2436, %v2437
  %v2439 = vrot.slane %v2419, 4
  %v2440 = vrot.slane %v2421, 4
  %v2441 = vsel %vm615, %v2439, %v2440
  %v2478 = vunpack.c.l.b16 %v2068
  %v2479 = vunpack.c.l.b16 %v2069
  %v2480 = vunpack.c.l.b16 %v2070
  %v2481 = vunpack.c.l.b16 %v2071
  %v2482 = vunpack.c.l.b16 %v2072
  %v2483 = vunpack.c.l.b16 %v2073
  %v2484 = vunpack.c.l.b16 %v2074
  %v2485 = vunpack.c.l.b16 %v2075
  %v2486 = vunpack.c.l.b16 %v2076
  %v2487 = vunpack.c.l.b16 %v2077
  %v2488 = vunpack.c.l.b16 %v2078
  %v2489 = vunpack.c.l.b16 %v2079
  %v2490 = vunpack.c.l.b16 %v2080
  %v2491 = vunpack.c.l.b16 %v2081
  %v2492 = vunpack.c.l.b16 %v2082
  %v2493 = vunpack.c.l.b16 %v2083
  %v2494 = vunpack.c.l.b16 %v2084
  %v2495 = vunpack.c.l.b16 %v2085
  %v2496 = vunpack.c.l.b16 %v2086
  %v2497 = vunpack.c.l.b16 %v2087
  %v2498 = vunpack.c.l.b16 %v2088
  %v2499 = vunpack.c.l.b16 %v2089
  %v2500 = vunpack.c.l.b16 %v2090
  %v2501 = vunpack.c.l.b16 %v2091
  %v2502 = vunpack.c.l.b16 %v2092
  %v2503 = vunpack.c.l.b16 %v2093
  %v2504 = vunpack.c.l.b16 %v2094
  %v2505 = vunpack.c.l.b16 %v2095
  %v2506 = vunpack.c.l.b16 %v2096
  %v2507 = vunpack.c.l.b16 %v2097
  %v2508 = vunpack.c.l.b16 %v2098
  %v2509 = vunpack.c.l.b16 %v2099
  %v2510 = vpack.c.b16 %v2479, %v2478
  %v2511 = vpack.c.b16 %v2481, %v2480
  %v2512 = vpack.c.b16 %v2483, %v2482
  %v2513 = vpack.c.b16 %v2485, %v2484
  %v2514 = vpack.c.b16 %v2487, %v2486
  %v2515 = vpack.c.b16 %v2489, %v2488
  %v2516 = vpack.c.b16 %v2491, %v2490
  %v2517 = vpack.c.b16 %v2493, %v2492
  %v2518 = vpack.c.b16 %v2495, %v2494
  %v2519 = vpack.c.b16 %v2497, %v2496
  %v2520 = vpack.c.b16 %v2499, %v2498
  %v2521 = vpack.c.b16 %v2501, %v2500
  %v2522 = vpack.c.b16 %v2503, %v2502
  %v2523 = vpack.c.b16 %v2505, %v2504
  %v2524 = vpack.c.b16 %v2507, %v2506
  %v2525 = vpack.c.b16 %v2509, %v2508
  %2542 = vmatpush.bf16.msra.mxu0 %v2517
  %2543 = vmatpush.bf16.msra.mxu0 %v2516
  %2544 = vmatpush.bf16.msra.mxu0 %v2515
  %2545 = vmatpush.bf16.msra.mxu0 %v2514
  %2546 = vmatpush.bf16.msra.mxu0 %v2513
  %2547 = vmatpush.bf16.msra.mxu0 %v2512
  %2548 = vmatpush.bf16.msra.mxu0 %v2511
  %2549 = vmatpush.bf16.msra.mxu0 %v2510
  %2550 = vmatmul.bf16.gmra.mxu0 %v2432
  %v2551 = vpop.f32.mrf.mxu0
  %v2552 = vadd.f32 0.0, %v2551
  %v2553 = vpop.f32.mrf.mxu0
  %v2554 = vadd.f32 0.0, %v2553
  %2555 = vmatmul.bf16.gmra.mxu0 %v2438
  %v2556 = vpop.f32.mrf.mxu0
  %v2557 = vadd.f32 0.0, %v2556
  %v2558 = vpop.f32.mrf.mxu0
  %v2559 = vadd.f32 0.0, %v2558
  %2560 = vdwg.mxu0
  %2561 = vmatpush.bf16.msra.mxu0 %v2525
  %2562 = vmatpush.bf16.msra.mxu0 %v2524
  %2563 = vmatpush.bf16.msra.mxu0 %v2523
  %2564 = vmatpush.bf16.msra.mxu0 %v2522
  %2565 = vmatpush.bf16.msra.mxu0 %v2521
  %2566 = vmatpush.bf16.msra.mxu0 %v2520
  %2567 = vmatpush.bf16.msra.mxu0 %v2519
  %2568 = vmatpush.bf16.msra.mxu0 %v2518
  %2569 = vmatmul.bf16.gmra.mxu0 %v2435
  %v2570 = vpop.f32.mrf.mxu0
  %v2571 = vadd.f32 %v2552, %v2570
  %v2572 = vpop.f32.mrf.mxu0
  %v2573 = vadd.f32 %v2554, %v2572
  %2574 = vmatmul.bf16.gmra.mxu0 %v2441
  %v2575 = vpop.f32.mrf.mxu0
  %v2576 = vadd.f32 %v2557, %v2575
  %v2577 = vpop.f32.mrf.mxu0
  %v2578 = vadd.f32 %v2559, %v2577
  %2579 = vdwg.mxu0
  %v2612 = vunpack.c.l.b16 %v2036
  %v2613 = vunpack.c.l.b16 %v2037
  %v2614 = vunpack.c.l.b16 %v2038
  %v2615 = vunpack.c.l.b16 %v2039
  %v2616 = vunpack.c.l.b16 %v2040
  %v2617 = vunpack.c.l.b16 %v2041
  %v2618 = vunpack.c.l.b16 %v2042
  %v2619 = vunpack.c.l.b16 %v2043
  %v2620 = vunpack.c.l.b16 %v2044
  %v2621 = vunpack.c.l.b16 %v2045
  %v2622 = vunpack.c.l.b16 %v2046
  %v2623 = vunpack.c.l.b16 %v2047
  %v2624 = vunpack.c.l.b16 %v2048
  %v2625 = vunpack.c.l.b16 %v2049
  %v2626 = vunpack.c.l.b16 %v2050
  %v2627 = vunpack.c.l.b16 %v2051
  %v2628 = vunpack.c.l.b16 %v2052
  %v2629 = vunpack.c.l.b16 %v2053
  %v2630 = vunpack.c.l.b16 %v2054
  %v2631 = vunpack.c.l.b16 %v2055
  %v2632 = vunpack.c.l.b16 %v2056
  %v2633 = vunpack.c.l.b16 %v2057
  %v2634 = vunpack.c.l.b16 %v2058
  %v2635 = vunpack.c.l.b16 %v2059
  %v2636 = vunpack.c.l.b16 %v2060
  %v2637 = vunpack.c.l.b16 %v2061
  %v2638 = vunpack.c.l.b16 %v2062
  %v2639 = vunpack.c.l.b16 %v2063
  %v2640 = vunpack.c.l.b16 %v2064
  %v2641 = vunpack.c.l.b16 %v2065
  %v2642 = vunpack.c.l.b16 %v2066
  %v2643 = vunpack.c.l.b16 %v2067
  %v2644 = vpack.c.b16 %v2613, %v2612
  %v2645 = vpack.c.b16 %v2615, %v2614
  %v2646 = vpack.c.b16 %v2617, %v2616
  %v2647 = vpack.c.b16 %v2619, %v2618
  %v2648 = vpack.c.b16 %v2621, %v2620
  %v2649 = vpack.c.b16 %v2623, %v2622
  %v2650 = vpack.c.b16 %v2625, %v2624
  %v2651 = vpack.c.b16 %v2627, %v2626
  %v2652 = vpack.c.b16 %v2629, %v2628
  %v2653 = vpack.c.b16 %v2631, %v2630
  %v2654 = vpack.c.b16 %v2633, %v2632
  %v2655 = vpack.c.b16 %v2635, %v2634
  %v2656 = vpack.c.b16 %v2637, %v2636
  %v2657 = vpack.c.b16 %v2639, %v2638
  %v2658 = vpack.c.b16 %v2641, %v2640
  %v2659 = vpack.c.b16 %v2643, %v2642
  %2676 = vmatpush.bf16.msra.mxu0 %v2651
  %2677 = vmatpush.bf16.msra.mxu0 %v2650
  %2678 = vmatpush.bf16.msra.mxu0 %v2649
  %2679 = vmatpush.bf16.msra.mxu0 %v2648
  %2680 = vmatpush.bf16.msra.mxu0 %v2647
  %2681 = vmatpush.bf16.msra.mxu0 %v2646
  %2682 = vmatpush.bf16.msra.mxu0 %v2645
  %2683 = vmatpush.bf16.msra.mxu0 %v2644
  %2684 = vmatmul.bf16.gmra.mxu0 %v2339
  %v2685 = vpop.f32.mrf.mxu0
  %v2686 = vadd.f32 %v2571, %v2685
  %v2687 = vpop.f32.mrf.mxu0
  %v2688 = vadd.f32 %v2573, %v2687
  %2689 = vmatmul.bf16.gmra.mxu0 %v2342
  %v2690 = vpop.f32.mrf.mxu0
  %v2691 = vadd.f32 %v2576, %v2690
  %v2692 = vpop.f32.mrf.mxu0
  %v2693 = vadd.f32 %v2578, %v2692
  %2694 = vdwg.mxu0
  %2695 = vmatpush.bf16.msra.mxu0 %v2659
  %2696 = vmatpush.bf16.msra.mxu0 %v2658
  %2697 = vmatpush.bf16.msra.mxu0 %v2657
  %2698 = vmatpush.bf16.msra.mxu0 %v2656
  %2699 = vmatpush.bf16.msra.mxu0 %v2655
  %2700 = vmatpush.bf16.msra.mxu0 %v2654
  %2701 = vmatpush.bf16.msra.mxu0 %v2653
  %2702 = vmatpush.bf16.msra.mxu0 %v2652
  %2703 = vmatmul.bf16.gmra.mxu0 %v2355
  %v2704 = vpop.f32.mrf.mxu0
  %v2705 = vadd.f32 %v2686, %v2704
  %v2706 = vpop.f32.mrf.mxu0
  %v2707 = vadd.f32 %v2688, %v2706
  %2708 = vmatmul.bf16.gmra.mxu0 %v2358
  %v2709 = vpop.f32.mrf.mxu0
  %v2710 = vadd.f32 %v2691, %v2709
  %v2711 = vpop.f32.mrf.mxu0
  %v2712 = vadd.f32 %v2693, %v2711
  %2713 = vdwg.mxu0
  %v2714 = vshll.u32 %v2254, 16
  %v2716 = vrot.slane %v2714, 1
  %v2717 = vsel %vm412, %v2360, %v2716
  %v2718 = vshll.u32 %v2255, 16
  %v2720 = vrot.slane %v2718, 1
  %v2721 = vsel %vm412, %v2361, %v2720
  %2722 = vrot.lane.b32.xlu0 %v2717, 32
  %v2723 = vpop.permute.xlu0 %2722
  %2724 = vrot.lane.b32.xlu0 %v2721, 32
  %v2725 = vpop.permute.xlu0 %2724
  %v2728 = vrot.slane %v2254, 1
  %v2729 = vsel %vm434, %v2270, %v2728
  %v2730 = vrot.slane %v2255, 1
  %v2731 = vsel %vm434, %v2272, %v2730
  %2732 = vrot.lane.b32.xlu0 %v2729, 64
  %v2733 = vpop.permute.xlu0 %2732
  %2734 = vrot.lane.b32.xlu0 %v2731, 64
  %v2735 = vpop.permute.xlu0 %2734
  %v2736 = vshrl.u32 %v2254, 16
  %v2738 = vrot.slane %v2736, 1
  %v2739 = vrot.slane %v2714, 2
  %v2740 = vor.u32 %v2738, %v2739
  %v2741 = vsel %vm444, %v2282, %v2740
  %v2742 = vshrl.u32 %v2255, 16
  %v2744 = vrot.slane %v2742, 1
  %v2745 = vrot.slane %v2718, 2
  %v2746 = vor.u32 %v2744, %v2745
  %v2747 = vsel %vm444, %v2288, %v2746
  %2748 = vrot.lane.b32.xlu0 %v2741, 96
  %v2749 = vpop.permute.xlu0 %2748
  %2750 = vrot.lane.b32.xlu0 %v2747, 96
  %v2751 = vpop.permute.xlu0 %2750
  %v2752 = vrot.slane %v2254, 2
  %v2753 = vsel %vm464, %v2294, %v2752
  %v2754 = vrot.slane %v2255, 2
  %v2755 = vsel %vm464, %v2296, %v2754
  %v2756 = vrot.slane %v2736, 2
  %v2757 = vrot.slane %v2714, 3
  %v2758 = vor.u32 %v2756, %v2757
  %v2759 = vsel %vm470, %v2300, %v2758
  %v2760 = vrot.slane %v2742, 2
  %v2761 = vrot.slane %v2718, 3
  %v2762 = vor.u32 %v2760, %v2761
  %v2763 = vsel %vm470, %v2304, %v2762
  %2764 = vrot.lane.b32.xlu0 %v2759, 32
  %v2765 = vpop.permute.xlu0 %2764
  %2766 = vrot.lane.b32.xlu0 %v2763, 32
  %v2767 = vpop.permute.xlu0 %2766
  %v2768 = vrot.slane %v2254, 3
  %v2769 = vsel %vm486, %v2310, %v2768
  %v2770 = vrot.slane %v2255, 3
  %v2771 = vsel %vm486, %v2312, %v2770
  %2772 = vrot.lane.b32.xlu0 %v2769, 64
  %v2773 = vpop.permute.xlu0 %2772
  %2774 = vrot.lane.b32.xlu0 %v2771, 64
  %v2775 = vpop.permute.xlu0 %2774
  %v2776 = vrot.slane %v2736, 3
  %v2777 = vrot.slane %v2714, 4
  %v2778 = vor.u32 %v2776, %v2777
  %v2779 = vsel %vm496, %v2320, %v2778
  %v2780 = vrot.slane %v2742, 3
  %v2781 = vrot.slane %v2718, 4
  %v2782 = vor.u32 %v2780, %v2781
  %v2783 = vsel %vm496, %v2324, %v2782
  %2784 = vrot.lane.b32.xlu0 %v2779, 96
  %v2785 = vpop.permute.xlu0 %2784
  %2786 = vrot.lane.b32.xlu0 %v2783, 96
  %v2787 = vpop.permute.xlu0 %2786
  %v2789 = vsel %vm512, %v2251, %v2723
  %v2791 = vsel %vm512, %v2253, %v2725
  %v2793 = vsel %vm517, %v2789, %v2733
  %v2795 = vsel %vm517, %v2791, %v2735
  %v2797 = vsel %vm522, %v2793, %v2749
  %v2800 = vsel %vm522, %v2795, %v2751
  %v2804 = vsel %vm512, %v2753, %v2765
  %v2807 = vsel %vm512, %v2755, %v2767
  %v2809 = vsel %vm517, %v2804, %v2773
  %v2811 = vsel %vm517, %v2807, %v2775
  %v2813 = vsel %vm522, %v2809, %v2785
  %v2816 = vsel %vm522, %v2811, %v2787
  %v2850 = vunpack.c.l.b16 %v2100
  %v2851 = vunpack.c.l.b16 %v2101
  %v2852 = vunpack.c.l.b16 %v2102
  %v2853 = vunpack.c.l.b16 %v2103
  %v2854 = vunpack.c.l.b16 %v2104
  %v2855 = vunpack.c.l.b16 %v2105
  %v2856 = vunpack.c.l.b16 %v2106
  %v2857 = vunpack.c.l.b16 %v2107
  %v2858 = vunpack.c.l.b16 %v2108
  %v2859 = vunpack.c.l.b16 %v2109
  %v2860 = vunpack.c.l.b16 %v2110
  %v2861 = vunpack.c.l.b16 %v2111
  %v2862 = vunpack.c.l.b16 %v2112
  %v2863 = vunpack.c.l.b16 %v2113
  %v2864 = vunpack.c.l.b16 %v2114
  %v2865 = vunpack.c.l.b16 %v2115
  %v2866 = vunpack.c.l.b16 %v2116
  %v2867 = vunpack.c.l.b16 %v2117
  %v2868 = vunpack.c.l.b16 %v2118
  %v2869 = vunpack.c.l.b16 %v2119
  %v2870 = vunpack.c.l.b16 %v2120
  %v2871 = vunpack.c.l.b16 %v2121
  %v2872 = vunpack.c.l.b16 %v2122
  %v2873 = vunpack.c.l.b16 %v2123
  %v2874 = vunpack.c.l.b16 %v2124
  %v2875 = vunpack.c.l.b16 %v2125
  %v2876 = vunpack.c.l.b16 %v2126
  %v2877 = vunpack.c.l.b16 %v2127
  %v2878 = vunpack.c.l.b16 %v2128
  %v2879 = vunpack.c.l.b16 %v2129
  %v2880 = vunpack.c.l.b16 %v2130
  %v2881 = vunpack.c.l.b16 %v2131
  %v2882 = vpack.c.b16 %v2851, %v2850
  %v2883 = vpack.c.b16 %v2853, %v2852
  %v2884 = vpack.c.b16 %v2855, %v2854
  %v2885 = vpack.c.b16 %v2857, %v2856
  %v2886 = vpack.c.b16 %v2859, %v2858
  %v2887 = vpack.c.b16 %v2861, %v2860
  %v2888 = vpack.c.b16 %v2863, %v2862
  %v2889 = vpack.c.b16 %v2865, %v2864
  %v2890 = vpack.c.b16 %v2867, %v2866
  %v2891 = vpack.c.b16 %v2869, %v2868
  %v2892 = vpack.c.b16 %v2871, %v2870
  %v2893 = vpack.c.b16 %v2873, %v2872
  %v2894 = vpack.c.b16 %v2875, %v2874
  %v2895 = vpack.c.b16 %v2877, %v2876
  %v2896 = vpack.c.b16 %v2879, %v2878
  %v2897 = vpack.c.b16 %v2881, %v2880
  %2914 = vmatpush.bf16.msra.mxu0 %v2889
  %2915 = vmatpush.bf16.msra.mxu0 %v2888
  %2916 = vmatpush.bf16.msra.mxu0 %v2887
  %2917 = vmatpush.bf16.msra.mxu0 %v2886
  %2918 = vmatpush.bf16.msra.mxu0 %v2885
  %2919 = vmatpush.bf16.msra.mxu0 %v2884
  %2920 = vmatpush.bf16.msra.mxu0 %v2883
  %2921 = vmatpush.bf16.msra.mxu0 %v2882
  %2922 = vmatmul.bf16.gmra.mxu0 %v2797
  %v2923 = vpop.f32.mrf.mxu0
  %v2924 = vadd.f32 0.0, %v2923
  %v2925 = vpop.f32.mrf.mxu0
  %v2926 = vadd.f32 0.0, %v2925
  %2927 = vmatmul.bf16.gmra.mxu0 %v2800
  %v2928 = vpop.f32.mrf.mxu0
  %v2929 = vadd.f32 0.0, %v2928
  %v2930 = vpop.f32.mrf.mxu0
  %v2931 = vadd.f32 0.0, %v2930
  %2932 = vdwg.mxu0
  %2933 = vmatpush.bf16.msra.mxu0 %v2897
  %2934 = vmatpush.bf16.msra.mxu0 %v2896
  %2935 = vmatpush.bf16.msra.mxu0 %v2895
  %2936 = vmatpush.bf16.msra.mxu0 %v2894
  %2937 = vmatpush.bf16.msra.mxu0 %v2893
  %2938 = vmatpush.bf16.msra.mxu0 %v2892
  %2939 = vmatpush.bf16.msra.mxu0 %v2891
  %2940 = vmatpush.bf16.msra.mxu0 %v2890
  %2941 = vmatmul.bf16.gmra.mxu0 %v2813
  %v2942 = vpop.f32.mrf.mxu0
  %v2943 = vadd.f32 %v2924, %v2942
  %v2944 = vpop.f32.mrf.mxu0
  %v2945 = vadd.f32 %v2926, %v2944
  %2946 = vmatmul.bf16.gmra.mxu0 %v2816
  %v2947 = vpop.f32.mrf.mxu0
  %v2948 = vadd.f32 %v2929, %v2947
  %v2949 = vpop.f32.mrf.mxu0
  %v2950 = vadd.f32 %v2931, %v2949
  %2951 = vdwg.mxu0
  %v2952 = vadd.f32 %v2705, %v2943
  %v2953 = vadd.f32 %v2707, %v2945
  %v2954 = vadd.f32 %v2710, %v2948
  %v2955 = vadd.f32 %v2712, %v2950
  %v2956 = vor.u32 %v2736, %v2716
  %v2957 = vor.u32 %v2742, %v2720
  %2958 = vrot.lane.b32.xlu0 %v2956, 32
  %v2959 = vpop.permute.xlu0 %2958
  %2960 = vrot.lane.b32.xlu0 %v2957, 32
  %v2961 = vpop.permute.xlu0 %2960
  %2962 = vrot.lane.b32.xlu0 %v2728, 64
  %v2963 = vpop.permute.xlu0 %2962
  %2964 = vrot.lane.b32.xlu0 %v2730, 64
  %v2965 = vpop.permute.xlu0 %2964
  %2966 = vrot.lane.b32.xlu0 %v2740, 96
  %v2967 = vpop.permute.xlu0 %2966
  %2968 = vrot.lane.b32.xlu0 %v2746, 96
  %v2969 = vpop.permute.xlu0 %2968
  %2970 = vrot.lane.b32.xlu0 %v2758, 32
  %v2971 = vpop.permute.xlu0 %2970
  %2972 = vrot.lane.b32.xlu0 %v2762, 32
  %v2973 = vpop.permute.xlu0 %2972
  %2974 = vrot.lane.b32.xlu0 %v2768, 64
  %v2975 = vpop.permute.xlu0 %2974
  %2976 = vrot.lane.b32.xlu0 %v2770, 64
  %v2977 = vpop.permute.xlu0 %2976
  %v2978 = vsel %vm496, %v2318, %v2778
  %v2979 = vsel %vm496, %v2322, %v2782
  %2980 = vrot.lane.b32.xlu0 %v2978, 96
  %v2981 = vpop.permute.xlu0 %2980
  %2982 = vrot.lane.b32.xlu0 %v2778, 96
  %v2983 = vpop.permute.xlu0 %2982
  %2984 = vrot.lane.b32.xlu0 %v2979, 96
  %v2985 = vpop.permute.xlu0 %2984
  %2986 = vrot.lane.b32.xlu0 %v2782, 96
  %v2987 = vpop.permute.xlu0 %2986
  %v2989 = vsel %vm512, %v2254, %v2959
  %v2991 = vsel %vm512, %v2255, %v2961
  %v2993 = vsel %vm517, %v2989, %v2963
  %v2995 = vsel %vm517, %v2991, %v2965
  %v2997 = vsel %vm522, %v2993, %v2967
  %v2999 = vsel %vm522, %v2995, %v2969
  %v3002 = vsel %vm512, %v2752, %v2971
  %v3005 = vsel %vm512, %v2754, %v2973
  %v3007 = vsel %vm517, %v3002, %v2975
  %v3009 = vsel %vm517, %v3005, %v2977
  %v3011 = vsel %vm522, %v2809, %v2981
  %v3013 = vsel %vm522, %v3007, %v2983
  %v3015 = vsel %vm522, %v2811, %v2985
  %v3017 = vsel %vm522, %v3009, %v2987
  %v3026 = vrot.slane %v2797, 4
  %v3027 = vrot.slane %v2997, 4
  %v3028 = vsel %vm615, %v3026, %v3027
  %v3029 = vrot.slane %v3011, 4
  %v3030 = vrot.slane %v3013, 4
  %v3031 = vsel %vm615, %v3029, %v3030
  %v3032 = vrot.slane %v2800, 4
  %v3033 = vrot.slane %v2999, 4
  %v3034 = vsel %vm615, %v3032, %v3033
  %v3035 = vrot.slane %v3015, 4
  %v3036 = vrot.slane %v3017, 4
  %v3037 = vsel %vm615, %v3035, %v3036
  %v3074 = vunpack.c.l.b16 %v2132
  %v3075 = vunpack.c.l.b16 %v2133
  %v3076 = vunpack.c.l.b16 %v2134
  %v3077 = vunpack.c.l.b16 %v2135
  %v3078 = vunpack.c.l.b16 %v2136
  %v3079 = vunpack.c.l.b16 %v2137
  %v3080 = vunpack.c.l.b16 %v2138
  %v3081 = vunpack.c.l.b16 %v2139
  %v3082 = vunpack.c.l.b16 %v2140
  %v3083 = vunpack.c.l.b16 %v2141
  %v3084 = vunpack.c.l.b16 %v2142
  %v3085 = vunpack.c.l.b16 %v2143
  %v3086 = vunpack.c.l.b16 %v2144
  %v3087 = vunpack.c.l.b16 %v2145
  %v3088 = vunpack.c.l.b16 %v2146
  %v3089 = vunpack.c.l.b16 %v2147
  %v3090 = vunpack.c.l.b16 %v2148
  %v3091 = vunpack.c.l.b16 %v2149
  %v3092 = vunpack.c.l.b16 %v2150
  %v3093 = vunpack.c.l.b16 %v2151
  %v3094 = vunpack.c.l.b16 %v2152
  %v3095 = vunpack.c.l.b16 %v2153
  %v3096 = vunpack.c.l.b16 %v2154
  %v3097 = vunpack.c.l.b16 %v2155
  %v3098 = vunpack.c.l.b16 %v2156
  %v3099 = vunpack.c.l.b16 %v2157
  %v3100 = vunpack.c.l.b16 %v2158
  %v3101 = vunpack.c.l.b16 %v2159
  %v3102 = vunpack.c.l.b16 %v2160
  %v3103 = vunpack.c.l.b16 %v2161
  %v3104 = vunpack.c.l.b16 %v2162
  %v3105 = vunpack.c.l.b16 %v2163
  %v3106 = vpack.c.b16 %v3075, %v3074
  %v3107 = vpack.c.b16 %v3077, %v3076
  %v3108 = vpack.c.b16 %v3079, %v3078
  %v3109 = vpack.c.b16 %v3081, %v3080
  %v3110 = vpack.c.b16 %v3083, %v3082
  %v3111 = vpack.c.b16 %v3085, %v3084
  %v3112 = vpack.c.b16 %v3087, %v3086
  %v3113 = vpack.c.b16 %v3089, %v3088
  %v3114 = vpack.c.b16 %v3091, %v3090
  %v3115 = vpack.c.b16 %v3093, %v3092
  %v3116 = vpack.c.b16 %v3095, %v3094
  %v3117 = vpack.c.b16 %v3097, %v3096
  %v3118 = vpack.c.b16 %v3099, %v3098
  %v3119 = vpack.c.b16 %v3101, %v3100
  %v3120 = vpack.c.b16 %v3103, %v3102
  %v3121 = vpack.c.b16 %v3105, %v3104
  %3138 = vmatpush.bf16.msra.mxu0 %v3113
  %3139 = vmatpush.bf16.msra.mxu0 %v3112
  %3140 = vmatpush.bf16.msra.mxu0 %v3111
  %3141 = vmatpush.bf16.msra.mxu0 %v3110
  %3142 = vmatpush.bf16.msra.mxu0 %v3109
  %3143 = vmatpush.bf16.msra.mxu0 %v3108
  %3144 = vmatpush.bf16.msra.mxu0 %v3107
  %3145 = vmatpush.bf16.msra.mxu0 %v3106
  %3146 = vmatmul.bf16.gmra.mxu0 %v3028
  %v3147 = vpop.f32.mrf.mxu0
  %v3148 = vadd.f32 0.0, %v3147
  %v3149 = vpop.f32.mrf.mxu0
  %v3150 = vadd.f32 0.0, %v3149
  %3151 = vmatmul.bf16.gmra.mxu0 %v3034
  %v3152 = vpop.f32.mrf.mxu0
  %v3153 = vadd.f32 0.0, %v3152
  %v3154 = vpop.f32.mrf.mxu0
  %v3155 = vadd.f32 0.0, %v3154
  %3156 = vdwg.mxu0
  %3157 = vmatpush.bf16.msra.mxu0 %v3121
  %3158 = vmatpush.bf16.msra.mxu0 %v3120
  %3159 = vmatpush.bf16.msra.mxu0 %v3119
  %3160 = vmatpush.bf16.msra.mxu0 %v3118
  %3161 = vmatpush.bf16.msra.mxu0 %v3117
  %3162 = vmatpush.bf16.msra.mxu0 %v3116
  %3163 = vmatpush.bf16.msra.mxu0 %v3115
  %3164 = vmatpush.bf16.msra.mxu0 %v3114
  %3165 = vmatmul.bf16.gmra.mxu0 %v3031
  %v3166 = vpop.f32.mrf.mxu0
  %v3167 = vadd.f32 %v3148, %v3166
  %v3168 = vpop.f32.mrf.mxu0
  %v3169 = vadd.f32 %v3150, %v3168
  %3170 = vmatmul.bf16.gmra.mxu0 %v3037
  %v3171 = vpop.f32.mrf.mxu0
  %v3172 = vadd.f32 %v3153, %v3171
  %v3173 = vpop.f32.mrf.mxu0
  %v3174 = vadd.f32 %v3155, %v3173
  %3175 = vdwg.mxu0
  %v3176 = vadd.f32 %v2952, %v3167
  %v3177 = vadd.f32 %v2953, %v3169
  %v3178 = vadd.f32 %v2954, %v3172
  %v3179 = vadd.f32 %v2955, %v3174
  %v3180 = vsel %vm412, %v2956, %v417
  %v3181 = vsel %vm412, %v2957, %v417
  %3182 = vrot.lane.b32.xlu0 %v3180, 32
  %v3183 = vpop.permute.xlu0 %3182
  %3184 = vrot.lane.b32.xlu0 %v3181, 32
  %v3185 = vpop.permute.xlu0 %3184
  %v3186 = vsel %vm434, %v2728, %v435
  %v3187 = vsel %vm434, %v2730, %v435
  %3188 = vrot.lane.b32.xlu0 %v3186, 64
  %v3189 = vpop.permute.xlu0 %3188
  %3190 = vrot.lane.b32.xlu0 %v3187, 64
  %v3191 = vpop.permute.xlu0 %3190
  %v3192 = vsel %vm444, %v2740, %v447
  %v3193 = vsel %vm444, %v2746, %v447
  %3194 = vrot.lane.b32.xlu0 %v3192, 96
  %v3195 = vpop.permute.xlu0 %3194
  %3196 = vrot.lane.b32.xlu0 %v3193, 96
  %v3197 = vpop.permute.xlu0 %3196
  %v3198 = vsel %vm464, %v2752, %v465
  %v3199 = vsel %vm464, %v2754, %v465
  %v3200 = vsel %vm470, %v2758, %v473
  %v3201 = vsel %vm470, %v2762, %v473
  %3202 = vrot.lane.b32.xlu0 %v3200, 32
  %v3203 = vpop.permute.xlu0 %3202
  %3204 = vrot.lane.b32.xlu0 %v3201, 32
  %v3205 = vpop.permute.xlu0 %3204
  %v3206 = vsel %vm486, %v2768, %v487
  %v3207 = vsel %vm486, %v2770, %v487
  %3208 = vrot.lane.b32.xlu0 %v3206, 64
  %v3209 = vpop.permute.xlu0 %3208
  %3210 = vrot.lane.b32.xlu0 %v3207, 64
  %v3211 = vpop.permute.xlu0 %3210
  %v3212 = vsel %vm496, %v2778, %v499
  %v3213 = vsel %vm496, %v2782, %v499
  %3214 = vrot.lane.b32.xlu0 %v3212, 96
  %v3215 = vpop.permute.xlu0 %3214
  %3216 = vrot.lane.b32.xlu0 %v3213, 96
  %v3217 = vpop.permute.xlu0 %3216
  %v3219 = vsel %vm512, %v2254, %v3183
  %v3221 = vsel %vm512, %v2255, %v3185
  %v3223 = vsel %vm517, %v3219, %v3189
  %v3225 = vsel %vm517, %v3221, %v3191
  %v3227 = vsel %vm522, %v3223, %v3195
  %v3230 = vsel %vm522, %v3225, %v3197
  %v3234 = vsel %vm512, %v3198, %v3203
  %v3237 = vsel %vm512, %v3199, %v3205
  %v3239 = vsel %vm517, %v3234, %v3209
  %v3241 = vsel %vm517, %v3237, %v3211
  %v3243 = vsel %vm522, %v3239, %v3215
  %v3246 = vsel %vm522, %v3241, %v3217
  %v3280 = vunpack.c.l.b16 %v2164
  %v3281 = vunpack.c.l.b16 %v2165
  %v3282 = vunpack.c.l.b16 %v2166
  %v3283 = vunpack.c.l.b16 %v2167
  %v3284 = vunpack.c.l.b16 %v2168
  %v3285 = vunpack.c.l.b16 %v2169
  %v3286 = vunpack.c.l.b16 %v2170
  %v3287 = vunpack.c.l.b16 %v2171
  %v3288 = vunpack.c.l.b16 %v2172
  %v3289 = vunpack.c.l.b16 %v2173
  %v3290 = vunpack.c.l.b16 %v2174
  %v3291 = vunpack.c.l.b16 %v2175
  %v3292 = vunpack.c.l.b16 %v2176
  %v3293 = vunpack.c.l.b16 %v2177
  %v3294 = vunpack.c.l.b16 %v2178
  %v3295 = vunpack.c.l.b16 %v2179
  %v3296 = vunpack.c.l.b16 %v2180
  %v3297 = vunpack.c.l.b16 %v2181
  %v3298 = vunpack.c.l.b16 %v2182
  %v3299 = vunpack.c.l.b16 %v2183
  %v3300 = vunpack.c.l.b16 %v2184
  %v3301 = vunpack.c.l.b16 %v2185
  %v3302 = vunpack.c.l.b16 %v2186
  %v3303 = vunpack.c.l.b16 %v2187
  %v3304 = vunpack.c.l.b16 %v2188
  %v3305 = vunpack.c.l.b16 %v2189
  %v3306 = vunpack.c.l.b16 %v2190
  %v3307 = vunpack.c.l.b16 %v2191
  %v3308 = vunpack.c.l.b16 %v2192
  %v3309 = vunpack.c.l.b16 %v2193
  %v3310 = vunpack.c.l.b16 %v2194
  %v3311 = vunpack.c.l.b16 %v2195
  %v3312 = vpack.c.b16 %v3281, %v3280
  %v3313 = vpack.c.b16 %v3283, %v3282
  %v3314 = vpack.c.b16 %v3285, %v3284
  %v3315 = vpack.c.b16 %v3287, %v3286
  %v3316 = vpack.c.b16 %v3289, %v3288
  %v3317 = vpack.c.b16 %v3291, %v3290
  %v3318 = vpack.c.b16 %v3293, %v3292
  %v3319 = vpack.c.b16 %v3295, %v3294
  %v3320 = vpack.c.b16 %v3297, %v3296
  %v3321 = vpack.c.b16 %v3299, %v3298
  %v3322 = vpack.c.b16 %v3301, %v3300
  %v3323 = vpack.c.b16 %v3303, %v3302
  %v3324 = vpack.c.b16 %v3305, %v3304
  %v3325 = vpack.c.b16 %v3307, %v3306
  %v3326 = vpack.c.b16 %v3309, %v3308
  %v3327 = vpack.c.b16 %v3311, %v3310
  %3344 = vmatpush.bf16.msra.mxu0 %v3319
  %3345 = vmatpush.bf16.msra.mxu0 %v3318
  %3346 = vmatpush.bf16.msra.mxu0 %v3317
  %3347 = vmatpush.bf16.msra.mxu0 %v3316
  %3348 = vmatpush.bf16.msra.mxu0 %v3315
  %3349 = vmatpush.bf16.msra.mxu0 %v3314
  %3350 = vmatpush.bf16.msra.mxu0 %v3313
  %3351 = vmatpush.bf16.msra.mxu0 %v3312
  %3352 = vmatmul.bf16.gmra.mxu0 %v3227
  %v3353 = vpop.f32.mrf.mxu0
  %v3354 = vadd.f32 0.0, %v3353
  %v3355 = vpop.f32.mrf.mxu0
  %v3356 = vadd.f32 0.0, %v3355
  %3357 = vmatmul.bf16.gmra.mxu0 %v3230
  %v3358 = vpop.f32.mrf.mxu0
  %v3359 = vadd.f32 0.0, %v3358
  %v3360 = vpop.f32.mrf.mxu0
  %v3361 = vadd.f32 0.0, %v3360
  %3362 = vdwg.mxu0
  %3363 = vmatpush.bf16.msra.mxu0 %v3327
  %3364 = vmatpush.bf16.msra.mxu0 %v3326
  %3365 = vmatpush.bf16.msra.mxu0 %v3325
  %3366 = vmatpush.bf16.msra.mxu0 %v3324
  %3367 = vmatpush.bf16.msra.mxu0 %v3323
  %3368 = vmatpush.bf16.msra.mxu0 %v3322
  %3369 = vmatpush.bf16.msra.mxu0 %v3321
  %3370 = vmatpush.bf16.msra.mxu0 %v3320
  %3371 = vmatmul.bf16.gmra.mxu0 %v3243
  %v3372 = vpop.f32.mrf.mxu0
  %v3373 = vadd.f32 %v3354, %v3372
  %v3374 = vpop.f32.mrf.mxu0
  %v3375 = vadd.f32 %v3356, %v3374
  %3376 = vmatmul.bf16.gmra.mxu0 %v3246
  %v3377 = vpop.f32.mrf.mxu0
  %v3378 = vadd.f32 %v3359, %v3377
  %v3379 = vpop.f32.mrf.mxu0
  %v3380 = vadd.f32 %v3361, %v3379
  %3381 = vdwg.mxu0
  %v3382 = vadd.f32 %v3176, %v3373
  %v3383 = vadd.f32 %v3177, %v3375
  %v3384 = vadd.f32 %v3178, %v3378
  %v3385 = vadd.f32 %v3179, %v3380
  %v3386 = vsel %vm496, %v2776, %v499
  %v3387 = vsel %vm496, %v2780, %v499
  %3388 = vrot.lane.b32.xlu0 %v3386, 96
  %v3389 = vpop.permute.xlu0 %3388
  %3390 = vrot.lane.b32.xlu0 %v3387, 96
  %v3391 = vpop.permute.xlu0 %3390
  %v3393 = vsel %vm522, %v3239, %v3389
  %v3395 = vsel %vm522, %v3241, %v3391
  %v3400 = vrot.slane %v3227, 4
  %v3401 = vsel %vm615, %v3400, %v1614
  %v3402 = vrot.slane %v3393, 4
  %v3403 = vsel %vm615, %v3402, %v1617
  %v3404 = vrot.slane %v3230, 4
  %v3405 = vsel %vm615, %v3404, %v1614
  %v3406 = vrot.slane %v3395, 4
  %v3407 = vsel %vm615, %v3406, %v1617
  %v3444 = vunpack.c.l.b16 %v2196
  %v3445 = vunpack.c.l.b16 %v2197
  %v3446 = vunpack.c.l.b16 %v2198
  %v3447 = vunpack.c.l.b16 %v2199
  %v3448 = vunpack.c.l.b16 %v2200
  %v3449 = vunpack.c.l.b16 %v2201
  %v3450 = vunpack.c.l.b16 %v2202
  %v3451 = vunpack.c.l.b16 %v2203
  %v3452 = vunpack.c.l.b16 %v2204
  %v3453 = vunpack.c.l.b16 %v2205
  %v3454 = vunpack.c.l.b16 %v2206
  %v3455 = vunpack.c.l.b16 %v2207
  %v3456 = vunpack.c.l.b16 %v2208
  %v3457 = vunpack.c.l.b16 %v2209
  %v3458 = vunpack.c.l.b16 %v2210
  %v3459 = vunpack.c.l.b16 %v2211
  %v3460 = vunpack.c.l.b16 %v2212
  %v3461 = vunpack.c.l.b16 %v2213
  %v3462 = vunpack.c.l.b16 %v2214
  %v3463 = vunpack.c.l.b16 %v2215
  %v3464 = vunpack.c.l.b16 %v2216
  %v3465 = vunpack.c.l.b16 %v2217
  %v3466 = vunpack.c.l.b16 %v2218
  %v3467 = vunpack.c.l.b16 %v2219
  %v3468 = vunpack.c.l.b16 %v2220
  %v3469 = vunpack.c.l.b16 %v2221
  %v3470 = vunpack.c.l.b16 %v2222
  %v3471 = vunpack.c.l.b16 %v2223
  %v3472 = vunpack.c.l.b16 %v2224
  %v3473 = vunpack.c.l.b16 %v2225
  %v3474 = vunpack.c.l.b16 %v2226
  %v3475 = vunpack.c.l.b16 %v2227
  %v3476 = vpack.c.b16 %v3445, %v3444
  %v3477 = vpack.c.b16 %v3447, %v3446
  %v3478 = vpack.c.b16 %v3449, %v3448
  %v3479 = vpack.c.b16 %v3451, %v3450
  %v3480 = vpack.c.b16 %v3453, %v3452
  %v3481 = vpack.c.b16 %v3455, %v3454
  %v3482 = vpack.c.b16 %v3457, %v3456
  %v3483 = vpack.c.b16 %v3459, %v3458
  %v3484 = vpack.c.b16 %v3461, %v3460
  %v3485 = vpack.c.b16 %v3463, %v3462
  %v3486 = vpack.c.b16 %v3465, %v3464
  %v3487 = vpack.c.b16 %v3467, %v3466
  %v3488 = vpack.c.b16 %v3469, %v3468
  %v3489 = vpack.c.b16 %v3471, %v3470
  %v3490 = vpack.c.b16 %v3473, %v3472
  %v3491 = vpack.c.b16 %v3475, %v3474
  %3508 = vmatpush.bf16.msra.mxu0 %v3483
  %3509 = vmatpush.bf16.msra.mxu0 %v3482
  %3510 = vmatpush.bf16.msra.mxu0 %v3481
  %3511 = vmatpush.bf16.msra.mxu0 %v3480
  %3512 = vmatpush.bf16.msra.mxu0 %v3479
  %3513 = vmatpush.bf16.msra.mxu0 %v3478
  %3514 = vmatpush.bf16.msra.mxu0 %v3477
  %3515 = vmatpush.bf16.msra.mxu0 %v3476
  %3516 = vmatmul.bf16.gmra.mxu0 %v3401
  %v3517 = vpop.f32.mrf.mxu0
  %v3518 = vadd.f32 0.0, %v3517
  %v3519 = vpop.f32.mrf.mxu0
  %v3520 = vadd.f32 0.0, %v3519
  %3521 = vmatmul.bf16.gmra.mxu0 %v3405
  %v3522 = vpop.f32.mrf.mxu0
  %v3523 = vadd.f32 0.0, %v3522
  %v3524 = vpop.f32.mrf.mxu0
  %v3525 = vadd.f32 0.0, %v3524
  %3526 = vdwg.mxu0
  %3527 = vmatpush.bf16.msra.mxu0 %v3491
  %3528 = vmatpush.bf16.msra.mxu0 %v3490
  %3529 = vmatpush.bf16.msra.mxu0 %v3489
  %3530 = vmatpush.bf16.msra.mxu0 %v3488
  %3531 = vmatpush.bf16.msra.mxu0 %v3487
  %3532 = vmatpush.bf16.msra.mxu0 %v3486
  %3533 = vmatpush.bf16.msra.mxu0 %v3485
  %3534 = vmatpush.bf16.msra.mxu0 %v3484
  %3535 = vmatmul.bf16.gmra.mxu0 %v3403
  %v3536 = vpop.f32.mrf.mxu0
  %v3537 = vadd.f32 %v3518, %v3536
  %v3538 = vpop.f32.mrf.mxu0
  %v3539 = vadd.f32 %v3520, %v3538
  %3540 = vmatmul.bf16.gmra.mxu0 %v3407
  %v3541 = vpop.f32.mrf.mxu0
  %v3542 = vadd.f32 %v3523, %v3541
  %v3543 = vpop.f32.mrf.mxu0
  %v3544 = vadd.f32 %v3525, %v3543
  %3545 = vdwg.mxu0
  %v3546 = vadd.f32 %v3382, %v3537
  %v3547 = vadd.f32 %v3383, %v3539
  %v3548 = vadd.f32 %v3384, %v3542
  %v3549 = vadd.f32 %v3385, %v3544
  %v3550 = vshrl.u32 %v1997, 16
  %v3552 = vrot.slane %v3550, 7
  %v3553 = vshll.u32 %v1997, 16
  %v3555 = vor.u32 %v3552, %v3553
  %v3556 = vshrl.u32 %v1998, 16
  %v3558 = vrot.slane %v3556, 7
  %v3559 = vshll.u32 %v1998, 16
  %v3561 = vor.u32 %v3558, %v3559
  %v3566 = vsel %vm1783, 4286644096, %v3555
  %v3567 = vsel %vm1783, 4286644096, %v3561
  %v3568 = vsel %vm1783, %v3552, 4286644096
  %v3569 = vsel %vm1783, %v3558, 4286644096
  %v3570 = vunpack.c.l.bf16 %v3566
  %v3571 = vunpack.c.h.bf16 %v3566
  %v3572 = vunpack.c.l.bf16 %v3567
  %v3573 = vunpack.c.h.bf16 %v3567
  %v3574 = vunpack.c.l.bf16 %v3568
  %v3575 = vunpack.c.l.bf16 %v3569
  %v3582 = vrot.slane %v3570, 1
  %v3583 = vrot.slane %v3571, 1
  %v3584 = vsel %vm1800, %v3582, %v3583
  %v3585 = vrot.slane %v3574, 1
  %v3586 = vsel %vm1800, %v3583, %v3585
  %v3587 = vrot.slane %v3572, 1
  %v3588 = vrot.slane %v3573, 1
  %v3589 = vsel %vm1800, %v3587, %v3588
  %v3590 = vrot.slane %v3575, 1
  %v3591 = vsel %vm1800, %v3588, %v3590
  %v3596 = vmax.f32 %v3570, %v3584
  %v3597 = vmax.f32 %v3571, %v3586
  %v3598 = vmax.f32 %v3572, %v3589
  %v3599 = vmax.f32 %v3573, %v3591
  %v3600 = vpack.c.bf16 %v3596, %v3596
  %v3601 = vpack.c.bf16 %v3597, %v3597
  %v3602 = vpack.c.bf16 %v3598, %v3598
  %v3603 = vpack.c.bf16 %v3599, %v3599
  %v3604 = vunpack.c.l.bf16 %v3600
  %v3605 = vunpack.c.l.bf16 %v3601
  %v3606 = vunpack.c.l.bf16 %v3602
  %v3607 = vunpack.c.l.bf16 %v3603
  %v3608 = vrot.slane %v3570, 2
  %v3609 = vrot.slane %v3571, 2
  %v3610 = vsel %vm1827, %v3608, %v3609
  %v3611 = vrot.slane %v3574, 2
  %v3612 = vsel %vm1827, %v3609, %v3611
  %v3613 = vrot.slane %v3572, 2
  %v3614 = vrot.slane %v3573, 2
  %v3615 = vsel %vm1827, %v3613, %v3614
  %v3616 = vrot.slane %v3575, 2
  %v3617 = vsel %vm1827, %v3614, %v3616
  %v3622 = vmax.f32 %v3604, %v3610
  %v3623 = vmax.f32 %v3605, %v3612
  %v3624 = vmax.f32 %v3606, %v3615
  %v3625 = vmax.f32 %v3607, %v3617
  %v3626 = vpack.c.bf16 %v3622, %v3622
  %v3627 = vpack.c.bf16 %v3623, %v3623
  %v3628 = vpack.c.bf16 %v3624, %v3624
  %v3629 = vpack.c.bf16 %v3625, %v3625
  %v3634 = vunpack.c.l.b16 %v3626
  %v3635 = vunpack.c.l.b16 %v3627
  %v3636 = vunpack.c.l.b16 %v3628
  %v3637 = vunpack.c.l.b16 %v3629
  %v3638 = vpack.c.b16 %v3635, %v3634
  %v3639 = vpack.c.b16 %v3637, %v3636
  %v3644 = vunpack.c.l.b16 %v2228
  %v3645 = vunpack.c.l.b16 %v2229
  %v3646 = vunpack.c.l.b16 %v2230
  %v3647 = vunpack.c.l.b16 %v2231
  %v3648 = vpack.c.b16 %v3645, %v3644
  %v3649 = vpack.c.b16 %v3647, %v3646
  %v3653 = vsel %vm512, %v3638, 0
  %v3656 = vsel %vm512, %v3639, 0
  %3658 = vmatpush.bf16.msra.mxu0 0
  %3659 = vmatpush.bf16.msra.mxu0 0
  %3660 = vmatpush.bf16.msra.mxu0 0
  %3661 = vmatpush.bf16.msra.mxu0 0
  %3662 = vmatpush.bf16.msra.mxu0 0
  %3663 = vmatpush.bf16.msra.mxu0 0
  %3664 = vmatpush.bf16.msra.mxu0 %v3649
  %3665 = vmatpush.bf16.msra.mxu0 %v3648
  %3666 = vmatmul.bf16.gmra.mxu0 %v3653
  %v3667 = vpop.f32.mrf.mxu0
  %v3668 = vadd.f32 0.0, %v3667
  %v3669 = vpop.f32.mrf.mxu0
  %v3670 = vadd.f32 0.0, %v3669
  %3671 = vmatmul.bf16.gmra.mxu0 %v3656
  %v3672 = vpop.f32.mrf.mxu0
  %v3673 = vadd.f32 0.0, %v3672
  %v3674 = vpop.f32.mrf.mxu0
  %v3675 = vadd.f32 0.0, %v3674
  %3676 = vdwg.mxu0
  %3681 = vrot.lane.b32.xlu0 %v3668, 24
  %v3682 = vpop.permute.xlu0 %3681
  %3683 = vrot.lane.b32.xlu0 %v3670, 24
  %v3684 = vpop.permute.xlu0 %3683
  %3685 = vrot.lane.b32.xlu0 %v3673, 24
  %v3686 = vpop.permute.xlu0 %3685
  %3687 = vrot.lane.b32.xlu0 %v3675, 24
  %v3688 = vpop.permute.xlu0 %3687
  %v3693 = vsel %vm1904, %v3546, %v3682
  %v3694 = vsel %vm1904, %v3547, %v3684
  %v3695 = vsel %vm1904, %v3548, %v3686
  %v3696 = vsel %vm1904, %v3549, %v3688
  %v3697 = vsel %vm512, %v3693, 0.0
  %v3698 = vsel %vm512, %v3694, 0.0
  %v3699 = vadd.f32 %v3697, %v3698
  %v3700 = vsel %vm512, %v3695, 0.0
  %v3701 = vadd.f32 %v3699, %v3700
  %v3702 = vsel %vm512, %v3696, 0.0
  %v3703 = vadd.f32 %v3701, %v3702
  %v3704 = vrot.slane %v3703, 4
  %v3705 = vadd.f32 %v3703, %v3704
  %v3706 = vrot.slane %v3705, 2
  %v3707 = vadd.f32 %v3705, %v3706
  %v3708 = vrot.slane %v3707, 1
  %v3709 = vadd.f32 %v3707, %v3708
  %v3710 = vmul.f32 %v3693, %v3693
  %v3711 = vmul.f32 %v3694, %v3694
  %v3712 = vmul.f32 %v3695, %v3695
  %v3713 = vmul.f32 %v3696, %v3696
  %v3714 = vsel %vm512, %v3710, 0.0
  %v3715 = vsel %vm512, %v3711, 0.0
  %v3716 = vadd.f32 %v3714, %v3715
  %v3717 = vsel %vm512, %v3712, 0.0
  %v3718 = vadd.f32 %v3716, %v3717
  %v3719 = vsel %vm512, %v3713, 0.0
  %v3720 = vadd.f32 %v3718, %v3719
  %v3721 = vrot.slane %v3720, 4
  %v3722 = vadd.f32 %v3720, %v3721
  %v3723 = vrot.slane %v3722, 2
  %v3724 = vadd.f32 %v3722, %v3723
  %v3725 = vrot.slane %v3724, 1
  %v3726 = vadd.f32 %v3724, %v3725
  %v3727 = vmul.f32 %v3709, 0.03125
  %v3728 = vmul.f32 %v3726, 0.03125
  %v3729 = vmul.f32 %v3727, %v3727
  %v3730 = vsub.f32 %v3728, %v3729
  %v3731 = vmax.f32 %v3730, 0.0
  %v3732 = vsub.f32 %v3693, %v3727
  %v3733 = vsub.f32 %v3694, %v3727
  %v3734 = vsub.f32 %v3695, %v3727
  %v3735 = vsub.f32 %v3696, %v3727
  %v3736 = vadd.f32 %v3731, 1e-05
  %v3737 = vrsqrt.pop %v3736
  %v3738 = vmul.f32 %v3737, %v3736
  %v3739 = vmul.f32 %v3738, %v3737
  %v3740 = vmul.f32 0.5, %v3739
  %v3741 = vsub.f32 1.5, %v3740
  %v3742 = vmul.f32 %v3737, %v3741
  %vm3743 = vweird.f32 %v3736
  %vm3744 = vweird.f32 %v3737
  %vm3745 = vmor %vm3743, %vm3744
  %v3746 = vsel %vm3745, %v3737, %v3742
  %v3747 = vmul.f32 %v3732, %v3746
  %v3748 = vmul.f32 %v3733, %v3746
  %v3749 = vmul.f32 %v3734, %v3746
  %v3750 = vmul.f32 %v3735, %v3746
  %v3752 = vperm.slane %v2232, 0
  %v3754 = vmul.f32 %v3747, %v3752
  %v3755 = vmul.f32 %v3748, %v3752
  %v3756 = vmul.f32 %v3749, %v3752
  %v3757 = vmul.f32 %v3750, %v3752
  %v3759 = vperm.slane %v2233, 0
  %v3761 = vadd.f32 %v3754, %v3759
  %v3762 = vadd.f32 %v3755, %v3759
  %v3763 = vadd.f32 %v3756, %v3759
  %v3764 = vadd.f32 %v3757, %v3759
  %v3765 = vmax.f32 %v3761, 0.0
  %v3766 = vmax.f32 %v3762, 0.0
  %v3767 = vmax.f32 %v3763, 0.0
  %v3768 = vmax.f32 %v3764, 0.0
  %v3769 = vpack.c.bf16 %v3765, %v3765
  %v3770 = vpack.c.bf16 %v3766, %v3766
  %v3771 = vpack.c.bf16 %v3767, %v3767
  %v3772 = vpack.c.bf16 %v3768, %v3768
  %v3773 = vld [vmem:[%s14] sm:$0xf]
  %v3774 = vld [vmem:[%s14 + $0x4] sm:$0xf]
  %v3775 = vld [vmem:[%s14 + $0x8] sm:$0xf]
  %v3776 = vld [vmem:[%s14 + $0xc] sm:$0xf]
  %v3781 = vunpack.c.l.b16 %v3769
  %v3782 = vunpack.c.l.b16 %v3770
  %v3783 = vunpack.c.l.b16 %v3771
  %v3784 = vunpack.c.l.b16 %v3772
  %v3785 = vpack.c.b16 %v3782, %v3781
  %v3786 = vpack.c.b16 %v3784, %v3783
  %v3791 = vunpack.c.l.b16 %v3773
  %v3792 = vunpack.c.l.b16 %v3774
  %v3793 = vunpack.c.l.b16 %v3775
  %v3794 = vunpack.c.l.b16 %v3776
  %v3795 = vpack.c.b16 %v3792, %v3791
  %v3796 = vpack.c.b16 %v3794, %v3793
  %v3800 = vsel %vm512, %v3785, 0
  %v3803 = vsel %vm512, %v3786, 0
  %3805 = vmatpush.bf16.msra.mxu0 0
  %3806 = vmatpush.bf16.msra.mxu0 0
  %3807 = vmatpush.bf16.msra.mxu0 0
  %3808 = vmatpush.bf16.msra.mxu0 0
  %3809 = vmatpush.bf16.msra.mxu0 0
  %3810 = vmatpush.bf16.msra.mxu0 0
  %3811 = vmatpush.bf16.msra.mxu0 %v3796
  %3812 = vmatpush.bf16.msra.mxu0 %v3795
  %3813 = vmatmul.bf16.gmra.mxu0 %v3800
  %v3814 = vpop.f32.mrf.mxu0
  %v3815 = vadd.f32 0.0, %v3814
  %v3816 = vpop.f32.mrf.mxu0
  %v3817 = vadd.f32 0.0, %v3816
  %3818 = vmatmul.bf16.gmra.mxu0 %v3803
  %v3819 = vpop.f32.mrf.mxu0
  %v3820 = vadd.f32 0.0, %v3819
  %v3821 = vpop.f32.mrf.mxu0
  %v3822 = vadd.f32 0.0, %v3821
  %3823 = vdwg.mxu0
  %v3824 = vld [vmem:[%s15] sm:$0xf]
  %v3825 = vld [vmem:[%s15 + $0x4] sm:$0xf]
  %v3826 = vld [vmem:[%s15 + $0x8] sm:$0xf]
  %v3827 = vld [vmem:[%s15 + $0xc] sm:$0xf]
  %v3828 = vld [vmem:[%s15 + $0x10] sm:$0xf]
  %v3829 = vld [vmem:[%s15 + $0x14] sm:$0xf]
  %v3830 = vld [vmem:[%s15 + $0x18] sm:$0xf]
  %v3831 = vld [vmem:[%s15 + $0x1c] sm:$0xf]
  %v3832 = vld [vmem:[%s15 + $0x20] sm:$0xf]
  %v3833 = vld [vmem:[%s15 + $0x24] sm:$0xf]
  %v3834 = vld [vmem:[%s15 + $0x28] sm:$0xf]
  %v3835 = vld [vmem:[%s15 + $0x2c] sm:$0xf]
  %v3836 = vld [vmem:[%s15 + $0x30] sm:$0xf]
  %v3837 = vld [vmem:[%s15 + $0x34] sm:$0xf]
  %v3838 = vld [vmem:[%s15 + $0x38] sm:$0xf]
  %v3839 = vld [vmem:[%s15 + $0x3c] sm:$0xf]
  %v3840 = vld [vmem:[%s15 + $0x40] sm:$0xf]
  %v3841 = vld [vmem:[%s15 + $0x44] sm:$0xf]
  %v3842 = vld [vmem:[%s15 + $0x48] sm:$0xf]
  %v3843 = vld [vmem:[%s15 + $0x4c] sm:$0xf]
  %v3844 = vld [vmem:[%s15 + $0x50] sm:$0xf]
  %v3845 = vld [vmem:[%s15 + $0x54] sm:$0xf]
  %v3846 = vld [vmem:[%s15 + $0x58] sm:$0xf]
  %v3847 = vld [vmem:[%s15 + $0x5c] sm:$0xf]
  %v3848 = vld [vmem:[%s15 + $0x60] sm:$0xf]
  %v3849 = vld [vmem:[%s15 + $0x64] sm:$0xf]
  %v3850 = vld [vmem:[%s15 + $0x68] sm:$0xf]
  %v3851 = vld [vmem:[%s15 + $0x6c] sm:$0xf]
  %v3852 = vld [vmem:[%s15 + $0x70] sm:$0xf]
  %v3853 = vld [vmem:[%s15 + $0x74] sm:$0xf]
  %v3854 = vld [vmem:[%s15 + $0x78] sm:$0xf]
  %v3855 = vld [vmem:[%s15 + $0x7c] sm:$0xf]
  %v3856 = vld [vmem:[%s15 + $0x80] sm:$0xf]
  %v3857 = vld [vmem:[%s15 + $0x84] sm:$0xf]
  %v3858 = vld [vmem:[%s15 + $0x88] sm:$0xf]
  %v3859 = vld [vmem:[%s15 + $0x8c] sm:$0xf]
  %v3860 = vld [vmem:[%s15 + $0x90] sm:$0xf]
  %v3861 = vld [vmem:[%s15 + $0x94] sm:$0xf]
  %v3862 = vld [vmem:[%s15 + $0x98] sm:$0xf]
  %v3863 = vld [vmem:[%s15 + $0x9c] sm:$0xf]
  %v3864 = vld [vmem:[%s15 + $0xa0] sm:$0xf]
  %v3865 = vld [vmem:[%s15 + $0xa4] sm:$0xf]
  %v3866 = vld [vmem:[%s15 + $0xa8] sm:$0xf]
  %v3867 = vld [vmem:[%s15 + $0xac] sm:$0xf]
  %v3868 = vld [vmem:[%s15 + $0xb0] sm:$0xf]
  %v3869 = vld [vmem:[%s15 + $0xb4] sm:$0xf]
  %v3870 = vld [vmem:[%s15 + $0xb8] sm:$0xf]
  %v3871 = vld [vmem:[%s15 + $0xbc] sm:$0xf]
  %v3872 = vld [vmem:[%s15 + $0xc0] sm:$0xf]
  %v3873 = vld [vmem:[%s15 + $0xc4] sm:$0xf]
  %v3874 = vld [vmem:[%s15 + $0xc8] sm:$0xf]
  %v3875 = vld [vmem:[%s15 + $0xcc] sm:$0xf]
  %v3876 = vld [vmem:[%s15 + $0xd0] sm:$0xf]
  %v3877 = vld [vmem:[%s15 + $0xd4] sm:$0xf]
  %v3878 = vld [vmem:[%s15 + $0xd8] sm:$0xf]
  %v3879 = vld [vmem:[%s15 + $0xdc] sm:$0xf]
  %v3880 = vld [vmem:[%s15 + $0xe0] sm:$0xf]
  %v3881 = vld [vmem:[%s15 + $0xe4] sm:$0xf]
  %v3882 = vld [vmem:[%s15 + $0xe8] sm:$0xf]
  %v3883 = vld [vmem:[%s15 + $0xec] sm:$0xf]
  %v3884 = vld [vmem:[%s15 + $0xf0] sm:$0xf]
  %v3885 = vld [vmem:[%s15 + $0xf4] sm:$0xf]
  %v3886 = vld [vmem:[%s15 + $0xf8] sm:$0xf]
  %v3887 = vld [vmem:[%s15 + $0xfc] sm:$0xf]
  %v3888 = vld [vmem:[%s15 + $0x100] sm:$0xf]
  %v3889 = vld [vmem:[%s15 + $0x104] sm:$0xf]
  %v3890 = vld [vmem:[%s15 + $0x108] sm:$0xf]
  %v3891 = vld [vmem:[%s15 + $0x10c] sm:$0xf]
  %v3892 = vld [vmem:[%s15 + $0x110] sm:$0xf]
  %v3893 = vld [vmem:[%s15 + $0x114] sm:$0xf]
  %v3894 = vld [vmem:[%s15 + $0x118] sm:$0xf]
  %v3895 = vld [vmem:[%s15 + $0x11c] sm:$0xf]
  %v3896 = vld [vmem:[%s15 + $0x120] sm:$0xf]
  %v3897 = vld [vmem:[%s15 + $0x124] sm:$0xf]
  %v3898 = vld [vmem:[%s15 + $0x128] sm:$0xf]
  %v3899 = vld [vmem:[%s15 + $0x12c] sm:$0xf]
  %v3900 = vld [vmem:[%s15 + $0x130] sm:$0xf]
  %v3901 = vld [vmem:[%s15 + $0x134] sm:$0xf]
  %v3902 = vld [vmem:[%s15 + $0x138] sm:$0xf]
  %v3903 = vld [vmem:[%s15 + $0x13c] sm:$0xf]
  %v3904 = vld [vmem:[%s15 + $0x140] sm:$0xf]
  %v3905 = vld [vmem:[%s15 + $0x144] sm:$0xf]
  %v3906 = vld [vmem:[%s15 + $0x148] sm:$0xf]
  %v3907 = vld [vmem:[%s15 + $0x14c] sm:$0xf]
  %v3908 = vld [vmem:[%s15 + $0x150] sm:$0xf]
  %v3909 = vld [vmem:[%s15 + $0x154] sm:$0xf]
  %v3910 = vld [vmem:[%s15 + $0x158] sm:$0xf]
  %v3911 = vld [vmem:[%s15 + $0x15c] sm:$0xf]
  %v3912 = vld [vmem:[%s15 + $0x160] sm:$0xf]
  %v3913 = vld [vmem:[%s15 + $0x164] sm:$0xf]
  %v3914 = vld [vmem:[%s15 + $0x168] sm:$0xf]
  %v3915 = vld [vmem:[%s15 + $0x16c] sm:$0xf]
  %v3916 = vld [vmem:[%s15 + $0x170] sm:$0xf]
  %v3917 = vld [vmem:[%s15 + $0x174] sm:$0xf]
  %v3918 = vld [vmem:[%s15 + $0x178] sm:$0xf]
  %v3919 = vld [vmem:[%s15 + $0x17c] sm:$0xf]
  %v3920 = vld [vmem:[%s15 + $0x180] sm:$0xf]
  %v3921 = vld [vmem:[%s15 + $0x184] sm:$0xf]
  %v3922 = vld [vmem:[%s15 + $0x188] sm:$0xf]
  %v3923 = vld [vmem:[%s15 + $0x18c] sm:$0xf]
  %v3924 = vld [vmem:[%s15 + $0x190] sm:$0xf]
  %v3925 = vld [vmem:[%s15 + $0x194] sm:$0xf]
  %v3926 = vld [vmem:[%s15 + $0x198] sm:$0xf]
  %v3927 = vld [vmem:[%s15 + $0x19c] sm:$0xf]
  %v3928 = vld [vmem:[%s15 + $0x1a0] sm:$0xf]
  %v3929 = vld [vmem:[%s15 + $0x1a4] sm:$0xf]
  %v3930 = vld [vmem:[%s15 + $0x1a8] sm:$0xf]
  %v3931 = vld [vmem:[%s15 + $0x1ac] sm:$0xf]
  %v3932 = vld [vmem:[%s15 + $0x1b0] sm:$0xf]
  %v3933 = vld [vmem:[%s15 + $0x1b4] sm:$0xf]
  %v3934 = vld [vmem:[%s15 + $0x1b8] sm:$0xf]
  %v3935 = vld [vmem:[%s15 + $0x1bc] sm:$0xf]
  %v3936 = vld [vmem:[%s15 + $0x1c0] sm:$0xf]
  %v3937 = vld [vmem:[%s15 + $0x1c4] sm:$0xf]
  %v3938 = vld [vmem:[%s15 + $0x1c8] sm:$0xf]
  %v3939 = vld [vmem:[%s15 + $0x1cc] sm:$0xf]
  %v3940 = vld [vmem:[%s15 + $0x1d0] sm:$0xf]
  %v3941 = vld [vmem:[%s15 + $0x1d4] sm:$0xf]
  %v3942 = vld [vmem:[%s15 + $0x1d8] sm:$0xf]
  %v3943 = vld [vmem:[%s15 + $0x1dc] sm:$0xf]
  %v3944 = vld [vmem:[%s15 + $0x1e0] sm:$0xf]
  %v3945 = vld [vmem:[%s15 + $0x1e4] sm:$0xf]
  %v3946 = vld [vmem:[%s15 + $0x1e8] sm:$0xf]
  %v3947 = vld [vmem:[%s15 + $0x1ec] sm:$0xf]
  %v3948 = vld [vmem:[%s15 + $0x1f0] sm:$0xf]
  %v3949 = vld [vmem:[%s15 + $0x1f4] sm:$0xf]
  %v3950 = vld [vmem:[%s15 + $0x1f8] sm:$0xf]
  %v3951 = vld [vmem:[%s15 + $0x1fc] sm:$0xf]
  %v3952 = vld [vmem:[%s15 + $0x200] sm:$0xf]
  %v3953 = vld [vmem:[%s15 + $0x204] sm:$0xf]
  %v3954 = vld [vmem:[%s15 + $0x208] sm:$0xf]
  %v3955 = vld [vmem:[%s15 + $0x20c] sm:$0xf]
  %v3956 = vld [vmem:[%s15 + $0x210] sm:$0xf]
  %v3957 = vld [vmem:[%s15 + $0x214] sm:$0xf]
  %v3958 = vld [vmem:[%s15 + $0x218] sm:$0xf]
  %v3959 = vld [vmem:[%s15 + $0x21c] sm:$0xf]
  %v3960 = vld [vmem:[%s15 + $0x220] sm:$0xf]
  %v3961 = vld [vmem:[%s15 + $0x224] sm:$0xf]
  %v3962 = vld [vmem:[%s15 + $0x228] sm:$0xf]
  %v3963 = vld [vmem:[%s15 + $0x22c] sm:$0xf]
  %v3964 = vld [vmem:[%s15 + $0x230] sm:$0xf]
  %v3965 = vld [vmem:[%s15 + $0x234] sm:$0xf]
  %v3966 = vld [vmem:[%s15 + $0x238] sm:$0xf]
  %v3967 = vld [vmem:[%s15 + $0x23c] sm:$0xf]
  %v3968 = vld [vmem:[%s15 + $0x240] sm:$0xf]
  %v3969 = vld [vmem:[%s15 + $0x244] sm:$0xf]
  %v3970 = vld [vmem:[%s15 + $0x248] sm:$0xf]
  %v3971 = vld [vmem:[%s15 + $0x24c] sm:$0xf]
  %v3972 = vld [vmem:[%s15 + $0x250] sm:$0xf]
  %v3973 = vld [vmem:[%s15 + $0x254] sm:$0xf]
  %v3974 = vld [vmem:[%s15 + $0x258] sm:$0xf]
  %v3975 = vld [vmem:[%s15 + $0x25c] sm:$0xf]
  %v3976 = vld [vmem:[%s15 + $0x260] sm:$0xf]
  %v3977 = vld [vmem:[%s15 + $0x264] sm:$0xf]
  %v3978 = vld [vmem:[%s15 + $0x268] sm:$0xf]
  %v3979 = vld [vmem:[%s15 + $0x26c] sm:$0xf]
  %v3980 = vld [vmem:[%s15 + $0x270] sm:$0xf]
  %v3981 = vld [vmem:[%s15 + $0x274] sm:$0xf]
  %v3982 = vld [vmem:[%s15 + $0x278] sm:$0xf]
  %v3983 = vld [vmem:[%s15 + $0x27c] sm:$0xf]
  %v3984 = vld [vmem:[%s15 + $0x280] sm:$0xf]
  %v3985 = vld [vmem:[%s15 + $0x284] sm:$0xf]
  %v3986 = vld [vmem:[%s15 + $0x288] sm:$0xf]
  %v3987 = vld [vmem:[%s15 + $0x28c] sm:$0xf]
  %v3988 = vld [vmem:[%s15 + $0x290] sm:$0xf]
  %v3989 = vld [vmem:[%s15 + $0x294] sm:$0xf]
  %v3990 = vld [vmem:[%s15 + $0x298] sm:$0xf]
  %v3991 = vld [vmem:[%s15 + $0x29c] sm:$0xf]
  %v3992 = vld [vmem:[%s15 + $0x2a0] sm:$0xf]
  %v3993 = vld [vmem:[%s15 + $0x2a4] sm:$0xf]
  %v3994 = vld [vmem:[%s15 + $0x2a8] sm:$0xf]
  %v3995 = vld [vmem:[%s15 + $0x2ac] sm:$0xf]
  %v3996 = vld [vmem:[%s15 + $0x2b0] sm:$0xf]
  %v3997 = vld [vmem:[%s15 + $0x2b4] sm:$0xf]
  %v3998 = vld [vmem:[%s15 + $0x2b8] sm:$0xf]
  %v3999 = vld [vmem:[%s15 + $0x2bc] sm:$0xf]
  %v4000 = vld [vmem:[%s15 + $0x2c0] sm:$0xf]
  %v4001 = vld [vmem:[%s15 + $0x2c4] sm:$0xf]
  %v4002 = vld [vmem:[%s15 + $0x2c8] sm:$0xf]
  %v4003 = vld [vmem:[%s15 + $0x2cc] sm:$0xf]
  %v4004 = vld [vmem:[%s15 + $0x2d0] sm:$0xf]
  %v4005 = vld [vmem:[%s15 + $0x2d4] sm:$0xf]
  %v4006 = vld [vmem:[%s15 + $0x2d8] sm:$0xf]
  %v4007 = vld [vmem:[%s15 + $0x2dc] sm:$0xf]
  %v4008 = vld [vmem:[%s15 + $0x2e0] sm:$0xf]
  %v4009 = vld [vmem:[%s15 + $0x2e4] sm:$0xf]
  %v4010 = vld [vmem:[%s15 + $0x2e8] sm:$0xf]
  %v4011 = vld [vmem:[%s15 + $0x2ec] sm:$0xf]
  %v4012 = vld [vmem:[%s15 + $0x2f0] sm:$0xf]
  %v4013 = vld [vmem:[%s15 + $0x2f4] sm:$0xf]
  %v4014 = vld [vmem:[%s15 + $0x2f8] sm:$0xf]
  %v4015 = vld [vmem:[%s15 + $0x2fc] sm:$0xf]
  %v4016 = vld [vmem:[%s16] sm:$0xf]
  %v4017 = vld [vmem:[%s16 + $0x4] sm:$0xf]
  %v4018 = vld [vmem:[%s16 + $0x8] sm:$0xf]
  %v4019 = vld [vmem:[%s16 + $0xc] sm:$0xf]
  %v4020 = vld [vmem:[%s17] sm:$0x1]
  %v4021 = vld [vmem:[%s18] sm:$0x1]
  %v4022 = vpack.c.bf16 %v3815, %v3815
  %v4023 = vpack.c.bf16 %v3817, %v3817
  %v4024 = vpack.c.bf16 %v3820, %v3820
  %v4025 = vpack.c.bf16 %v3822, %v3822
  %v4030 = vunpack.c.l.b16 %v4022
  %v4031 = vunpack.c.l.b16 %v4023
  %v4032 = vunpack.c.l.b16 %v4024
  %v4033 = vunpack.c.l.b16 %v4025
  %v4034 = vpack.c.b16 %v4031, %v4030
  %v4035 = vpack.c.b16 %v4033, %v4032
  %v4036 = vrot.slane %v4034, 6
  %v4037 = vrot.slane %v4035, 6
  %v4039 = vsel %vm86, 0, %v4036
  %v4041 = vsel %vm86, 0, %v4037
  %v4042 = vsel %vm86, %v4036, 0
  %v4043 = vsel %vm86, %v4037, 0
  %v4044 = vshll.u32 %v4039, 16
  %v4046 = vrot.slane %v4044, 1
  %v4047 = vsel %vm412, %v418, %v4046
  %v4048 = vshll.u32 %v4041, 16
  %v4050 = vrot.slane %v4048, 1
  %v4051 = vsel %vm412, %v418, %v4050
  %4052 = vrot.lane.b32.xlu0 %v4047, 32
  %v4053 = vpop.permute.xlu0 %4052
  %4054 = vrot.lane.b32.xlu0 %v4051, 32
  %v4055 = vpop.permute.xlu0 %4054
  %v4058 = vrot.slane %v4039, 1
  %v4059 = vsel %vm434, %v435, %v4058
  %v4060 = vrot.slane %v4041, 1
  %v4061 = vsel %vm434, %v435, %v4060
  %4062 = vrot.lane.b32.xlu0 %v4059, 64
  %v4063 = vpop.permute.xlu0 %4062
  %4064 = vrot.lane.b32.xlu0 %v4061, 64
  %v4065 = vpop.permute.xlu0 %4064
  %v4066 = vshrl.u32 %v4039, 16
  %v4068 = vrot.slane %v4066, 1
  %v4069 = vrot.slane %v4044, 2
  %v4070 = vor.u32 %v4068, %v4069
  %v4071 = vsel %vm444, %v447, %v4070
  %v4072 = vshrl.u32 %v4041, 16
  %v4074 = vrot.slane %v4072, 1
  %v4075 = vrot.slane %v4048, 2
  %v4076 = vor.u32 %v4074, %v4075
  %v4077 = vsel %vm444, %v447, %v4076
  %4078 = vrot.lane.b32.xlu0 %v4071, 96
  %v4079 = vpop.permute.xlu0 %4078
  %4080 = vrot.lane.b32.xlu0 %v4077, 96
  %v4081 = vpop.permute.xlu0 %4080
  %v4082 = vrot.slane %v4039, 2
  %v4083 = vsel %vm464, %v465, %v4082
  %v4084 = vrot.slane %v4041, 2
  %v4085 = vsel %vm464, %v465, %v4084
  %v4086 = vrot.slane %v4066, 2
  %v4087 = vrot.slane %v4044, 3
  %v4088 = vor.u32 %v4086, %v4087
  %v4089 = vsel %vm470, %v473, %v4088
  %v4090 = vrot.slane %v4072, 2
  %v4091 = vrot.slane %v4048, 3
  %v4092 = vor.u32 %v4090, %v4091
  %v4093 = vsel %vm470, %v473, %v4092
  %4094 = vrot.lane.b32.xlu0 %v4089, 32
  %v4095 = vpop.permute.xlu0 %4094
  %4096 = vrot.lane.b32.xlu0 %v4093, 32
  %v4097 = vpop.permute.xlu0 %4096
  %v4098 = vrot.slane %v4039, 3
  %v4099 = vsel %vm486, %v487, %v4098
  %v4100 = vrot.slane %v4041, 3
  %v4101 = vsel %vm486, %v487, %v4100
  %4102 = vrot.lane.b32.xlu0 %v4099, 64
  %v4103 = vpop.permute.xlu0 %4102
  %4104 = vrot.lane.b32.xlu0 %v4101, 64
  %v4105 = vpop.permute.xlu0 %4104
  %v4106 = vrot.slane %v4066, 3
  %v4107 = vrot.slane %v4044, 4
  %v4108 = vor.u32 %v4106, %v4107
  %v4109 = vsel %vm496, %v499, %v4108
  %v4110 = vrot.slane %v4072, 3
  %v4111 = vrot.slane %v4048, 4
  %v4112 = vor.u32 %v4110, %v4111
  %v4113 = vsel %vm496, %v499, %v4112
  %4114 = vrot.lane.b32.xlu0 %v4109, 96
  %v4115 = vpop.permute.xlu0 %4114
  %4116 = vrot.lane.b32.xlu0 %v4113, 96
  %v4117 = vpop.permute.xlu0 %4116
  %v4119 = vsel %vm512, 0, %v4053
  %v4121 = vsel %vm512, 0, %v4055
  %v4123 = vsel %vm517, %v4119, %v4063
  %v4125 = vsel %vm517, %v4121, %v4065
  %v4127 = vsel %vm522, %v4123, %v4079
  %v4130 = vsel %vm522, %v4125, %v4081
  %v4134 = vsel %vm512, %v4083, %v4095
  %v4137 = vsel %vm512, %v4085, %v4097
  %v4139 = vsel %vm517, %v4134, %v4103
  %v4141 = vsel %vm517, %v4137, %v4105
  %v4143 = vsel %vm522, %v4139, %v4115
  %v4146 = vsel %vm522, %v4141, %v4117
  %v4148 = vor.u32 %v4066, %v4046
  %v4149 = vor.u32 %v4072, %v4050
  %4150 = vrot.lane.b32.xlu0 %v4148, 32
  %v4151 = vpop.permute.xlu0 %4150
  %4152 = vrot.lane.b32.xlu0 %v4149, 32
  %v4153 = vpop.permute.xlu0 %4152
  %4154 = vrot.lane.b32.xlu0 %v4058, 64
  %v4155 = vpop.permute.xlu0 %4154
  %4156 = vrot.lane.b32.xlu0 %v4060, 64
  %v4157 = vpop.permute.xlu0 %4156
  %4158 = vrot.lane.b32.xlu0 %v4070, 96
  %v4159 = vpop.permute.xlu0 %4158
  %4160 = vrot.lane.b32.xlu0 %v4076, 96
  %v4161 = vpop.permute.xlu0 %4160
  %4162 = vrot.lane.b32.xlu0 %v4088, 32
  %v4163 = vpop.permute.xlu0 %4162
  %4164 = vrot.lane.b32.xlu0 %v4092, 32
  %v4165 = vpop.permute.xlu0 %4164
  %4166 = vrot.lane.b32.xlu0 %v4098, 64
  %v4167 = vpop.permute.xlu0 %4166
  %4168 = vrot.lane.b32.xlu0 %v4100, 64
  %v4169 = vpop.permute.xlu0 %4168
  %v4170 = vsel %vm496, %v497, %v4108
  %v4171 = vsel %vm496, %v497, %v4112
  %4172 = vrot.lane.b32.xlu0 %v4170, 96
  %v4173 = vpop.permute.xlu0 %4172
  %4174 = vrot.lane.b32.xlu0 %v4108, 96
  %v4175 = vpop.permute.xlu0 %4174
  %4176 = vrot.lane.b32.xlu0 %v4171, 96
  %v4177 = vpop.permute.xlu0 %4176
  %4178 = vrot.lane.b32.xlu0 %v4112, 96
  %v4179 = vpop.permute.xlu0 %4178
  %v4181 = vsel %vm512, %v4039, %v4151
  %v4183 = vsel %vm512, %v4041, %v4153
  %v4185 = vsel %vm517, %v4181, %v4155
  %v4187 = vsel %vm517, %v4183, %v4157
  %v4189 = vsel %vm522, %v4185, %v4159
  %v4191 = vsel %vm522, %v4187, %v4161
  %v4194 = vsel %vm512, %v4082, %v4163
  %v4197 = vsel %vm512, %v4084, %v4165
  %v4199 = vsel %vm517, %v4194, %v4167
  %v4201 = vsel %vm517, %v4197, %v4169
  %v4203 = vsel %vm522, %v4139, %v4173
  %v4205 = vsel %vm522, %v4199, %v4175
  %v4207 = vsel %vm522, %v4141, %v4177
  %v4209 = vsel %vm522, %v4201, %v4179
  %v4218 = vrot.slane %v4127, 4
  %v4219 = vrot.slane %v4189, 4
  %v4220 = vsel %vm615, %v4218, %v4219
  %v4221 = vrot.slane %v4203, 4
  %v4222 = vrot.slane %v4205, 4
  %v4223 = vsel %vm615, %v4221, %v4222
  %v4224 = vrot.slane %v4130, 4
  %v4225 = vrot.slane %v4191, 4
  %v4226 = vsel %vm615, %v4224, %v4225
  %v4227 = vrot.slane %v4207, 4
  %v4228 = vrot.slane %v4209, 4
  %v4229 = vsel %vm615, %v4227, %v4228
  %v4266 = vunpack.c.l.b16 %v3856
  %v4267 = vunpack.c.l.b16 %v3857
  %v4268 = vunpack.c.l.b16 %v3858
  %v4269 = vunpack.c.l.b16 %v3859
  %v4270 = vunpack.c.l.b16 %v3860
  %v4271 = vunpack.c.l.b16 %v3861
  %v4272 = vunpack.c.l.b16 %v3862
  %v4273 = vunpack.c.l.b16 %v3863
  %v4274 = vunpack.c.l.b16 %v3864
  %v4275 = vunpack.c.l.b16 %v3865
  %v4276 = vunpack.c.l.b16 %v3866
  %v4277 = vunpack.c.l.b16 %v3867
  %v4278 = vunpack.c.l.b16 %v3868
  %v4279 = vunpack.c.l.b16 %v3869
  %v4280 = vunpack.c.l.b16 %v3870
  %v4281 = vunpack.c.l.b16 %v3871
  %v4282 = vunpack.c.l.b16 %v3872
  %v4283 = vunpack.c.l.b16 %v3873
  %v4284 = vunpack.c.l.b16 %v3874
  %v4285 = vunpack.c.l.b16 %v3875
  %v4286 = vunpack.c.l.b16 %v3876
  %v4287 = vunpack.c.l.b16 %v3877
  %v4288 = vunpack.c.l.b16 %v3878
  %v4289 = vunpack.c.l.b16 %v3879
  %v4290 = vunpack.c.l.b16 %v3880
  %v4291 = vunpack.c.l.b16 %v3881
  %v4292 = vunpack.c.l.b16 %v3882
  %v4293 = vunpack.c.l.b16 %v3883
  %v4294 = vunpack.c.l.b16 %v3884
  %v4295 = vunpack.c.l.b16 %v3885
  %v4296 = vunpack.c.l.b16 %v3886
  %v4297 = vunpack.c.l.b16 %v3887
  %v4298 = vpack.c.b16 %v4267, %v4266
  %v4299 = vpack.c.b16 %v4269, %v4268
  %v4300 = vpack.c.b16 %v4271, %v4270
  %v4301 = vpack.c.b16 %v4273, %v4272
  %v4302 = vpack.c.b16 %v4275, %v4274
  %v4303 = vpack.c.b16 %v4277, %v4276
  %v4304 = vpack.c.b16 %v4279, %v4278
  %v4305 = vpack.c.b16 %v4281, %v4280
  %v4306 = vpack.c.b16 %v4283, %v4282
  %v4307 = vpack.c.b16 %v4285, %v4284
  %v4308 = vpack.c.b16 %v4287, %v4286
  %v4309 = vpack.c.b16 %v4289, %v4288
  %v4310 = vpack.c.b16 %v4291, %v4290
  %v4311 = vpack.c.b16 %v4293, %v4292
  %v4312 = vpack.c.b16 %v4295, %v4294
  %v4313 = vpack.c.b16 %v4297, %v4296
  %4330 = vmatpush.bf16.msra.mxu0 %v4305
  %4331 = vmatpush.bf16.msra.mxu0 %v4304
  %4332 = vmatpush.bf16.msra.mxu0 %v4303
  %4333 = vmatpush.bf16.msra.mxu0 %v4302
  %4334 = vmatpush.bf16.msra.mxu0 %v4301
  %4335 = vmatpush.bf16.msra.mxu0 %v4300
  %4336 = vmatpush.bf16.msra.mxu0 %v4299
  %4337 = vmatpush.bf16.msra.mxu0 %v4298
  %4338 = vmatmul.bf16.gmra.mxu0 %v4220
  %v4339 = vpop.f32.mrf.mxu0
  %v4340 = vadd.f32 0.0, %v4339
  %v4341 = vpop.f32.mrf.mxu0
  %v4342 = vadd.f32 0.0, %v4341
  %4343 = vmatmul.bf16.gmra.mxu0 %v4226
  %v4344 = vpop.f32.mrf.mxu0
  %v4345 = vadd.f32 0.0, %v4344
  %v4346 = vpop.f32.mrf.mxu0
  %v4347 = vadd.f32 0.0, %v4346
  %4348 = vdwg.mxu0
  %4349 = vmatpush.bf16.msra.mxu0 %v4313
  %4350 = vmatpush.bf16.msra.mxu0 %v4312
  %4351 = vmatpush.bf16.msra.mxu0 %v4311
  %4352 = vmatpush.bf16.msra.mxu0 %v4310
  %4353 = vmatpush.bf16.msra.mxu0 %v4309
  %4354 = vmatpush.bf16.msra.mxu0 %v4308
  %4355 = vmatpush.bf16.msra.mxu0 %v4307
  %4356 = vmatpush.bf16.msra.mxu0 %v4306
  %4357 = vmatmul.bf16.gmra.mxu0 %v4223
  %v4358 = vpop.f32.mrf.mxu0
  %v4359 = vadd.f32 %v4340, %v4358
  %v4360 = vpop.f32.mrf.mxu0
  %v4361 = vadd.f32 %v4342, %v4360
  %4362 = vmatmul.bf16.gmra.mxu0 %v4229
  %v4363 = vpop.f32.mrf.mxu0
  %v4364 = vadd.f32 %v4345, %v4363
  %v4365 = vpop.f32.mrf.mxu0
  %v4366 = vadd.f32 %v4347, %v4365
  %4367 = vdwg.mxu0
  %v4400 = vunpack.c.l.b16 %v3824
  %v4401 = vunpack.c.l.b16 %v3825
  %v4402 = vunpack.c.l.b16 %v3826
  %v4403 = vunpack.c.l.b16 %v3827
  %v4404 = vunpack.c.l.b16 %v3828
  %v4405 = vunpack.c.l.b16 %v3829
  %v4406 = vunpack.c.l.b16 %v3830
  %v4407 = vunpack.c.l.b16 %v3831
  %v4408 = vunpack.c.l.b16 %v3832
  %v4409 = vunpack.c.l.b16 %v3833
  %v4410 = vunpack.c.l.b16 %v3834
  %v4411 = vunpack.c.l.b16 %v3835
  %v4412 = vunpack.c.l.b16 %v3836
  %v4413 = vunpack.c.l.b16 %v3837
  %v4414 = vunpack.c.l.b16 %v3838
  %v4415 = vunpack.c.l.b16 %v3839
  %v4416 = vunpack.c.l.b16 %v3840
  %v4417 = vunpack.c.l.b16 %v3841
  %v4418 = vunpack.c.l.b16 %v3842
  %v4419 = vunpack.c.l.b16 %v3843
  %v4420 = vunpack.c.l.b16 %v3844
  %v4421 = vunpack.c.l.b16 %v3845
  %v4422 = vunpack.c.l.b16 %v3846
  %v4423 = vunpack.c.l.b16 %v3847
  %v4424 = vunpack.c.l.b16 %v3848
  %v4425 = vunpack.c.l.b16 %v3849
  %v4426 = vunpack.c.l.b16 %v3850
  %v4427 = vunpack.c.l.b16 %v3851
  %v4428 = vunpack.c.l.b16 %v3852
  %v4429 = vunpack.c.l.b16 %v3853
  %v4430 = vunpack.c.l.b16 %v3854
  %v4431 = vunpack.c.l.b16 %v3855
  %v4432 = vpack.c.b16 %v4401, %v4400
  %v4433 = vpack.c.b16 %v4403, %v4402
  %v4434 = vpack.c.b16 %v4405, %v4404
  %v4435 = vpack.c.b16 %v4407, %v4406
  %v4436 = vpack.c.b16 %v4409, %v4408
  %v4437 = vpack.c.b16 %v4411, %v4410
  %v4438 = vpack.c.b16 %v4413, %v4412
  %v4439 = vpack.c.b16 %v4415, %v4414
  %v4440 = vpack.c.b16 %v4417, %v4416
  %v4441 = vpack.c.b16 %v4419, %v4418
  %v4442 = vpack.c.b16 %v4421, %v4420
  %v4443 = vpack.c.b16 %v4423, %v4422
  %v4444 = vpack.c.b16 %v4425, %v4424
  %v4445 = vpack.c.b16 %v4427, %v4426
  %v4446 = vpack.c.b16 %v4429, %v4428
  %v4447 = vpack.c.b16 %v4431, %v4430
  %4464 = vmatpush.bf16.msra.mxu0 %v4439
  %4465 = vmatpush.bf16.msra.mxu0 %v4438
  %4466 = vmatpush.bf16.msra.mxu0 %v4437
  %4467 = vmatpush.bf16.msra.mxu0 %v4436
  %4468 = vmatpush.bf16.msra.mxu0 %v4435
  %4469 = vmatpush.bf16.msra.mxu0 %v4434
  %4470 = vmatpush.bf16.msra.mxu0 %v4433
  %4471 = vmatpush.bf16.msra.mxu0 %v4432
  %4472 = vmatmul.bf16.gmra.mxu0 %v4127
  %v4473 = vpop.f32.mrf.mxu0
  %v4474 = vadd.f32 %v4359, %v4473
  %v4475 = vpop.f32.mrf.mxu0
  %v4476 = vadd.f32 %v4361, %v4475
  %4477 = vmatmul.bf16.gmra.mxu0 %v4130
  %v4478 = vpop.f32.mrf.mxu0
  %v4479 = vadd.f32 %v4364, %v4478
  %v4480 = vpop.f32.mrf.mxu0
  %v4481 = vadd.f32 %v4366, %v4480
  %4482 = vdwg.mxu0
  %4483 = vmatpush.bf16.msra.mxu0 %v4447
  %4484 = vmatpush.bf16.msra.mxu0 %v4446
  %4485 = vmatpush.bf16.msra.mxu0 %v4445
  %4486 = vmatpush.bf16.msra.mxu0 %v4444
  %4487 = vmatpush.bf16.msra.mxu0 %v4443
  %4488 = vmatpush.bf16.msra.mxu0 %v4442
  %4489 = vmatpush.bf16.msra.mxu0 %v4441
  %4490 = vmatpush.bf16.msra.mxu0 %v4440
  %4491 = vmatmul.bf16.gmra.mxu0 %v4143
  %v4492 = vpop.f32.mrf.mxu0
  %v4493 = vadd.f32 %v4474, %v4492
  %v4494 = vpop.f32.mrf.mxu0
  %v4495 = vadd.f32 %v4476, %v4494
  %4496 = vmatmul.bf16.gmra.mxu0 %v4146
  %v4497 = vpop.f32.mrf.mxu0
  %v4498 = vadd.f32 %v4479, %v4497
  %v4499 = vpop.f32.mrf.mxu0
  %v4500 = vadd.f32 %v4481, %v4499
  %4501 = vdwg.mxu0
  %v4502 = vshll.u32 %v4042, 16
  %v4504 = vrot.slane %v4502, 1
  %v4505 = vsel %vm412, %v4148, %v4504
  %v4506 = vshll.u32 %v4043, 16
  %v4508 = vrot.slane %v4506, 1
  %v4509 = vsel %vm412, %v4149, %v4508
  %4510 = vrot.lane.b32.xlu0 %v4505, 32
  %v4511 = vpop.permute.xlu0 %4510
  %4512 = vrot.lane.b32.xlu0 %v4509, 32
  %v4513 = vpop.permute.xlu0 %4512
  %v4516 = vrot.slane %v4042, 1
  %v4517 = vsel %vm434, %v4058, %v4516
  %v4518 = vrot.slane %v4043, 1
  %v4519 = vsel %vm434, %v4060, %v4518
  %4520 = vrot.lane.b32.xlu0 %v4517, 64
  %v4521 = vpop.permute.xlu0 %4520
  %4522 = vrot.lane.b32.xlu0 %v4519, 64
  %v4523 = vpop.permute.xlu0 %4522
  %v4524 = vshrl.u32 %v4042, 16
  %v4526 = vrot.slane %v4524, 1
  %v4527 = vrot.slane %v4502, 2
  %v4528 = vor.u32 %v4526, %v4527
  %v4529 = vsel %vm444, %v4070, %v4528
  %v4530 = vshrl.u32 %v4043, 16
  %v4532 = vrot.slane %v4530, 1
  %v4533 = vrot.slane %v4506, 2
  %v4534 = vor.u32 %v4532, %v4533
  %v4535 = vsel %vm444, %v4076, %v4534
  %4536 = vrot.lane.b32.xlu0 %v4529, 96
  %v4537 = vpop.permute.xlu0 %4536
  %4538 = vrot.lane.b32.xlu0 %v4535, 96
  %v4539 = vpop.permute.xlu0 %4538
  %v4540 = vrot.slane %v4042, 2
  %v4541 = vsel %vm464, %v4082, %v4540
  %v4542 = vrot.slane %v4043, 2
  %v4543 = vsel %vm464, %v4084, %v4542
  %v4544 = vrot.slane %v4524, 2
  %v4545 = vrot.slane %v4502, 3
  %v4546 = vor.u32 %v4544, %v4545
  %v4547 = vsel %vm470, %v4088, %v4546
  %v4548 = vrot.slane %v4530, 2
  %v4549 = vrot.slane %v4506, 3
  %v4550 = vor.u32 %v4548, %v4549
  %v4551 = vsel %vm470, %v4092, %v4550
  %4552 = vrot.lane.b32.xlu0 %v4547, 32
  %v4553 = vpop.permute.xlu0 %4552
  %4554 = vrot.lane.b32.xlu0 %v4551, 32
  %v4555 = vpop.permute.xlu0 %4554
  %v4556 = vrot.slane %v4042, 3
  %v4557 = vsel %vm486, %v4098, %v4556
  %v4558 = vrot.slane %v4043, 3
  %v4559 = vsel %vm486, %v4100, %v4558
  %4560 = vrot.lane.b32.xlu0 %v4557, 64
  %v4561 = vpop.permute.xlu0 %4560
  %4562 = vrot.lane.b32.xlu0 %v4559, 64
  %v4563 = vpop.permute.xlu0 %4562
  %v4564 = vrot.slane %v4524, 3
  %v4565 = vrot.slane %v4502, 4
  %v4566 = vor.u32 %v4564, %v4565
  %v4567 = vsel %vm496, %v4108, %v4566
  %v4568 = vrot.slane %v4530, 3
  %v4569 = vrot.slane %v4506, 4
  %v4570 = vor.u32 %v4568, %v4569
  %v4571 = vsel %vm496, %v4112, %v4570
  %4572 = vrot.lane.b32.xlu0 %v4567, 96
  %v4573 = vpop.permute.xlu0 %4572
  %4574 = vrot.lane.b32.xlu0 %v4571, 96
  %v4575 = vpop.permute.xlu0 %4574
  %v4577 = vsel %vm512, %v4039, %v4511
  %v4579 = vsel %vm512, %v4041, %v4513
  %v4581 = vsel %vm517, %v4577, %v4521
  %v4583 = vsel %vm517, %v4579, %v4523
  %v4585 = vsel %vm522, %v4581, %v4537
  %v4588 = vsel %vm522, %v4583, %v4539
  %v4592 = vsel %vm512, %v4541, %v4553
  %v4595 = vsel %vm512, %v4543, %v4555
  %v4597 = vsel %vm517, %v4592, %v4561
  %v4599 = vsel %vm517, %v4595, %v4563
  %v4601 = vsel %vm522, %v4597, %v4573
  %v4604 = vsel %vm522, %v4599, %v4575
  %v4638 = vunpack.c.l.b16 %v3888
  %v4639 = vunpack.c.l.b16 %v3889
  %v4640 = vunpack.c.l.b16 %v3890
  %v4641 = vunpack.c.l.b16 %v3891
  %v4642 = vunpack.c.l.b16 %v3892
  %v4643 = vunpack.c.l.b16 %v3893
  %v4644 = vunpack.c.l.b16 %v3894
  %v4645 = vunpack.c.l.b16 %v3895
  %v4646 = vunpack.c.l.b16 %v3896
  %v4647 = vunpack.c.l.b16 %v3897
  %v4648 = vunpack.c.l.b16 %v3898
  %v4649 = vunpack.c.l.b16 %v3899
  %v4650 = vunpack.c.l.b16 %v3900
  %v4651 = vunpack.c.l.b16 %v3901
  %v4652 = vunpack.c.l.b16 %v3902
  %v4653 = vunpack.c.l.b16 %v3903
  %v4654 = vunpack.c.l.b16 %v3904
  %v4655 = vunpack.c.l.b16 %v3905
  %v4656 = vunpack.c.l.b16 %v3906
  %v4657 = vunpack.c.l.b16 %v3907
  %v4658 = vunpack.c.l.b16 %v3908
  %v4659 = vunpack.c.l.b16 %v3909
  %v4660 = vunpack.c.l.b16 %v3910
  %v4661 = vunpack.c.l.b16 %v3911
  %v4662 = vunpack.c.l.b16 %v3912
  %v4663 = vunpack.c.l.b16 %v3913
  %v4664 = vunpack.c.l.b16 %v3914
  %v4665 = vunpack.c.l.b16 %v3915
  %v4666 = vunpack.c.l.b16 %v3916
  %v4667 = vunpack.c.l.b16 %v3917
  %v4668 = vunpack.c.l.b16 %v3918
  %v4669 = vunpack.c.l.b16 %v3919
  %v4670 = vpack.c.b16 %v4639, %v4638
  %v4671 = vpack.c.b16 %v4641, %v4640
  %v4672 = vpack.c.b16 %v4643, %v4642
  %v4673 = vpack.c.b16 %v4645, %v4644
  %v4674 = vpack.c.b16 %v4647, %v4646
  %v4675 = vpack.c.b16 %v4649, %v4648
  %v4676 = vpack.c.b16 %v4651, %v4650
  %v4677 = vpack.c.b16 %v4653, %v4652
  %v4678 = vpack.c.b16 %v4655, %v4654
  %v4679 = vpack.c.b16 %v4657, %v4656
  %v4680 = vpack.c.b16 %v4659, %v4658
  %v4681 = vpack.c.b16 %v4661, %v4660
  %v4682 = vpack.c.b16 %v4663, %v4662
  %v4683 = vpack.c.b16 %v4665, %v4664
  %v4684 = vpack.c.b16 %v4667, %v4666
  %v4685 = vpack.c.b16 %v4669, %v4668
  %4702 = vmatpush.bf16.msra.mxu0 %v4677
  %4703 = vmatpush.bf16.msra.mxu0 %v4676
  %4704 = vmatpush.bf16.msra.mxu0 %v4675
  %4705 = vmatpush.bf16.msra.mxu0 %v4674
  %4706 = vmatpush.bf16.msra.mxu0 %v4673
  %4707 = vmatpush.bf16.msra.mxu0 %v4672
  %4708 = vmatpush.bf16.msra.mxu0 %v4671
  %4709 = vmatpush.bf16.msra.mxu0 %v4670
  %4710 = vmatmul.bf16.gmra.mxu0 %v4585
  %v4711 = vpop.f32.mrf.mxu0
  %v4712 = vadd.f32 0.0, %v4711
  %v4713 = vpop.f32.mrf.mxu0
  %v4714 = vadd.f32 0.0, %v4713
  %4715 = vmatmul.bf16.gmra.mxu0 %v4588
  %v4716 = vpop.f32.mrf.mxu0
  %v4717 = vadd.f32 0.0, %v4716
  %v4718 = vpop.f32.mrf.mxu0
  %v4719 = vadd.f32 0.0, %v4718
  %4720 = vdwg.mxu0
  %4721 = vmatpush.bf16.msra.mxu0 %v4685
  %4722 = vmatpush.bf16.msra.mxu0 %v4684
  %4723 = vmatpush.bf16.msra.mxu0 %v4683
  %4724 = vmatpush.bf16.msra.mxu0 %v4682
  %4725 = vmatpush.bf16.msra.mxu0 %v4681
  %4726 = vmatpush.bf16.msra.mxu0 %v4680
  %4727 = vmatpush.bf16.msra.mxu0 %v4679
  %4728 = vmatpush.bf16.msra.mxu0 %v4678
  %4729 = vmatmul.bf16.gmra.mxu0 %v4601
  %v4730 = vpop.f32.mrf.mxu0
  %v4731 = vadd.f32 %v4712, %v4730
  %v4732 = vpop.f32.mrf.mxu0
  %v4733 = vadd.f32 %v4714, %v4732
  %4734 = vmatmul.bf16.gmra.mxu0 %v4604
  %v4735 = vpop.f32.mrf.mxu0
  %v4736 = vadd.f32 %v4717, %v4735
  %v4737 = vpop.f32.mrf.mxu0
  %v4738 = vadd.f32 %v4719, %v4737
  %4739 = vdwg.mxu0
  %v4740 = vadd.f32 %v4493, %v4731
  %v4741 = vadd.f32 %v4495, %v4733
  %v4742 = vadd.f32 %v4498, %v4736
  %v4743 = vadd.f32 %v4500, %v4738
  %v4744 = vor.u32 %v4524, %v4504
  %v4745 = vor.u32 %v4530, %v4508
  %4746 = vrot.lane.b32.xlu0 %v4744, 32
  %v4747 = vpop.permute.xlu0 %4746
  %4748 = vrot.lane.b32.xlu0 %v4745, 32
  %v4749 = vpop.permute.xlu0 %4748
  %4750 = vrot.lane.b32.xlu0 %v4516, 64
  %v4751 = vpop.permute.xlu0 %4750
  %4752 = vrot.lane.b32.xlu0 %v4518, 64
  %v4753 = vpop.permute.xlu0 %4752
  %4754 = vrot.lane.b32.xlu0 %v4528, 96
  %v4755 = vpop.permute.xlu0 %4754
  %4756 = vrot.lane.b32.xlu0 %v4534, 96
  %v4757 = vpop.permute.xlu0 %4756
  %4758 = vrot.lane.b32.xlu0 %v4546, 32
  %v4759 = vpop.permute.xlu0 %4758
  %4760 = vrot.lane.b32.xlu0 %v4550, 32
  %v4761 = vpop.permute.xlu0 %4760
  %4762 = vrot.lane.b32.xlu0 %v4556, 64
  %v4763 = vpop.permute.xlu0 %4762
  %4764 = vrot.lane.b32.xlu0 %v4558, 64
  %v4765 = vpop.permute.xlu0 %4764
  %v4766 = vsel %vm496, %v4106, %v4566
  %v4767 = vsel %vm496, %v4110, %v4570
  %4768 = vrot.lane.b32.xlu0 %v4766, 96
  %v4769 = vpop.permute.xlu0 %4768
  %4770 = vrot.lane.b32.xlu0 %v4566, 96
  %v4771 = vpop.permute.xlu0 %4770
  %4772 = vrot.lane.b32.xlu0 %v4767, 96
  %v4773 = vpop.permute.xlu0 %4772
  %4774 = vrot.lane.b32.xlu0 %v4570, 96
  %v4775 = vpop.permute.xlu0 %4774
  %v4777 = vsel %vm512, %v4042, %v4747
  %v4779 = vsel %vm512, %v4043, %v4749
  %v4781 = vsel %vm517, %v4777, %v4751
  %v4783 = vsel %vm517, %v4779, %v4753
  %v4785 = vsel %vm522, %v4781, %v4755
  %v4787 = vsel %vm522, %v4783, %v4757
  %v4790 = vsel %vm512, %v4540, %v4759
  %v4793 = vsel %vm512, %v4542, %v4761
  %v4795 = vsel %vm517, %v4790, %v4763
  %v4797 = vsel %vm517, %v4793, %v4765
  %v4799 = vsel %vm522, %v4597, %v4769
  %v4801 = vsel %vm522, %v4795, %v4771
  %v4803 = vsel %vm522, %v4599, %v4773
  %v4805 = vsel %vm522, %v4797, %v4775
  %v4814 = vrot.slane %v4585, 4
  %v4815 = vrot.slane %v4785, 4
  %v4816 = vsel %vm615, %v4814, %v4815
  %v4817 = vrot.slane %v4799, 4
  %v4818 = vrot.slane %v4801, 4
  %v4819 = vsel %vm615, %v4817, %v4818
  %v4820 = vrot.slane %v4588, 4
  %v4821 = vrot.slane %v4787, 4
  %v4822 = vsel %vm615, %v4820, %v4821
  %v4823 = vrot.slane %v4803, 4
  %v4824 = vrot.slane %v4805, 4
  %v4825 = vsel %vm615, %v4823, %v4824
  %v4862 = vunpack.c.l.b16 %v3920
  %v4863 = vunpack.c.l.b16 %v3921
  %v4864 = vunpack.c.l.b16 %v3922
  %v4865 = vunpack.c.l.b16 %v3923
  %v4866 = vunpack.c.l.b16 %v3924
  %v4867 = vunpack.c.l.b16 %v3925
  %v4868 = vunpack.c.l.b16 %v3926
  %v4869 = vunpack.c.l.b16 %v3927
  %v4870 = vunpack.c.l.b16 %v3928
  %v4871 = vunpack.c.l.b16 %v3929
  %v4872 = vunpack.c.l.b16 %v3930
  %v4873 = vunpack.c.l.b16 %v3931
  %v4874 = vunpack.c.l.b16 %v3932
  %v4875 = vunpack.c.l.b16 %v3933
  %v4876 = vunpack.c.l.b16 %v3934
  %v4877 = vunpack.c.l.b16 %v3935
  %v4878 = vunpack.c.l.b16 %v3936
  %v4879 = vunpack.c.l.b16 %v3937
  %v4880 = vunpack.c.l.b16 %v3938
  %v4881 = vunpack.c.l.b16 %v3939
  %v4882 = vunpack.c.l.b16 %v3940
  %v4883 = vunpack.c.l.b16 %v3941
  %v4884 = vunpack.c.l.b16 %v3942
  %v4885 = vunpack.c.l.b16 %v3943
  %v4886 = vunpack.c.l.b16 %v3944
  %v4887 = vunpack.c.l.b16 %v3945
  %v4888 = vunpack.c.l.b16 %v3946
  %v4889 = vunpack.c.l.b16 %v3947
  %v4890 = vunpack.c.l.b16 %v3948
  %v4891 = vunpack.c.l.b16 %v3949
  %v4892 = vunpack.c.l.b16 %v3950
  %v4893 = vunpack.c.l.b16 %v3951
  %v4894 = vpack.c.b16 %v4863, %v4862
  %v4895 = vpack.c.b16 %v4865, %v4864
  %v4896 = vpack.c.b16 %v4867, %v4866
  %v4897 = vpack.c.b16 %v4869, %v4868
  %v4898 = vpack.c.b16 %v4871, %v4870
  %v4899 = vpack.c.b16 %v4873, %v4872
  %v4900 = vpack.c.b16 %v4875, %v4874
  %v4901 = vpack.c.b16 %v4877, %v4876
  %v4902 = vpack.c.b16 %v4879, %v4878
  %v4903 = vpack.c.b16 %v4881, %v4880
  %v4904 = vpack.c.b16 %v4883, %v4882
  %v4905 = vpack.c.b16 %v4885, %v4884
  %v4906 = vpack.c.b16 %v4887, %v4886
  %v4907 = vpack.c.b16 %v4889, %v4888
  %v4908 = vpack.c.b16 %v4891, %v4890
  %v4909 = vpack.c.b16 %v4893, %v4892
  %4926 = vmatpush.bf16.msra.mxu0 %v4901
  %4927 = vmatpush.bf16.msra.mxu0 %v4900
  %4928 = vmatpush.bf16.msra.mxu0 %v4899
  %4929 = vmatpush.bf16.msra.mxu0 %v4898
  %4930 = vmatpush.bf16.msra.mxu0 %v4897
  %4931 = vmatpush.bf16.msra.mxu0 %v4896
  %4932 = vmatpush.bf16.msra.mxu0 %v4895
  %4933 = vmatpush.bf16.msra.mxu0 %v4894
  %4934 = vmatmul.bf16.gmra.mxu0 %v4816
  %v4935 = vpop.f32.mrf.mxu0
  %v4936 = vadd.f32 0.0, %v4935
  %v4937 = vpop.f32.mrf.mxu0
  %v4938 = vadd.f32 0.0, %v4937
  %4939 = vmatmul.bf16.gmra.mxu0 %v4822
  %v4940 = vpop.f32.mrf.mxu0
  %v4941 = vadd.f32 0.0, %v4940
  %v4942 = vpop.f32.mrf.mxu0
  %v4943 = vadd.f32 0.0, %v4942
  %4944 = vdwg.mxu0
  %4945 = vmatpush.bf16.msra.mxu0 %v4909
  %4946 = vmatpush.bf16.msra.mxu0 %v4908
  %4947 = vmatpush.bf16.msra.mxu0 %v4907
  %4948 = vmatpush.bf16.msra.mxu0 %v4906
  %4949 = vmatpush.bf16.msra.mxu0 %v4905
  %4950 = vmatpush.bf16.msra.mxu0 %v4904
  %4951 = vmatpush.bf16.msra.mxu0 %v4903
  %4952 = vmatpush.bf16.msra.mxu0 %v4902
  %4953 = vmatmul.bf16.gmra.mxu0 %v4819
  %v4954 = vpop.f32.mrf.mxu0
  %v4955 = vadd.f32 %v4936, %v4954
  %v4956 = vpop.f32.mrf.mxu0
  %v4957 = vadd.f32 %v4938, %v4956
  %4958 = vmatmul.bf16.gmra.mxu0 %v4825
  %v4959 = vpop.f32.mrf.mxu0
  %v4960 = vadd.f32 %v4941, %v4959
  %v4961 = vpop.f32.mrf.mxu0
  %v4962 = vadd.f32 %v4943, %v4961
  %4963 = vdwg.mxu0
  %v4964 = vadd.f32 %v4740, %v4955
  %v4965 = vadd.f32 %v4741, %v4957
  %v4966 = vadd.f32 %v4742, %v4960
  %v4967 = vadd.f32 %v4743, %v4962
  %v4968 = vsel %vm412, %v4744, %v417
  %v4969 = vsel %vm412, %v4745, %v417
  %4970 = vrot.lane.b32.xlu0 %v4968, 32
  %v4971 = vpop.permute.xlu0 %4970
  %4972 = vrot.lane.b32.xlu0 %v4969, 32
  %v4973 = vpop.permute.xlu0 %4972
  %v4974 = vsel %vm434, %v4516, %v435
  %v4975 = vsel %vm434, %v4518, %v435
  %4976 = vrot.lane.b32.xlu0 %v4974, 64
  %v4977 = vpop.permute.xlu0 %4976
  %4978 = vrot.lane.b32.xlu0 %v4975, 64
  %v4979 = vpop.permute.xlu0 %4978
  %v4980 = vsel %vm444, %v4528, %v447
  %v4981 = vsel %vm444, %v4534, %v447
  %4982 = vrot.lane.b32.xlu0 %v4980, 96
  %v4983 = vpop.permute.xlu0 %4982
  %4984 = vrot.lane.b32.xlu0 %v4981, 96
  %v4985 = vpop.permute.xlu0 %4984
  %v4986 = vsel %vm464, %v4540, %v465
  %v4987 = vsel %vm464, %v4542, %v465
  %v4988 = vsel %vm470, %v4546, %v473
  %v4989 = vsel %vm470, %v4550, %v473
  %4990 = vrot.lane.b32.xlu0 %v4988, 32
  %v4991 = vpop.permute.xlu0 %4990
  %4992 = vrot.lane.b32.xlu0 %v4989, 32
  %v4993 = vpop.permute.xlu0 %4992
  %v4994 = vsel %vm486, %v4556, %v487
  %v4995 = vsel %vm486, %v4558, %v487
  %4996 = vrot.lane.b32.xlu0 %v4994, 64
  %v4997 = vpop.permute.xlu0 %4996
  %4998 = vrot.lane.b32.xlu0 %v4995, 64
  %v4999 = vpop.permute.xlu0 %4998
  %v5000 = vsel %vm496, %v4566, %v499
  %v5001 = vsel %vm496, %v4570, %v499
  %5002 = vrot.lane.b32.xlu0 %v5000, 96
  %v5003 = vpop.permute.xlu0 %5002
  %5004 = vrot.lane.b32.xlu0 %v5001, 96
  %v5005 = vpop.permute.xlu0 %5004
  %v5007 = vsel %vm512, %v4042, %v4971
  %v5009 = vsel %vm512, %v4043, %v4973
  %v5011 = vsel %vm517, %v5007, %v4977
  %v5013 = vsel %vm517, %v5009, %v4979
  %v5015 = vsel %vm522, %v5011, %v4983
  %v5018 = vsel %vm522, %v5013, %v4985
  %v5022 = vsel %vm512, %v4986, %v4991
  %v5025 = vsel %vm512, %v4987, %v4993
  %v5027 = vsel %vm517, %v5022, %v4997
  %v5029 = vsel %vm517, %v5025, %v4999
  %v5031 = vsel %vm522, %v5027, %v5003
  %v5034 = vsel %vm522, %v5029, %v5005
  %v5068 = vunpack.c.l.b16 %v3952
  %v5069 = vunpack.c.l.b16 %v3953
  %v5070 = vunpack.c.l.b16 %v3954
  %v5071 = vunpack.c.l.b16 %v3955
  %v5072 = vunpack.c.l.b16 %v3956
  %v5073 = vunpack.c.l.b16 %v3957
  %v5074 = vunpack.c.l.b16 %v3958
  %v5075 = vunpack.c.l.b16 %v3959
  %v5076 = vunpack.c.l.b16 %v3960
  %v5077 = vunpack.c.l.b16 %v3961
  %v5078 = vunpack.c.l.b16 %v3962
  %v5079 = vunpack.c.l.b16 %v3963
  %v5080 = vunpack.c.l.b16 %v3964
  %v5081 = vunpack.c.l.b16 %v3965
  %v5082 = vunpack.c.l.b16 %v3966
  %v5083 = vunpack.c.l.b16 %v3967
  %v5084 = vunpack.c.l.b16 %v3968
  %v5085 = vunpack.c.l.b16 %v3969
  %v5086 = vunpack.c.l.b16 %v3970
  %v5087 = vunpack.c.l.b16 %v3971
  %v5088 = vunpack.c.l.b16 %v3972
  %v5089 = vunpack.c.l.b16 %v3973
  %v5090 = vunpack.c.l.b16 %v3974
  %v5091 = vunpack.c.l.b16 %v3975
  %v5092 = vunpack.c.l.b16 %v3976
  %v5093 = vunpack.c.l.b16 %v3977
  %v5094 = vunpack.c.l.b16 %v3978
  %v5095 = vunpack.c.l.b16 %v3979
  %v5096 = vunpack.c.l.b16 %v3980
  %v5097 = vunpack.c.l.b16 %v3981
  %v5098 = vunpack.c.l.b16 %v3982
  %v5099 = vunpack.c.l.b16 %v3983
  %v5100 = vpack.c.b16 %v5069, %v5068
  %v5101 = vpack.c.b16 %v5071, %v5070
  %v5102 = vpack.c.b16 %v5073, %v5072
  %v5103 = vpack.c.b16 %v5075, %v5074
  %v5104 = vpack.c.b16 %v5077, %v5076
  %v5105 = vpack.c.b16 %v5079, %v5078
  %v5106 = vpack.c.b16 %v5081, %v5080
  %v5107 = vpack.c.b16 %v5083, %v5082
  %v5108 = vpack.c.b16 %v5085, %v5084
  %v5109 = vpack.c.b16 %v5087, %v5086
  %v5110 = vpack.c.b16 %v5089, %v5088
  %v5111 = vpack.c.b16 %v5091, %v5090
  %v5112 = vpack.c.b16 %v5093, %v5092
  %v5113 = vpack.c.b16 %v5095, %v5094
  %v5114 = vpack.c.b16 %v5097, %v5096
  %v5115 = vpack.c.b16 %v5099, %v5098
  %5132 = vmatpush.bf16.msra.mxu0 %v5107
  %5133 = vmatpush.bf16.msra.mxu0 %v5106
  %5134 = vmatpush.bf16.msra.mxu0 %v5105
  %5135 = vmatpush.bf16.msra.mxu0 %v5104
  %5136 = vmatpush.bf16.msra.mxu0 %v5103
  %5137 = vmatpush.bf16.msra.mxu0 %v5102
  %5138 = vmatpush.bf16.msra.mxu0 %v5101
  %5139 = vmatpush.bf16.msra.mxu0 %v5100
  %5140 = vmatmul.bf16.gmra.mxu0 %v5015
  %v5141 = vpop.f32.mrf.mxu0
  %v5142 = vadd.f32 0.0, %v5141
  %v5143 = vpop.f32.mrf.mxu0
  %v5144 = vadd.f32 0.0, %v5143
  %5145 = vmatmul.bf16.gmra.mxu0 %v5018
  %v5146 = vpop.f32.mrf.mxu0
  %v5147 = vadd.f32 0.0, %v5146
  %v5148 = vpop.f32.mrf.mxu0
  %v5149 = vadd.f32 0.0, %v5148
  %5150 = vdwg.mxu0
  %5151 = vmatpush.bf16.msra.mxu0 %v5115
  %5152 = vmatpush.bf16.msra.mxu0 %v5114
  %5153 = vmatpush.bf16.msra.mxu0 %v5113
  %5154 = vmatpush.bf16.msra.mxu0 %v5112
  %5155 = vmatpush.bf16.msra.mxu0 %v5111
  %5156 = vmatpush.bf16.msra.mxu0 %v5110
  %5157 = vmatpush.bf16.msra.mxu0 %v5109
  %5158 = vmatpush.bf16.msra.mxu0 %v5108
  %5159 = vmatmul.bf16.gmra.mxu0 %v5031
  %v5160 = vpop.f32.mrf.mxu0
  %v5161 = vadd.f32 %v5142, %v5160
  %v5162 = vpop.f32.mrf.mxu0
  %v5163 = vadd.f32 %v5144, %v5162
  %5164 = vmatmul.bf16.gmra.mxu0 %v5034
  %v5165 = vpop.f32.mrf.mxu0
  %v5166 = vadd.f32 %v5147, %v5165
  %v5167 = vpop.f32.mrf.mxu0
  %v5168 = vadd.f32 %v5149, %v5167
  %5169 = vdwg.mxu0
  %v5170 = vadd.f32 %v4964, %v5161
  %v5171 = vadd.f32 %v4965, %v5163
  %v5172 = vadd.f32 %v4966, %v5166
  %v5173 = vadd.f32 %v4967, %v5168
  %v5174 = vsel %vm496, %v4564, %v499
  %v5175 = vsel %vm496, %v4568, %v499
  %5176 = vrot.lane.b32.xlu0 %v5174, 96
  %v5177 = vpop.permute.xlu0 %5176
  %5178 = vrot.lane.b32.xlu0 %v5175, 96
  %v5179 = vpop.permute.xlu0 %5178
  %v5181 = vsel %vm522, %v5027, %v5177
  %v5183 = vsel %vm522, %v5029, %v5179
  %v5188 = vrot.slane %v5015, 4
  %v5189 = vsel %vm615, %v5188, %v1614
  %v5190 = vrot.slane %v5181, 4
  %v5191 = vsel %vm615, %v5190, %v1617
  %v5192 = vrot.slane %v5018, 4
  %v5193 = vsel %vm615, %v5192, %v1614
  %v5194 = vrot.slane %v5183, 4
  %v5195 = vsel %vm615, %v5194, %v1617
  %v5232 = vunpack.c.l.b16 %v3984
  %v5233 = vunpack.c.l.b16 %v3985
  %v5234 = vunpack.c.l.b16 %v3986
  %v5235 = vunpack.c.l.b16 %v3987
  %v5236 = vunpack.c.l.b16 %v3988
  %v5237 = vunpack.c.l.b16 %v3989
  %v5238 = vunpack.c.l.b16 %v3990
  %v5239 = vunpack.c.l.b16 %v3991
  %v5240 = vunpack.c.l.b16 %v3992
  %v5241 = vunpack.c.l.b16 %v3993
  %v5242 = vunpack.c.l.b16 %v3994
  %v5243 = vunpack.c.l.b16 %v3995
  %v5244 = vunpack.c.l.b16 %v3996
  %v5245 = vunpack.c.l.b16 %v3997
  %v5246 = vunpack.c.l.b16 %v3998
  %v5247 = vunpack.c.l.b16 %v3999
  %v5248 = vunpack.c.l.b16 %v4000
  %v5249 = vunpack.c.l.b16 %v4001
  %v5250 = vunpack.c.l.b16 %v4002
  %v5251 = vunpack.c.l.b16 %v4003
  %v5252 = vunpack.c.l.b16 %v4004
  %v5253 = vunpack.c.l.b16 %v4005
  %v5254 = vunpack.c.l.b16 %v4006
  %v5255 = vunpack.c.l.b16 %v4007
  %v5256 = vunpack.c.l.b16 %v4008
  %v5257 = vunpack.c.l.b16 %v4009
  %v5258 = vunpack.c.l.b16 %v4010
  %v5259 = vunpack.c.l.b16 %v4011
  %v5260 = vunpack.c.l.b16 %v4012
  %v5261 = vunpack.c.l.b16 %v4013
  %v5262 = vunpack.c.l.b16 %v4014
  %v5263 = vunpack.c.l.b16 %v4015
  %v5264 = vpack.c.b16 %v5233, %v5232
  %v5265 = vpack.c.b16 %v5235, %v5234
  %v5266 = vpack.c.b16 %v5237, %v5236
  %v5267 = vpack.c.b16 %v5239, %v5238
  %v5268 = vpack.c.b16 %v5241, %v5240
  %v5269 = vpack.c.b16 %v5243, %v5242
  %v5270 = vpack.c.b16 %v5245, %v5244
  %v5271 = vpack.c.b16 %v5247, %v5246
  %v5272 = vpack.c.b16 %v5249, %v5248
  %v5273 = vpack.c.b16 %v5251, %v5250
  %v5274 = vpack.c.b16 %v5253, %v5252
  %v5275 = vpack.c.b16 %v5255, %v5254
  %v5276 = vpack.c.b16 %v5257, %v5256
  %v5277 = vpack.c.b16 %v5259, %v5258
  %v5278 = vpack.c.b16 %v5261, %v5260
  %v5279 = vpack.c.b16 %v5263, %v5262
  %5296 = vmatpush.bf16.msra.mxu0 %v5271
  %5297 = vmatpush.bf16.msra.mxu0 %v5270
  %5298 = vmatpush.bf16.msra.mxu0 %v5269
  %5299 = vmatpush.bf16.msra.mxu0 %v5268
  %5300 = vmatpush.bf16.msra.mxu0 %v5267
  %5301 = vmatpush.bf16.msra.mxu0 %v5266
  %5302 = vmatpush.bf16.msra.mxu0 %v5265
  %5303 = vmatpush.bf16.msra.mxu0 %v5264
  %5304 = vmatmul.bf16.gmra.mxu0 %v5189
  %v5305 = vpop.f32.mrf.mxu0
  %v5306 = vadd.f32 0.0, %v5305
  %v5307 = vpop.f32.mrf.mxu0
  %v5308 = vadd.f32 0.0, %v5307
  %5309 = vmatmul.bf16.gmra.mxu0 %v5193
  %v5310 = vpop.f32.mrf.mxu0
  %v5311 = vadd.f32 0.0, %v5310
  %v5312 = vpop.f32.mrf.mxu0
  %v5313 = vadd.f32 0.0, %v5312
  %5314 = vdwg.mxu0
  %5315 = vmatpush.bf16.msra.mxu0 %v5279
  %5316 = vmatpush.bf16.msra.mxu0 %v5278
  %5317 = vmatpush.bf16.msra.mxu0 %v5277
  %5318 = vmatpush.bf16.msra.mxu0 %v5276
  %5319 = vmatpush.bf16.msra.mxu0 %v5275
  %5320 = vmatpush.bf16.msra.mxu0 %v5274
  %5321 = vmatpush.bf16.msra.mxu0 %v5273
  %5322 = vmatpush.bf16.msra.mxu0 %v5272
  %5323 = vmatmul.bf16.gmra.mxu0 %v5191
  %v5324 = vpop.f32.mrf.mxu0
  %v5325 = vadd.f32 %v5306, %v5324
  %v5326 = vpop.f32.mrf.mxu0
  %v5327 = vadd.f32 %v5308, %v5326
  %5328 = vmatmul.bf16.gmra.mxu0 %v5195
  %v5329 = vpop.f32.mrf.mxu0
  %v5330 = vadd.f32 %v5311, %v5329
  %v5331 = vpop.f32.mrf.mxu0
  %v5332 = vadd.f32 %v5313, %v5331
  %5333 = vdwg.mxu0
  %v5334 = vadd.f32 %v5170, %v5325
  %v5335 = vadd.f32 %v5171, %v5327
  %v5336 = vadd.f32 %v5172, %v5330
  %v5337 = vadd.f32 %v5173, %v5332
  %v5338 = vshrl.u32 %v3785, 16
  %v5340 = vrot.slane %v5338, 7
  %v5341 = vshll.u32 %v3785, 16
  %v5343 = vor.u32 %v5340, %v5341
  %v5344 = vshrl.u32 %v3786, 16
  %v5346 = vrot.slane %v5344, 7
  %v5347 = vshll.u32 %v3786, 16
  %v5349 = vor.u32 %v5346, %v5347
  %v5354 = vsel %vm1783, 4286644096, %v5343
  %v5355 = vsel %vm1783, 4286644096, %v5349
  %v5356 = vsel %vm1783, %v5340, 4286644096
  %v5357 = vsel %vm1783, %v5346, 4286644096
  %v5358 = vunpack.c.l.bf16 %v5354
  %v5359 = vunpack.c.h.bf16 %v5354
  %v5360 = vunpack.c.l.bf16 %v5355
  %v5361 = vunpack.c.h.bf16 %v5355
  %v5362 = vunpack.c.l.bf16 %v5356
  %v5363 = vunpack.c.l.bf16 %v5357
  %v5370 = vrot.slane %v5358, 1
  %v5371 = vrot.slane %v5359, 1
  %v5372 = vsel %vm1800, %v5370, %v5371
  %v5373 = vrot.slane %v5362, 1
  %v5374 = vsel %vm1800, %v5371, %v5373
  %v5375 = vrot.slane %v5360, 1
  %v5376 = vrot.slane %v5361, 1
  %v5377 = vsel %vm1800, %v5375, %v5376
  %v5378 = vrot.slane %v5363, 1
  %v5379 = vsel %vm1800, %v5376, %v5378
  %v5384 = vmax.f32 %v5358, %v5372
  %v5385 = vmax.f32 %v5359, %v5374
  %v5386 = vmax.f32 %v5360, %v5377
  %v5387 = vmax.f32 %v5361, %v5379
  %v5388 = vpack.c.bf16 %v5384, %v5384
  %v5389 = vpack.c.bf16 %v5385, %v5385
  %v5390 = vpack.c.bf16 %v5386, %v5386
  %v5391 = vpack.c.bf16 %v5387, %v5387
  %v5392 = vunpack.c.l.bf16 %v5388
  %v5393 = vunpack.c.l.bf16 %v5389
  %v5394 = vunpack.c.l.bf16 %v5390
  %v5395 = vunpack.c.l.bf16 %v5391
  %v5396 = vrot.slane %v5358, 2
  %v5397 = vrot.slane %v5359, 2
  %v5398 = vsel %vm1827, %v5396, %v5397
  %v5399 = vrot.slane %v5362, 2
  %v5400 = vsel %vm1827, %v5397, %v5399
  %v5401 = vrot.slane %v5360, 2
  %v5402 = vrot.slane %v5361, 2
  %v5403 = vsel %vm1827, %v5401, %v5402
  %v5404 = vrot.slane %v5363, 2
  %v5405 = vsel %vm1827, %v5402, %v5404
  %v5410 = vmax.f32 %v5392, %v5398
  %v5411 = vmax.f32 %v5393, %v5400
  %v5412 = vmax.f32 %v5394, %v5403
  %v5413 = vmax.f32 %v5395, %v5405
  %v5414 = vpack.c.bf16 %v5410, %v5410
  %v5415 = vpack.c.bf16 %v5411, %v5411
  %v5416 = vpack.c.bf16 %v5412, %v5412
  %v5417 = vpack.c.bf16 %v5413, %v5413
  %v5422 = vunpack.c.l.b16 %v5414
  %v5423 = vunpack.c.l.b16 %v5415
  %v5424 = vunpack.c.l.b16 %v5416
  %v5425 = vunpack.c.l.b16 %v5417
  %v5426 = vpack.c.b16 %v5423, %v5422
  %v5427 = vpack.c.b16 %v5425, %v5424
  %v5432 = vunpack.c.l.b16 %v4016
  %v5433 = vunpack.c.l.b16 %v4017
  %v5434 = vunpack.c.l.b16 %v4018
  %v5435 = vunpack.c.l.b16 %v4019
  %v5436 = vpack.c.b16 %v5433, %v5432
  %v5437 = vpack.c.b16 %v5435, %v5434
  %v5441 = vsel %vm512, %v5426, 0
  %v5444 = vsel %vm512, %v5427, 0
  %5446 = vmatpush.bf16.msra.mxu0 0
  %5447 = vmatpush.bf16.msra.mxu0 0
  %5448 = vmatpush.bf16.msra.mxu0 0
  %5449 = vmatpush.bf16.msra.mxu0 0
  %5450 = vmatpush.bf16.msra.mxu0 0
  %5451 = vmatpush.bf16.msra.mxu0 0
  %5452 = vmatpush.bf16.msra.mxu0 %v5437
  %5453 = vmatpush.bf16.msra.mxu0 %v5436
  %5454 = vmatmul.bf16.gmra.mxu0 %v5441
  %v5455 = vpop.f32.mrf.mxu0
  %v5456 = vadd.f32 0.0, %v5455
  %v5457 = vpop.f32.mrf.mxu0
  %v5458 = vadd.f32 0.0, %v5457
  %5459 = vmatmul.bf16.gmra.mxu0 %v5444
  %v5460 = vpop.f32.mrf.mxu0
  %v5461 = vadd.f32 0.0, %v5460
  %v5462 = vpop.f32.mrf.mxu0
  %v5463 = vadd.f32 0.0, %v5462
  %5464 = vdwg.mxu0
  %5469 = vrot.lane.b32.xlu0 %v5456, 24
  %v5470 = vpop.permute.xlu0 %5469
  %5471 = vrot.lane.b32.xlu0 %v5458, 24
  %v5472 = vpop.permute.xlu0 %5471
  %5473 = vrot.lane.b32.xlu0 %v5461, 24
  %v5474 = vpop.permute.xlu0 %5473
  %5475 = vrot.lane.b32.xlu0 %v5463, 24
  %v5476 = vpop.permute.xlu0 %5475
  %v5481 = vsel %vm1904, %v5334, %v5470
  %v5482 = vsel %vm1904, %v5335, %v5472
  %v5483 = vsel %vm1904, %v5336, %v5474
  %v5484 = vsel %vm1904, %v5337, %v5476
  %v5485 = vsel %vm512, %v5481, 0.0
  %v5486 = vsel %vm512, %v5482, 0.0
  %v5487 = vadd.f32 %v5485, %v5486
  %v5488 = vsel %vm512, %v5483, 0.0
  %v5489 = vadd.f32 %v5487, %v5488
  %v5490 = vsel %vm512, %v5484, 0.0
  %v5491 = vadd.f32 %v5489, %v5490
  %v5492 = vrot.slane %v5491, 4
  %v5493 = vadd.f32 %v5491, %v5492
  %v5494 = vrot.slane %v5493, 2
  %v5495 = vadd.f32 %v5493, %v5494
  %v5496 = vrot.slane %v5495, 1
  %v5497 = vadd.f32 %v5495, %v5496
  %v5498 = vmul.f32 %v5481, %v5481
  %v5499 = vmul.f32 %v5482, %v5482
  %v5500 = vmul.f32 %v5483, %v5483
  %v5501 = vmul.f32 %v5484, %v5484
  %v5502 = vsel %vm512, %v5498, 0.0
  %v5503 = vsel %vm512, %v5499, 0.0
  %v5504 = vadd.f32 %v5502, %v5503
  %v5505 = vsel %vm512, %v5500, 0.0
  %v5506 = vadd.f32 %v5504, %v5505
  %v5507 = vsel %vm512, %v5501, 0.0
  %v5508 = vadd.f32 %v5506, %v5507
  %v5509 = vrot.slane %v5508, 4
  %v5510 = vadd.f32 %v5508, %v5509
  %v5511 = vrot.slane %v5510, 2
  %v5512 = vadd.f32 %v5510, %v5511
  %v5513 = vrot.slane %v5512, 1
  %v5514 = vadd.f32 %v5512, %v5513
  %v5515 = vmul.f32 %v5497, 0.03125
  %v5516 = vmul.f32 %v5514, 0.03125
  %v5517 = vmul.f32 %v5515, %v5515
  %v5518 = vsub.f32 %v5516, %v5517
  %v5519 = vmax.f32 %v5518, 0.0
  %v5520 = vsub.f32 %v5481, %v5515
  %v5521 = vsub.f32 %v5482, %v5515
  %v5522 = vsub.f32 %v5483, %v5515
  %v5523 = vsub.f32 %v5484, %v5515
  %v5524 = vadd.f32 %v5519, 1e-05
  %v5525 = vrsqrt.pop %v5524
  %v5526 = vmul.f32 %v5525, %v5524
  %v5527 = vmul.f32 %v5526, %v5525
  %v5528 = vmul.f32 0.5, %v5527
  %v5529 = vsub.f32 1.5, %v5528
  %v5530 = vmul.f32 %v5525, %v5529
  %vm5531 = vweird.f32 %v5524
  %vm5532 = vweird.f32 %v5525
  %vm5533 = vmor %vm5531, %vm5532
  %v5534 = vsel %vm5533, %v5525, %v5530
  %v5535 = vmul.f32 %v5520, %v5534
  %v5536 = vmul.f32 %v5521, %v5534
  %v5537 = vmul.f32 %v5522, %v5534
  %v5538 = vmul.f32 %v5523, %v5534
  %v5540 = vperm.slane %v4020, 0
  %v5542 = vmul.f32 %v5535, %v5540
  %v5543 = vmul.f32 %v5536, %v5540
  %v5544 = vmul.f32 %v5537, %v5540
  %v5545 = vmul.f32 %v5538, %v5540
  %v5547 = vperm.slane %v4021, 0
  %v5549 = vadd.f32 %v5542, %v5547
  %v5550 = vadd.f32 %v5543, %v5547
  %v5551 = vadd.f32 %v5544, %v5547
  %v5552 = vadd.f32 %v5545, %v5547
  %v5553 = vmax.f32 %v5549, 0.0
  %v5554 = vmax.f32 %v5550, 0.0
  %v5555 = vmax.f32 %v5551, 0.0
  %v5556 = vmax.f32 %v5552, 0.0
  %5561 = vrot.lane.b32.xlu0 %v190, 96
  %v5562 = vpop.permute.xlu0 %5561
  %5563 = vrot.lane.b32.xlu0 %v191, 96
  %v5564 = vpop.permute.xlu0 %5563
  %5565 = vrot.lane.b32.xlu0 %v192, 96
  %v5566 = vpop.permute.xlu0 %5565
  %5567 = vrot.lane.b32.xlu0 %v193, 96
  %v5568 = vpop.permute.xlu0 %5567
  %v5573 = vadd.f32 %v5553, %v5562
  %v5574 = vadd.f32 %v5554, %v5564
  %v5575 = vadd.f32 %v5555, %v5566
  %v5576 = vadd.f32 %v5556, %v5568
  %v5577 = vmax.f32 %v5573, 0.0
  %v5578 = vmax.f32 %v5574, 0.0
  %v5579 = vmax.f32 %v5575, 0.0
  %v5580 = vmax.f32 %v5576, 0.0
  %5581 = vxpose.xlu0.b32.start [1/16] %v5577, 128
  %5582 = vxpose.xlu0.b32.cont [2/16] %v5578, 128
  %5583 = vxpose.xlu0.b32.cont [3/16] 0.0, 128
  %5584 = vxpose.xlu0.b32.cont [4/16] 0.0, 128
  %5585 = vxpose.xlu0.b32.cont [5/16] 0.0, 128
  %5586 = vxpose.xlu0.b32.cont [6/16] 0.0, 128
  %5587 = vxpose.xlu0.b32.cont [7/16] 0.0, 128
  %5588 = vxpose.xlu0.b32.cont [8/16] 0.0, 128
  %5589 = vxpose.xlu0.b32.cont [9/16] 0.0, 128
  %5590 = vxpose.xlu0.b32.cont [10/16] 0.0, 128
  %5591 = vxpose.xlu0.b32.cont [11/16] 0.0, 128
  %5592 = vxpose.xlu0.b32.cont [12/16] 0.0, 128
  %5593 = vxpose.xlu0.b32.cont [13/16] 0.0, 128
  %5594 = vxpose.xlu0.b32.cont [14/16] 0.0, 128
  %5595 = vxpose.xlu0.b32.cont [15/16] 0.0, 128
  %5596 = vxpose.xlu0.b32.end [16/16] 0.0, 128
  %v5597 = vpop.trf.xlu0
  %v5598 = vpop.trf.xlu0
  %v5599 = vpop.trf.xlu0
  %v5600 = vpop.trf.xlu0
  %v5601 = vpop.trf.xlu0
  %v5602 = vpop.trf.xlu0
  %v5603 = vpop.trf.xlu0
  %v5604 = vpop.trf.xlu0
  %v5605 = vpop.trf.xlu0
  %v5606 = vpop.trf.xlu0
  %v5607 = vpop.trf.xlu0
  %v5608 = vpop.trf.xlu0
  %v5609 = vpop.trf.xlu0
  %v5610 = vpop.trf.xlu0
  %v5611 = vpop.trf.xlu0
  %v5612 = vpop.trf.xlu0
  %vm5613 = vcmask 130048
  %5614 = vst.msk [vmem:[%s19] sm:$0xff] %vm5613, %v5597
  %5615 = vst.msk [vmem:[%s19 + $0x8] sm:$0xff] %vm5613, %v5598
  %5616 = vst.msk [vmem:[%s19 + $0x10] sm:$0xff] %vm5613, %v5599
  %5617 = vst.msk [vmem:[%s19 + $0x18] sm:$0xff] %vm5613, %v5600
  %5618 = vxpose.xlu0.b32.start [1/16] %v5579, 128
  %5619 = vxpose.xlu0.b32.cont [2/16] %v5580, 128
  %5620 = vxpose.xlu0.b32.cont [3/16] 0.0, 128
  %5621 = vxpose.xlu0.b32.cont [4/16] 0.0, 128
  %5622 = vxpose.xlu0.b32.cont [5/16] 0.0, 128
  %5623 = vxpose.xlu0.b32.cont [6/16] 0.0, 128
  %5624 = vxpose.xlu0.b32.cont [7/16] 0.0, 128
  %5625 = vxpose.xlu0.b32.cont [8/16] 0.0, 128
  %5626 = vxpose.xlu0.b32.cont [9/16] 0.0, 128
  %5627 = vxpose.xlu0.b32.cont [10/16] 0.0, 128
  %5628 = vxpose.xlu0.b32.cont [11/16] 0.0, 128
  %5629 = vxpose.xlu0.b32.cont [12/16] 0.0, 128
  %5630 = vxpose.xlu0.b32.cont [13/16] 0.0, 128
  %5631 = vxpose.xlu0.b32.cont [14/16] 0.0, 128
  %5632 = vxpose.xlu0.b32.cont [15/16] 0.0, 128
  %5633 = vxpose.xlu0.b32.end [16/16] 0.0, 128
  %v5634 = vpop.trf.xlu0
  %v5635 = vpop.trf.xlu0
  %v5636 = vpop.trf.xlu0
  %v5637 = vpop.trf.xlu0
  %v5638 = vpop.trf.xlu0
  %v5639 = vpop.trf.xlu0
  %v5640 = vpop.trf.xlu0
  %v5641 = vpop.trf.xlu0
  %v5642 = vpop.trf.xlu0
  %v5643 = vpop.trf.xlu0
  %v5644 = vpop.trf.xlu0
  %v5645 = vpop.trf.xlu0
  %v5646 = vpop.trf.xlu0
  %v5647 = vpop.trf.xlu0
  %v5648 = vpop.trf.xlu0
  %v5649 = vpop.trf.xlu0
  %s5650 = scalar_lea.vmem %s19, 32
  %5651 = vst.msk [vmem:[%s5650] sm:$0xff] %vm5613, %v5634
  %5652 = vst.msk [vmem:[%s5650 + $0x8] sm:$0xff] %vm5613, %v5635
  %5653 = vst.msk [vmem:[%s5650 + $0x10] sm:$0xff] %vm5613, %v5636
  %5654 = vst.msk [vmem:[%s5650 + $0x18] sm:$0xff] %vm5613, %v5637
  // Predicated region
  $region78: #{tpu_custom_call.1} parent=0 // pred_check
    _
  $region79: #{tpu_custom_call.1} parent=0 // pred_check_branch
    %5656 = sbr.rel (0) target = $region81
  $region80: #{tpu_custom_call.1} parent=0 // pred_region
    _
  $region81: #{tpu_custom_call.1} parent=0 // pred_fallthru
    _
  // Predicated region
  $region82: #{tpu_custom_call.1} parent=0 // pred_check
    _
  $region83: #{tpu_custom_call.1} parent=0 // pred_check_branch
    %5658 = sbr.rel (0) target = $region85
  $region84: #{tpu_custom_call.1} parent=0 // pred_region
    _
  $region85: #{tpu_custom_call.1} parent=0 // pred_fallthru
    _

</llo_original>
